<compile_context>
chip_gen: v5e
topology: v5e:2x2
jax: 0.10.0
libtpu: 0.0.40
codegen_flags: <defaults>
</compile_context>

<pallas_src>
import functools
import math

import jax
import jax.numpy as jnp
from jax import lax
from jax.experimental import pallas as pl
from jax.experimental.pallas import tpu as pltpu


# ---------------------------------------------------------------------------
# Fully fused forward kernel (one grid step = one batch element)
# ---------------------------------------------------------------------------

def _posegat_fused_kernel(*refs, n_kenc, n_layers, num_heads, include_pose,
                          N, D):
    feat_ref, pose_ref, mask_ref = refs[0], refs[1], refs[2]
    n_params = 2 * n_kenc + 9 * n_layers + 2
    prm = refs[3:3 + n_params]          # flat weight/bias refs (VMEM resident)
    out_ref = refs[3 + n_params]        # (1, N, N) scores
    attn_sc = refs[3 + n_params + 1]    # (2N, D) bf16 VMEM scratch

    Dh = D // num_heads
    scale = 1.0 / math.sqrt(Dh)
    dn = (((1,), (1,)), ((), ()))       # contract last dims, no batch dims

    x = feat_ref[0]                     # (2N, D) f32 residual stream
    mask = mask_ref[0]                  # (2, 1, N) additive key-padding mask

    # --- keypoint (pose) encoder MLP, added to features --------------------
    if include_pose:
        h = pose_ref[0]                 # (2N, P) f32
        for i in range(n_kenc):
            w = prm[2 * i][...]                     # bf16 weight
            b = prm[2 * i + 1][...]                 # f32 bias
            h = jnp.dot(h.astype(jnp.bfloat16), w,
                        preferred_element_type=jnp.float32) + b
            if i < n_kenc - 1:
                h = jnp.maximum(h, 0.0)
        x = x + h

    # --- attentional GNN layers (alternating self / cross attention) -------
    base = 2 * n_kenc
    for l in range(n_layers):
        (wqkv, bqkv, wo, bo, w1x, w1m, b1, w2, b2) = \
            prm[base + 9 * l: base + 9 * (l + 1)]
        cross = (l % 2 == 1)

        xb = x.astype(jnp.bfloat16)                 # cast once per layer
        qkv = jnp.dot(xb, wqkv[...],
                      preferred_element_type=jnp.float32) + bqkv[...]
        # hoisted: fold 1/sqrt(Dh) into q, cast q/k/v to bf16 once
        q = (qkv[:, :D] * scale).astype(jnp.bfloat16)
        k = qkv[:, D:2 * D].astype(jnp.bfloat16)
        v = qkv[:, 2 * D:].astype(jnp.bfloat16)

        for s in range(2):                          # image set of the queries
            t = (1 - s) if cross else s             # image set of keys/values
            qs = q[s * N:(s + 1) * N]
            ks = k[t * N:(t + 1) * N]
            vs = v[t * N:(t + 1) * N]
            ms = mask[t]                            # (1, N) additive mask
            for hh in range(num_heads):
                cs = slice(hh * Dh, (hh + 1) * Dh)
                sc = lax.dot_general(qs[:, cs], ks[:, cs], dn,
                                     preferred_element_type=jnp.float32) + ms
                smax = jnp.max(sc, axis=-1, keepdims=True)
                e = jnp.exp(sc - smax)
                denom = jnp.sum(e, axis=-1, keepdims=True)
                prob = (e * pl.reciprocal(denom, approx=True)
                        ).astype(jnp.bfloat16)
                oh = jnp.dot(prob, vs[:, cs],
                             preferred_element_type=jnp.float32)
                # store per-head result immediately -> bounds live ranges
                attn_sc[s * N:(s + 1) * N, cs] = oh.astype(attn_sc.dtype)

        # --- layer epilogue: msg = Wo(attn);  x += MLP([x ; msg]) ----------
        a = attn_sc[...]                            # (2N, D) bf16
        msg = jnp.dot(a, wo[...],
                      preferred_element_type=jnp.float32) + bo[...]
        h1 = (jnp.dot(xb, w1x[...], preferred_element_type=jnp.float32)
              + jnp.dot(msg.astype(jnp.bfloat16), w1m[...],
                        preferred_element_type=jnp.float32)
              + b1[...])
        h1 = jnp.maximum(h1, 0.0)
        h2 = jnp.dot(h1.astype(jnp.bfloat16), w2[...],
                     preferred_element_type=jnp.float32) + b2[...]
        x = x + h2
        # TODO(synk): dropout omitted (inference-mode identity).

    # --- output_fc + L2-normalize + matching scores -------------------------
    wout = prm[-2][...]
    bout = prm[-1][...]
    f = jnp.dot(x.astype(jnp.bfloat16), wout,
                preferred_element_type=jnp.float32) + bout          # (2N, D)
    inv = lax.rsqrt(jnp.maximum(jnp.sum(f * f, axis=-1, keepdims=True),
                                1e-24))
    fn = (f * inv).astype(jnp.bfloat16)
    scores = lax.dot_general(fn[:N], fn[N:], dn,
                             preferred_element_type=jnp.float32)
    out_ref[0] = (scores * (1.0 / 2.0001) + 0.5).astype(out_ref.dtype)


def pose_gat_forward(params, features, poses, masks, *, num_heads,
                     include_pose):
    B, two, N, D = features.shape
    assert two == 2
    assert D % num_heads == 0
    P = poses.shape[-1]

    # Layout plumbing on the host (free reshapes): both image sets stacked on
    # the row axis so the kernel block is lane-dense (2N, D).
    feat2 = features.reshape(B, 2 * N, D).astype(jnp.float32)
    pose2 = poses.reshape(B, 2 * N, P).astype(jnp.float32)
    # key_padding_mask semantics: True -> position ignored (large neg. logit)
    mask4 = jnp.where(masks, -1e9, 0.0).astype(jnp.float32).reshape(B, 2, 1, N)

    kenc = params["kenc"] if include_pose else []
    layers = params["layers"]
    wout, bout = params["out"]

    flat_params = []
    for (w, b) in kenc:
        flat_params += [w, b]
    for lp in layers:
        flat_params += [lp["wqkv"], lp["bqkv"], lp["wo"], lp["bo"],
                        lp["w1x"], lp["w1m"], lp["b1"], lp["w2"], lp["b2"]]
    flat_params += [wout, bout]

    in_specs = [
        pl.BlockSpec((1, 2 * N, D), lambda b: (b, 0, 0)),
        pl.BlockSpec((1, 2 * N, P), lambda b: (b, 0, 0)),
        pl.BlockSpec((1, 2, 1, N), lambda b: (b, 0, 0, 0)),
    ]
    # all weights / biases are 2-D and VMEM-resident across the grid
    for arr in flat_params:
        in_specs.append(pl.BlockSpec(arr.shape, lambda b: (0, 0)))

    kernel = functools.partial(
        _posegat_fused_kernel,
        n_kenc=len(kenc), n_layers=len(layers),
        num_heads=num_heads, include_pose=include_pose, N=N, D=D)

    return pl.pallas_call(
        kernel,
        out_shape=jax.ShapeDtypeStruct((B, N, N), jnp.float32),
        grid=(B,),
        in_specs=in_specs,
        out_specs=pl.BlockSpec((1, N, N), lambda b: (b, 0, 0)),
        scratch_shapes=[pltpu.VMEM((2 * N, D), jnp.bfloat16)],
        compiler_params=pltpu.CompilerParams(
            dimension_semantics=("parallel",)),
    )(feat2, pose2, mask4, *flat_params)


# ---------------------------------------------------------------------------
# Parameter init (plain JAX)
# ---------------------------------------------------------------------------

def init_params(key, pose_dim, feature_dim, kenc_hidden, num_layers):
    def dense(k, din, dout):
        kw, kb = jax.random.split(k)
        w = jax.random.normal(kw, (din, dout), jnp.float32) / math.sqrt(din)
        b = jax.random.normal(kb, (1, dout), jnp.float32) * 0.01
        return w.astype(jnp.bfloat16), b        # weights bf16, biases f32

    keys = jax.random.split(key, 2 + num_layers)
    params = {}

    # keypoint (pose) encoder MLP: pose_dim -> hidden... -> feature_dim
    dims = [pose_dim] + list(kenc_hidden) + [feature_dim]
    kk = jax.random.split(keys[0], len(dims) - 1)
    params["kenc"] = [dense(kk[i], dims[i], dims[i + 1])
                      for i in range(len(dims) - 1)]

    D = feature_dim
    layers = []
    for l in range(num_layers):
        lk = jax.random.split(keys[1 + l], 7)
        wq, bq = dense(lk[0], D, D)
        wk, bk = dense(lk[1], D, D)
        wv, bv = dense(lk[2], D, D)
        wqkv = jnp.concatenate([wq, wk, wv], axis=1)         # [D, 3D] bf16
        bqkv = jnp.concatenate([bq, bk, bv], axis=1)         # [1, 3D] f32
        wo, bo = dense(lk[3], D, D)
        # mlp1 weight split into x-half and msg-half (concat eliminated);
        # note: b1 is the single bias of mlp1's first layer (w1x's bias is
        # intentionally discarded).
        w1x, _ = dense(lk[4], D, 2 * D)
        w1m, b1 = dense(lk[5], D, 2 * D)
        w2, b2 = dense(lk[6], 2 * D, D)
        layers.append(dict(wqkv=wqkv, bqkv=bqkv, wo=wo, bo=bo,
                           w1x=w1x, w1m=w1m, b1=b1, w2=w2, b2=b2))
    params["layers"] = layers
    params["out"] = dense(keys[-1], D, D)
    return params


# ---------------------------------------------------------------------------
# Demo
# ---------------------------------------------------------------------------

if __name__ == "__main__":
    pose_dim = 3
    feature_dim = 32
    kenc_hidden = [16, 32]
    include_pose = True
    num_heads = 4
    num_layers = 2

    B, N = 2, 8

    key = jax.random.PRNGKey(0)
    kp, kf, kpos = jax.random.split(key, 3)

    params = init_params(kp, pose_dim, feature_dim, kenc_hidden, num_layers)
    features = jax.random.normal(kf, (B, 2, N, feature_dim), jnp.float32)
    poses = jax.random.normal(kpos, (B, 2, N, pose_dim), jnp.float32)
    # mask the last 2 nodes of image-set 1 in batch 0 (True = padded/ignored)
    masks = jnp.zeros((B, 2, N), jnp.bool_).at[0, 1, -2:].set(True)

    fwd = jax.jit(functools.partial(pose_gat_forward,
                                    num_heads=num_heads,
                                    include_pose=include_pose))
    scores = fwd(params, features, poses, masks)
    scores = jax.block_until_ready(scores)

    assert scores.shape == (B, N, N), scores.shape
    assert bool(jnp.all(jnp.isfinite(scores)))
    print("KERNEL_OK")
</pallas_src>

<mosaic_0001>
module attributes {stable_mosaic.version = 11 : i64} {
  func.func @_posegat_fused_kernel(%arg0: i32, %arg1: memref<1x16x32xf32, #tpu.memory_space<vmem>>, %arg2: memref<1x16x3xf32, #tpu.memory_space<vmem>>, %arg3: memref<1x2x1x8xf32, #tpu.memory_space<vmem>>, %arg4: memref<3x16xbf16, #tpu.memory_space<vmem>>, %arg5: memref<1x16xf32, #tpu.memory_space<vmem>>, %arg6: memref<16x32xbf16, #tpu.memory_space<vmem>>, %arg7: memref<1x32xf32, #tpu.memory_space<vmem>>, %arg8: memref<32x32xbf16, #tpu.memory_space<vmem>>, %arg9: memref<1x32xf32, #tpu.memory_space<vmem>>, %arg10: memref<32x96xbf16, #tpu.memory_space<vmem>>, %arg11: memref<1x96xf32, #tpu.memory_space<vmem>>, %arg12: memref<32x32xbf16, #tpu.memory_space<vmem>>, %arg13: memref<1x32xf32, #tpu.memory_space<vmem>>, %arg14: memref<32x64xbf16, #tpu.memory_space<vmem>>, %arg15: memref<32x64xbf16, #tpu.memory_space<vmem>>, %arg16: memref<1x64xf32, #tpu.memory_space<vmem>>, %arg17: memref<64x32xbf16, #tpu.memory_space<vmem>>, %arg18: memref<1x32xf32, #tpu.memory_space<vmem>>, %arg19: memref<32x96xbf16, #tpu.memory_space<vmem>>, %arg20: memref<1x96xf32, #tpu.memory_space<vmem>>, %arg21: memref<32x32xbf16, #tpu.memory_space<vmem>>, %arg22: memref<1x32xf32, #tpu.memory_space<vmem>>, %arg23: memref<32x64xbf16, #tpu.memory_space<vmem>>, %arg24: memref<32x64xbf16, #tpu.memory_space<vmem>>, %arg25: memref<1x64xf32, #tpu.memory_space<vmem>>, %arg26: memref<64x32xbf16, #tpu.memory_space<vmem>>, %arg27: memref<1x32xf32, #tpu.memory_space<vmem>>, %arg28: memref<32x32xbf16, #tpu.memory_space<vmem>>, %arg29: memref<1x32xf32, #tpu.memory_space<vmem>>, %arg30: memref<1x8x8xf32, #tpu.memory_space<vmem>>, %arg31: memref<16x32xbf16, #tpu.memory_space<vmem>>) attributes {dimension_semantics = [#tpu.dimension_semantics<parallel>], iteration_bounds = array<i64: 2>, scalar_prefetch = 0 : i64, scratch_operands = 1 : i64, tpu.core_type = #tpu.core_type<tc>, window_params = [{transform_indices = @transform_0, window_bounds = array<i64: 1, 16, 32>}, {transform_indices = @transform_1, window_bounds = array<i64: 1, 16, 3>}, {transform_indices = @transform_2, window_bounds = array<i64: 1, 2, 1, 8>}, {pipeline_mode = #tpu.pipeline_mode<synchronous>, transform_indices = @transform_3, window_bounds = array<i64: 3, 16>}, {pipeline_mode = #tpu.pipeline_mode<synchronous>, transform_indices = @transform_4, window_bounds = array<i64: 1, 16>}, {pipeline_mode = #tpu.pipeline_mode<synchronous>, transform_indices = @transform_5, window_bounds = array<i64: 16, 32>}, {pipeline_mode = #tpu.pipeline_mode<synchronous>, transform_indices = @transform_6, window_bounds = array<i64: 1, 32>}, {pipeline_mode = #tpu.pipeline_mode<synchronous>, transform_indices = @transform_7, window_bounds = array<i64: 32, 32>}, {pipeline_mode = #tpu.pipeline_mode<synchronous>, transform_indices = @transform_8, window_bounds = array<i64: 1, 32>}, {pipeline_mode = #tpu.pipeline_mode<synchronous>, transform_indices = @transform_9, window_bounds = array<i64: 32, 96>}, {pipeline_mode = #tpu.pipeline_mode<synchronous>, transform_indices = @transform_10, window_bounds = array<i64: 1, 96>}, {pipeline_mode = #tpu.pipeline_mode<synchronous>, transform_indices = @transform_11, window_bounds = array<i64: 32, 32>}, {pipeline_mode = #tpu.pipeline_mode<synchronous>, transform_indices = @transform_12, window_bounds = array<i64: 1, 32>}, {pipeline_mode = #tpu.pipeline_mode<synchronous>, transform_indices = @transform_13, window_bounds = array<i64: 32, 64>}, {pipeline_mode = #tpu.pipeline_mode<synchronous>, transform_indices = @transform_14, window_bounds = array<i64: 32, 64>}, {pipeline_mode = #tpu.pipeline_mode<synchronous>, transform_indices = @transform_15, window_bounds = array<i64: 1, 64>}, {pipeline_mode = #tpu.pipeline_mode<synchronous>, transform_indices = @transform_16, window_bounds = array<i64: 64, 32>}, {pipeline_mode = #tpu.pipeline_mode<synchronous>, transform_indices = @transform_17, window_bounds = array<i64: 1, 32>}, {pipeline_mode = #tpu.pipeline_mode<synchronous>, transform_indices = @transform_18, window_bounds = array<i64: 32, 96>}, {pipeline_mode = #tpu.pipeline_mode<synchronous>, transform_indices = @transform_19, window_bounds = array<i64: 1, 96>}, {pipeline_mode = #tpu.pipeline_mode<synchronous>, transform_indices = @transform_20, window_bounds = array<i64: 32, 32>}, {pipeline_mode = #tpu.pipeline_mode<synchronous>, transform_indices = @transform_21, window_bounds = array<i64: 1, 32>}, {pipeline_mode = #tpu.pipeline_mode<synchronous>, transform_indices = @transform_22, window_bounds = array<i64: 32, 64>}, {pipeline_mode = #tpu.pipeline_mode<synchronous>, transform_indices = @transform_23, window_bounds = array<i64: 32, 64>}, {pipeline_mode = #tpu.pipeline_mode<synchronous>, transform_indices = @transform_24, window_bounds = array<i64: 1, 64>}, {pipeline_mode = #tpu.pipeline_mode<synchronous>, transform_indices = @transform_25, window_bounds = array<i64: 64, 32>}, {pipeline_mode = #tpu.pipeline_mode<synchronous>, transform_indices = @transform_26, window_bounds = array<i64: 1, 32>}, {pipeline_mode = #tpu.pipeline_mode<synchronous>, transform_indices = @transform_27, window_bounds = array<i64: 32, 32>}, {pipeline_mode = #tpu.pipeline_mode<synchronous>, transform_indices = @transform_28, window_bounds = array<i64: 1, 32>}, {transform_indices = @transform_29, window_bounds = array<i64: 1, 8, 8>}]} {
    %c0 = arith.constant 0 : index
    %c0_0 = arith.constant 0 : index
    %c0_1 = arith.constant 0 : index
    %0 = vector.load %arg1[%c0, %c0_0, %c0_1] : memref<1x16x32xf32, #tpu.memory_space<vmem>>, vector<1x16x32xf32>
    %1 = vector.shape_cast %0 : vector<1x16x32xf32> to vector<16x32xf32>
    %c0_2 = arith.constant 0 : index
    %c0_3 = arith.constant 0 : index
    %c0_4 = arith.constant 0 : index
    %c0_5 = arith.constant 0 : index
    %2 = vector.load %arg3[%c0_2, %c0_3, %c0_4, %c0_5] : memref<1x2x1x8xf32, #tpu.memory_space<vmem>>, vector<1x2x1x8xf32>
    %3 = vector.shape_cast %2 : vector<1x2x1x8xf32> to vector<2x1x8xf32>
    %c0_6 = arith.constant 0 : index
    %c0_7 = arith.constant 0 : index
    %c0_8 = arith.constant 0 : index
    %4 = vector.load %arg2[%c0_6, %c0_7, %c0_8] : memref<1x16x3xf32, #tpu.memory_space<vmem>>, vector<1x16x3xf32>
    %5 = vector.shape_cast %4 : vector<1x16x3xf32> to vector<16x3xf32>
    %c0_9 = arith.constant 0 : index
    %c0_10 = arith.constant 0 : index
    %6 = vector.load %arg4[%c0_9, %c0_10] : memref<3x16xbf16, #tpu.memory_space<vmem>>, vector<3x16xbf16>
    %c0_11 = arith.constant 0 : index
    %c0_12 = arith.constant 0 : index
    %7 = vector.load %arg5[%c0_11, %c0_12] : memref<1x16xf32, #tpu.memory_space<vmem>>, vector<1x16xf32>
    %8 = arith.truncf %5 : vector<16x3xf32> to vector<16x3xbf16>
    %cst = arith.constant dense<0.000000e+00> : vector<16x16xf32>
    %9 = tpu.matmul %8, %6, %cst {dimension_numbers = #tpu.dot_dimension_numbers<[1], [0], [0], [1], [0, 0, 1, 1], [], []>} : vector<16x3xbf16>, vector<3x16xbf16>, vector<16x16xf32> -> vector<16x16xf32>
    %10 = vector.broadcast %7 : vector<1x16xf32> to vector<16x16xf32>
    %11 = arith.addf %9, %10 : vector<16x16xf32>
    %cst_13 = arith.constant 0.000000e+00 : f32
    %12 = vector.broadcast %cst_13 : f32 to vector<16x16xf32>
    %13 = arith.maximumf %11, %12 : vector<16x16xf32>
    %c0_14 = arith.constant 0 : index
    %c0_15 = arith.constant 0 : index
    %14 = vector.load %arg6[%c0_14, %c0_15] : memref<16x32xbf16, #tpu.memory_space<vmem>>, vector<16x32xbf16>
    %c0_16 = arith.constant 0 : index
    %c0_17 = arith.constant 0 : index
    %15 = vector.load %arg7[%c0_16, %c0_17] : memref<1x32xf32, #tpu.memory_space<vmem>>, vector<1x32xf32>
    %16 = arith.truncf %13 : vector<16x16xf32> to vector<16x16xbf16>
    %cst_18 = arith.constant dense<0.000000e+00> : vector<16x32xf32>
    %17 = tpu.matmul %16, %14, %cst_18 {dimension_numbers = #tpu.dot_dimension_numbers<[1], [0], [0], [1], [0, 0, 1, 1], [], []>} : vector<16x16xbf16>, vector<16x32xbf16>, vector<16x32xf32> -> vector<16x32xf32>
    %18 = vector.broadcast %15 : vector<1x32xf32> to vector<16x32xf32>
    %19 = arith.addf %17, %18 : vector<16x32xf32>
    %cst_19 = arith.constant 0.000000e+00 : f32
    %20 = vector.broadcast %cst_19 : f32 to vector<16x32xf32>
    %21 = arith.maximumf %19, %20 : vector<16x32xf32>
    %c0_20 = arith.constant 0 : index
    %c0_21 = arith.constant 0 : index
    %22 = vector.load %arg8[%c0_20, %c0_21] : memref<32x32xbf16, #tpu.memory_space<vmem>>, vector<32x32xbf16>
    %c0_22 = arith.constant 0 : index
    %c0_23 = arith.constant 0 : index
    %23 = vector.load %arg9[%c0_22, %c0_23] : memref<1x32xf32, #tpu.memory_space<vmem>>, vector<1x32xf32>
    %24 = arith.truncf %21 : vector<16x32xf32> to vector<16x32xbf16>
    %cst_24 = arith.constant dense<0.000000e+00> : vector<16x32xf32>
    %25 = tpu.matmul %24, %22, %cst_24 {dimension_numbers = #tpu.dot_dimension_numbers<[1], [0], [0], [1], [0, 0, 1, 1], [], []>} : vector<16x32xbf16>, vector<32x32xbf16>, vector<16x32xf32> -> vector<16x32xf32>
    %26 = vector.broadcast %23 : vector<1x32xf32> to vector<16x32xf32>
    %27 = arith.addf %25, %26 : vector<16x32xf32>
    %28 = arith.addf %1, %27 : vector<16x32xf32>
    %29 = arith.truncf %28 : vector<16x32xf32> to vector<16x32xbf16>
    %c0_25 = arith.constant 0 : index
    %c0_26 = arith.constant 0 : index
    %30 = vector.load %arg10[%c0_25, %c0_26] : memref<32x96xbf16, #tpu.memory_space<vmem>>, vector<32x96xbf16>
    %cst_27 = arith.constant dense<0.000000e+00> : vector<16x96xf32>
    %31 = tpu.matmul %29, %30, %cst_27 {dimension_numbers = #tpu.dot_dimension_numbers<[1], [0], [0], [1], [0, 0, 1, 1], [], []>} : vector<16x32xbf16>, vector<32x96xbf16>, vector<16x96xf32> -> vector<16x96xf32>
    %c0_28 = arith.constant 0 : index
    %c0_29 = arith.constant 0 : index
    %32 = vector.load %arg11[%c0_28, %c0_29] : memref<1x96xf32, #tpu.memory_space<vmem>>, vector<1x96xf32>
    %33 = vector.broadcast %32 : vector<1x96xf32> to vector<16x96xf32>
    %34 = arith.addf %31, %33 : vector<16x96xf32>
    %35 = vector.extract_strided_slice %34 {offsets = [0, 0], sizes = [16, 32], strides = [1, 1]} : vector<16x96xf32> to vector<16x32xf32>
    %cst_30 = arith.constant 0.353553385 : f32
    %36 = vector.broadcast %cst_30 : f32 to vector<16x32xf32>
    %37 = arith.mulf %35, %36 : vector<16x32xf32>
    %38 = arith.truncf %37 : vector<16x32xf32> to vector<16x32xbf16>
    %39 = vector.extract_strided_slice %34 {offsets = [0, 32], sizes = [16, 32], strides = [1, 1]} : vector<16x96xf32> to vector<16x32xf32>
    %40 = arith.truncf %39 : vector<16x32xf32> to vector<16x32xbf16>
    %41 = vector.extract_strided_slice %34 {offsets = [0, 64], sizes = [16, 32], strides = [1, 1]} : vector<16x96xf32> to vector<16x32xf32>
    %42 = arith.truncf %41 : vector<16x32xf32> to vector<16x32xbf16>
    %43 = vector.extract_strided_slice %38 {offsets = [0, 0], sizes = [8, 32], strides = [1, 1]} : vector<16x32xbf16> to vector<8x32xbf16>
    %44 = vector.extract_strided_slice %40 {offsets = [0, 0], sizes = [8, 32], strides = [1, 1]} : vector<16x32xbf16> to vector<8x32xbf16>
    %45 = vector.extract_strided_slice %42 {offsets = [0, 0], sizes = [8, 32], strides = [1, 1]} : vector<16x32xbf16> to vector<8x32xbf16>
    %46 = vector.extract_strided_slice %3 {offsets = [0, 0, 0], sizes = [1, 1, 8], strides = [1, 1, 1]} : vector<2x1x8xf32> to vector<1x1x8xf32>
    %47 = vector.shape_cast %46 : vector<1x1x8xf32> to vector<1x8xf32>
    %48 = vector.extract_strided_slice %43 {offsets = [0, 0], sizes = [8, 8], strides = [1, 1]} : vector<8x32xbf16> to vector<8x8xbf16>
    %49 = vector.extract_strided_slice %44 {offsets = [0, 0], sizes = [8, 8], strides = [1, 1]} : vector<8x32xbf16> to vector<8x8xbf16>
    %cst_31 = arith.constant dense<0.000000e+00> : vector<8x8xf32>
    %50 = tpu.matmul %48, %49, %cst_31 {dimension_numbers = #tpu.dot_dimension_numbers<[1], [1], [0], [0], [0, 0, 1, 0], [], []>} : vector<8x8xbf16>, vector<8x8xbf16>, vector<8x8xf32> -> vector<8x8xf32>
    %51 = vector.broadcast %47 : vector<1x8xf32> to vector<8x8xf32>
    %52 = arith.addf %50, %51 : vector<8x8xf32>
    %cst_32 = arith.constant dense<0xFF800000> : vector<8xf32>
    %53 = vector.multi_reduction <maximumf>, %52, %cst_32 [1] : vector<8x8xf32> to vector<8xf32>
    %54 = vector.shape_cast %53 : vector<8xf32> to vector<8x1xf32>
    %55 = vector.broadcast %54 : vector<8x1xf32> to vector<8x8xf32>
    %56 = arith.subf %52, %55 : vector<8x8xf32>
    %57 = math.exp %56 : vector<8x8xf32>
    %cst_33 = arith.constant dense<0.000000e+00> : vector<8xf32>
    %58 = vector.multi_reduction <add>, %57, %cst_33 [1] : vector<8x8xf32> to vector<8xf32>
    %59 = vector.shape_cast %58 : vector<8xf32> to vector<8x1xf32>
    %60 = tpu.reciprocal %59 {approx = true} : vector<8x1xf32> -> vector<8x1xf32>
    %61 = vector.broadcast %60 : vector<8x1xf32> to vector<8x8xf32>
    %62 = arith.mulf %57, %61 : vector<8x8xf32>
    %63 = arith.truncf %62 : vector<8x8xf32> to vector<8x8xbf16>
    %64 = vector.extract_strided_slice %45 {offsets = [0, 0], sizes = [8, 8], strides = [1, 1]} : vector<8x32xbf16> to vector<8x8xbf16>
    %cst_34 = arith.constant dense<0.000000e+00> : vector<8x8xf32>
    %65 = tpu.matmul %63, %64, %cst_34 {dimension_numbers = #tpu.dot_dimension_numbers<[1], [0], [0], [1], [0, 0, 1, 1], [], []>} : vector<8x8xbf16>, vector<8x8xbf16>, vector<8x8xf32> -> vector<8x8xf32>
    %66 = arith.truncf %65 : vector<8x8xf32> to vector<8x8xbf16>
    %c0_35 = arith.constant 0 : index
    %c0_36 = arith.constant 0 : index
    %67 = vector.load %arg31[%c0_35, %c0_36] : memref<16x32xbf16, #tpu.memory_space<vmem>>, vector<8x8xbf16>
    tpu.vector_store %arg31[%c0_35, %c0_36], %66 {strides = array<i32>} : memref<16x32xbf16, #tpu.memory_space<vmem>>, vector<8x8xbf16>,
    %68 = vector.extract_strided_slice %43 {offsets = [0, 8], sizes = [8, 8], strides = [1, 1]} : vector<8x32xbf16> to vector<8x8xbf16>
    %69 = vector.extract_strided_slice %44 {offsets = [0, 8], sizes = [8, 8], strides = [1, 1]} : vector<8x32xbf16> to vector<8x8xbf16>
    %cst_37 = arith.constant dense<0.000000e+00> : vector<8x8xf32>
    %70 = tpu.matmul %68, %69, %cst_37 {dimension_numbers = #tpu.dot_dimension_numbers<[1], [1], [0], [0], [0, 0, 1, 0], [], []>} : vector<8x8xbf16>, vector<8x8xbf16>, vector<8x8xf32> -> vector<8x8xf32>
    %71 = vector.broadcast %47 : vector<1x8xf32> to vector<8x8xf32>
    %72 = arith.addf %70, %71 : vector<8x8xf32>
    %cst_38 = arith.constant dense<0xFF800000> : vector<8xf32>
    %73 = vector.multi_reduction <maximumf>, %72, %cst_38 [1] : vector<8x8xf32> to vector<8xf32>
    %74 = vector.shape_cast %73 : vector<8xf32> to vector<8x1xf32>
    %75 = vector.broadcast %74 : vector<8x1xf32> to vector<8x8xf32>
    %76 = arith.subf %72, %75 : vector<8x8xf32>
    %77 = math.exp %76 : vector<8x8xf32>
    %cst_39 = arith.constant dense<0.000000e+00> : vector<8xf32>
    %78 = vector.multi_reduction <add>, %77, %cst_39 [1] : vector<8x8xf32> to vector<8xf32>
    %79 = vector.shape_cast %78 : vector<8xf32> to vector<8x1xf32>
    %80 = tpu.reciprocal %79 {approx = true} : vector<8x1xf32> -> vector<8x1xf32>
    %81 = vector.broadcast %80 : vector<8x1xf32> to vector<8x8xf32>
    %82 = arith.mulf %77, %81 : vector<8x8xf32>
    %83 = arith.truncf %82 : vector<8x8xf32> to vector<8x8xbf16>
    %84 = vector.extract_strided_slice %45 {offsets = [0, 8], sizes = [8, 8], strides = [1, 1]} : vector<8x32xbf16> to vector<8x8xbf16>
    %cst_40 = arith.constant dense<0.000000e+00> : vector<8x8xf32>
    %85 = tpu.matmul %83, %84, %cst_40 {dimension_numbers = #tpu.dot_dimension_numbers<[1], [0], [0], [1], [0, 0, 1, 1], [], []>} : vector<8x8xbf16>, vector<8x8xbf16>, vector<8x8xf32> -> vector<8x8xf32>
    %86 = arith.truncf %85 : vector<8x8xf32> to vector<8x8xbf16>
    %c0_41 = arith.constant 0 : index
    %c8 = arith.constant 8 : index
    %87 = vector.load %arg31[%c0_41, %c8] : memref<16x32xbf16, #tpu.memory_space<vmem>>, vector<8x8xbf16>
    tpu.vector_store %arg31[%c0_41, %c8], %86 {strides = array<i32>} : memref<16x32xbf16, #tpu.memory_space<vmem>>, vector<8x8xbf16>,
    %88 = vector.extract_strided_slice %43 {offsets = [0, 16], sizes = [8, 8], strides = [1, 1]} : vector<8x32xbf16> to vector<8x8xbf16>
    %89 = vector.extract_strided_slice %44 {offsets = [0, 16], sizes = [8, 8], strides = [1, 1]} : vector<8x32xbf16> to vector<8x8xbf16>
    %cst_42 = arith.constant dense<0.000000e+00> : vector<8x8xf32>
    %90 = tpu.matmul %88, %89, %cst_42 {dimension_numbers = #tpu.dot_dimension_numbers<[1], [1], [0], [0], [0, 0, 1, 0], [], []>} : vector<8x8xbf16>, vector<8x8xbf16>, vector<8x8xf32> -> vector<8x8xf32>
    %91 = vector.broadcast %47 : vector<1x8xf32> to vector<8x8xf32>
    %92 = arith.addf %90, %91 : vector<8x8xf32>
    %cst_43 = arith.constant dense<0xFF800000> : vector<8xf32>
    %93 = vector.multi_reduction <maximumf>, %92, %cst_43 [1] : vector<8x8xf32> to vector<8xf32>
    %94 = vector.shape_cast %93 : vector<8xf32> to vector<8x1xf32>
    %95 = vector.broadcast %94 : vector<8x1xf32> to vector<8x8xf32>
    %96 = arith.subf %92, %95 : vector<8x8xf32>
    %97 = math.exp %96 : vector<8x8xf32>
    %cst_44 = arith.constant dense<0.000000e+00> : vector<8xf32>
    %98 = vector.multi_reduction <add>, %97, %cst_44 [1] : vector<8x8xf32> to vector<8xf32>
    %99 = vector.shape_cast %98 : vector<8xf32> to vector<8x1xf32>
    %100 = tpu.reciprocal %99 {approx = true} : vector<8x1xf32> -> vector<8x1xf32>
    %101 = vector.broadcast %100 : vector<8x1xf32> to vector<8x8xf32>
    %102 = arith.mulf %97, %101 : vector<8x8xf32>
    %103 = arith.truncf %102 : vector<8x8xf32> to vector<8x8xbf16>
    %104 = vector.extract_strided_slice %45 {offsets = [0, 16], sizes = [8, 8], strides = [1, 1]} : vector<8x32xbf16> to vector<8x8xbf16>
    %cst_45 = arith.constant dense<0.000000e+00> : vector<8x8xf32>
    %105 = tpu.matmul %103, %104, %cst_45 {dimension_numbers = #tpu.dot_dimension_numbers<[1], [0], [0], [1], [0, 0, 1, 1], [], []>} : vector<8x8xbf16>, vector<8x8xbf16>, vector<8x8xf32> -> vector<8x8xf32>
    %106 = arith.truncf %105 : vector<8x8xf32> to vector<8x8xbf16>
    %c0_46 = arith.constant 0 : index
    %c16 = arith.constant 16 : index
    %107 = vector.load %arg31[%c0_46, %c16] : memref<16x32xbf16, #tpu.memory_space<vmem>>, vector<8x8xbf16>
    tpu.vector_store %arg31[%c0_46, %c16], %106 {strides = array<i32>} : memref<16x32xbf16, #tpu.memory_space<vmem>>, vector<8x8xbf16>,
    %108 = vector.extract_strided_slice %43 {offsets = [0, 24], sizes = [8, 8], strides = [1, 1]} : vector<8x32xbf16> to vector<8x8xbf16>
    %109 = vector.extract_strided_slice %44 {offsets = [0, 24], sizes = [8, 8], strides = [1, 1]} : vector<8x32xbf16> to vector<8x8xbf16>
    %cst_47 = arith.constant dense<0.000000e+00> : vector<8x8xf32>
    %110 = tpu.matmul %108, %109, %cst_47 {dimension_numbers = #tpu.dot_dimension_numbers<[1], [1], [0], [0], [0, 0, 1, 0], [], []>} : vector<8x8xbf16>, vector<8x8xbf16>, vector<8x8xf32> -> vector<8x8xf32>
    %111 = vector.broadcast %47 : vector<1x8xf32> to vector<8x8xf32>
    %112 = arith.addf %110, %111 : vector<8x8xf32>
    %cst_48 = arith.constant dense<0xFF800000> : vector<8xf32>
    %113 = vector.multi_reduction <maximumf>, %112, %cst_48 [1] : vector<8x8xf32> to vector<8xf32>
    %114 = vector.shape_cast %113 : vector<8xf32> to vector<8x1xf32>
    %115 = vector.broadcast %114 : vector<8x1xf32> to vector<8x8xf32>
    %116 = arith.subf %112, %115 : vector<8x8xf32>
    %117 = math.exp %116 : vector<8x8xf32>
    %cst_49 = arith.constant dense<0.000000e+00> : vector<8xf32>
    %118 = vector.multi_reduction <add>, %117, %cst_49 [1] : vector<8x8xf32> to vector<8xf32>
    %119 = vector.shape_cast %118 : vector<8xf32> to vector<8x1xf32>
    %120 = tpu.reciprocal %119 {approx = true} : vector<8x1xf32> -> vector<8x1xf32>
    %121 = vector.broadcast %120 : vector<8x1xf32> to vector<8x8xf32>
    %122 = arith.mulf %117, %121 : vector<8x8xf32>
    %123 = arith.truncf %122 : vector<8x8xf32> to vector<8x8xbf16>
    %124 = vector.extract_strided_slice %45 {offsets = [0, 24], sizes = [8, 8], strides = [1, 1]} : vector<8x32xbf16> to vector<8x8xbf16>
    %cst_50 = arith.constant dense<0.000000e+00> : vector<8x8xf32>
    %125 = tpu.matmul %123, %124, %cst_50 {dimension_numbers = #tpu.dot_dimension_numbers<[1], [0], [0], [1], [0, 0, 1, 1], [], []>} : vector<8x8xbf16>, vector<8x8xbf16>, vector<8x8xf32> -> vector<8x8xf32>
    %126 = arith.truncf %125 : vector<8x8xf32> to vector<8x8xbf16>
    %c0_51 = arith.constant 0 : index
    %c24 = arith.constant 24 : index
    %127 = vector.load %arg31[%c0_51, %c24] : memref<16x32xbf16, #tpu.memory_space<vmem>>, vector<8x8xbf16>
    tpu.vector_store %arg31[%c0_51, %c24], %126 {strides = array<i32>} : memref<16x32xbf16, #tpu.memory_space<vmem>>, vector<8x8xbf16>,
    %128 = vector.extract_strided_slice %38 {offsets = [8, 0], sizes = [8, 32], strides = [1, 1]} : vector<16x32xbf16> to vector<8x32xbf16>
    %129 = vector.extract_strided_slice %40 {offsets = [8, 0], sizes = [8, 32], strides = [1, 1]} : vector<16x32xbf16> to vector<8x32xbf16>
    %130 = vector.extract_strided_slice %42 {offsets = [8, 0], sizes = [8, 32], strides = [1, 1]} : vector<16x32xbf16> to vector<8x32xbf16>
    %131 = vector.extract_strided_slice %3 {offsets = [1, 0, 0], sizes = [1, 1, 8], strides = [1, 1, 1]} : vector<2x1x8xf32> to vector<1x1x8xf32>
    %132 = vector.shape_cast %131 : vector<1x1x8xf32> to vector<1x8xf32>
    %133 = vector.extract_strided_slice %128 {offsets = [0, 0], sizes = [8, 8], strides = [1, 1]} : vector<8x32xbf16> to vector<8x8xbf16>
    %134 = vector.extract_strided_slice %129 {offsets = [0, 0], sizes = [8, 8], strides = [1, 1]} : vector<8x32xbf16> to vector<8x8xbf16>
    %cst_52 = arith.constant dense<0.000000e+00> : vector<8x8xf32>
    %135 = tpu.matmul %133, %134, %cst_52 {dimension_numbers = #tpu.dot_dimension_numbers<[1], [1], [0], [0], [0, 0, 1, 0], [], []>} : vector<8x8xbf16>, vector<8x8xbf16>, vector<8x8xf32> -> vector<8x8xf32>
    %136 = vector.broadcast %132 : vector<1x8xf32> to vector<8x8xf32>
    %137 = arith.addf %135, %136 : vector<8x8xf32>
    %cst_53 = arith.constant dense<0xFF800000> : vector<8xf32>
    %138 = vector.multi_reduction <maximumf>, %137, %cst_53 [1] : vector<8x8xf32> to vector<8xf32>
    %139 = vector.shape_cast %138 : vector<8xf32> to vector<8x1xf32>
    %140 = vector.broadcast %139 : vector<8x1xf32> to vector<8x8xf32>
    %141 = arith.subf %137, %140 : vector<8x8xf32>
    %142 = math.exp %141 : vector<8x8xf32>
    %cst_54 = arith.constant dense<0.000000e+00> : vector<8xf32>
    %143 = vector.multi_reduction <add>, %142, %cst_54 [1] : vector<8x8xf32> to vector<8xf32>
    %144 = vector.shape_cast %143 : vector<8xf32> to vector<8x1xf32>
    %145 = tpu.reciprocal %144 {approx = true} : vector<8x1xf32> -> vector<8x1xf32>
    %146 = vector.broadcast %145 : vector<8x1xf32> to vector<8x8xf32>
    %147 = arith.mulf %142, %146 : vector<8x8xf32>
    %148 = arith.truncf %147 : vector<8x8xf32> to vector<8x8xbf16>
    %149 = vector.extract_strided_slice %130 {offsets = [0, 0], sizes = [8, 8], strides = [1, 1]} : vector<8x32xbf16> to vector<8x8xbf16>
    %cst_55 = arith.constant dense<0.000000e+00> : vector<8x8xf32>
    %150 = tpu.matmul %148, %149, %cst_55 {dimension_numbers = #tpu.dot_dimension_numbers<[1], [0], [0], [1], [0, 0, 1, 1], [], []>} : vector<8x8xbf16>, vector<8x8xbf16>, vector<8x8xf32> -> vector<8x8xf32>
    %151 = arith.truncf %150 : vector<8x8xf32> to vector<8x8xbf16>
    %c8_56 = arith.constant 8 : index
    %c0_57 = arith.constant 0 : index
    %152 = vector.load %arg31[%c8_56, %c0_57] : memref<16x32xbf16, #tpu.memory_space<vmem>>, vector<8x8xbf16>
    tpu.vector_store %arg31[%c8_56, %c0_57], %151 {strides = array<i32>} : memref<16x32xbf16, #tpu.memory_space<vmem>>, vector<8x8xbf16>,
    %153 = vector.extract_strided_slice %128 {offsets = [0, 8], sizes = [8, 8], strides = [1, 1]} : vector<8x32xbf16> to vector<8x8xbf16>
    %154 = vector.extract_strided_slice %129 {offsets = [0, 8], sizes = [8, 8], strides = [1, 1]} : vector<8x32xbf16> to vector<8x8xbf16>
    %cst_58 = arith.constant dense<0.000000e+00> : vector<8x8xf32>
    %155 = tpu.matmul %153, %154, %cst_58 {dimension_numbers = #tpu.dot_dimension_numbers<[1], [1], [0], [0], [0, 0, 1, 0], [], []>} : vector<8x8xbf16>, vector<8x8xbf16>, vector<8x8xf32> -> vector<8x8xf32>
    %156 = vector.broadcast %132 : vector<1x8xf32> to vector<8x8xf32>
    %157 = arith.addf %155, %156 : vector<8x8xf32>
    %cst_59 = arith.constant dense<0xFF800000> : vector<8xf32>
    %158 = vector.multi_reduction <maximumf>, %157, %cst_59 [1] : vector<8x8xf32> to vector<8xf32>
    %159 = vector.shape_cast %158 : vector<8xf32> to vector<8x1xf32>
    %160 = vector.broadcast %159 : vector<8x1xf32> to vector<8x8xf32>
    %161 = arith.subf %157, %160 : vector<8x8xf32>
    %162 = math.exp %161 : vector<8x8xf32>
    %cst_60 = arith.constant dense<0.000000e+00> : vector<8xf32>
    %163 = vector.multi_reduction <add>, %162, %cst_60 [1] : vector<8x8xf32> to vector<8xf32>
    %164 = vector.shape_cast %163 : vector<8xf32> to vector<8x1xf32>
    %165 = tpu.reciprocal %164 {approx = true} : vector<8x1xf32> -> vector<8x1xf32>
    %166 = vector.broadcast %165 : vector<8x1xf32> to vector<8x8xf32>
    %167 = arith.mulf %162, %166 : vector<8x8xf32>
    %168 = arith.truncf %167 : vector<8x8xf32> to vector<8x8xbf16>
    %169 = vector.extract_strided_slice %130 {offsets = [0, 8], sizes = [8, 8], strides = [1, 1]} : vector<8x32xbf16> to vector<8x8xbf16>
    %cst_61 = arith.constant dense<0.000000e+00> : vector<8x8xf32>
    %170 = tpu.matmul %168, %169, %cst_61 {dimension_numbers = #tpu.dot_dimension_numbers<[1], [0], [0], [1], [0, 0, 1, 1], [], []>} : vector<8x8xbf16>, vector<8x8xbf16>, vector<8x8xf32> -> vector<8x8xf32>
    %171 = arith.truncf %170 : vector<8x8xf32> to vector<8x8xbf16>
    %c8_62 = arith.constant 8 : index
    %c8_63 = arith.constant 8 : index
    %172 = vector.load %arg31[%c8_62, %c8_63] : memref<16x32xbf16, #tpu.memory_space<vmem>>, vector<8x8xbf16>
    tpu.vector_store %arg31[%c8_62, %c8_63], %171 {strides = array<i32>} : memref<16x32xbf16, #tpu.memory_space<vmem>>, vector<8x8xbf16>,
    %173 = vector.extract_strided_slice %128 {offsets = [0, 16], sizes = [8, 8], strides = [1, 1]} : vector<8x32xbf16> to vector<8x8xbf16>
    %174 = vector.extract_strided_slice %129 {offsets = [0, 16], sizes = [8, 8], strides = [1, 1]} : vector<8x32xbf16> to vector<8x8xbf16>
    %cst_64 = arith.constant dense<0.000000e+00> : vector<8x8xf32>
    %175 = tpu.matmul %173, %174, %cst_64 {dimension_numbers = #tpu.dot_dimension_numbers<[1], [1], [0], [0], [0, 0, 1, 0], [], []>} : vector<8x8xbf16>, vector<8x8xbf16>, vector<8x8xf32> -> vector<8x8xf32>
    %176 = vector.broadcast %132 : vector<1x8xf32> to vector<8x8xf32>
    %177 = arith.addf %175, %176 : vector<8x8xf32>
    %cst_65 = arith.constant dense<0xFF800000> : vector<8xf32>
    %178 = vector.multi_reduction <maximumf>, %177, %cst_65 [1] : vector<8x8xf32> to vector<8xf32>
    %179 = vector.shape_cast %178 : vector<8xf32> to vector<8x1xf32>
    %180 = vector.broadcast %179 : vector<8x1xf32> to vector<8x8xf32>
    %181 = arith.subf %177, %180 : vector<8x8xf32>
    %182 = math.exp %181 : vector<8x8xf32>
    %cst_66 = arith.constant dense<0.000000e+00> : vector<8xf32>
    %183 = vector.multi_reduction <add>, %182, %cst_66 [1] : vector<8x8xf32> to vector<8xf32>
    %184 = vector.shape_cast %183 : vector<8xf32> to vector<8x1xf32>
    %185 = tpu.reciprocal %184 {approx = true} : vector<8x1xf32> -> vector<8x1xf32>
    %186 = vector.broadcast %185 : vector<8x1xf32> to vector<8x8xf32>
    %187 = arith.mulf %182, %186 : vector<8x8xf32>
    %188 = arith.truncf %187 : vector<8x8xf32> to vector<8x8xbf16>
    %189 = vector.extract_strided_slice %130 {offsets = [0, 16], sizes = [8, 8], strides = [1, 1]} : vector<8x32xbf16> to vector<8x8xbf16>
    %cst_67 = arith.constant dense<0.000000e+00> : vector<8x8xf32>
    %190 = tpu.matmul %188, %189, %cst_67 {dimension_numbers = #tpu.dot_dimension_numbers<[1], [0], [0], [1], [0, 0, 1, 1], [], []>} : vector<8x8xbf16>, vector<8x8xbf16>, vector<8x8xf32> -> vector<8x8xf32>
    %191 = arith.truncf %190 : vector<8x8xf32> to vector<8x8xbf16>
    %c8_68 = arith.constant 8 : index
    %c16_69 = arith.constant 16 : index
    %192 = vector.load %arg31[%c8_68, %c16_69] : memref<16x32xbf16, #tpu.memory_space<vmem>>, vector<8x8xbf16>
    tpu.vector_store %arg31[%c8_68, %c16_69], %191 {strides = array<i32>} : memref<16x32xbf16, #tpu.memory_space<vmem>>, vector<8x8xbf16>,
    %193 = vector.extract_strided_slice %128 {offsets = [0, 24], sizes = [8, 8], strides = [1, 1]} : vector<8x32xbf16> to vector<8x8xbf16>
    %194 = vector.extract_strided_slice %129 {offsets = [0, 24], sizes = [8, 8], strides = [1, 1]} : vector<8x32xbf16> to vector<8x8xbf16>
    %cst_70 = arith.constant dense<0.000000e+00> : vector<8x8xf32>
    %195 = tpu.matmul %193, %194, %cst_70 {dimension_numbers = #tpu.dot_dimension_numbers<[1], [1], [0], [0], [0, 0, 1, 0], [], []>} : vector<8x8xbf16>, vector<8x8xbf16>, vector<8x8xf32> -> vector<8x8xf32>
    %196 = vector.broadcast %132 : vector<1x8xf32> to vector<8x8xf32>
    %197 = arith.addf %195, %196 : vector<8x8xf32>
    %cst_71 = arith.constant dense<0xFF800000> : vector<8xf32>
    %198 = vector.multi_reduction <maximumf>, %197, %cst_71 [1] : vector<8x8xf32> to vector<8xf32>
    %199 = vector.shape_cast %198 : vector<8xf32> to vector<8x1xf32>
    %200 = vector.broadcast %199 : vector<8x1xf32> to vector<8x8xf32>
    %201 = arith.subf %197, %200 : vector<8x8xf32>
    %202 = math.exp %201 : vector<8x8xf32>
    %cst_72 = arith.constant dense<0.000000e+00> : vector<8xf32>
    %203 = vector.multi_reduction <add>, %202, %cst_72 [1] : vector<8x8xf32> to vector<8xf32>
    %204 = vector.shape_cast %203 : vector<8xf32> to vector<8x1xf32>
    %205 = tpu.reciprocal %204 {approx = true} : vector<8x1xf32> -> vector<8x1xf32>
    %206 = vector.broadcast %205 : vector<8x1xf32> to vector<8x8xf32>
    %207 = arith.mulf %202, %206 : vector<8x8xf32>
    %208 = arith.truncf %207 : vector<8x8xf32> to vector<8x8xbf16>
    %209 = vector.extract_strided_slice %130 {offsets = [0, 24], sizes = [8, 8], strides = [1, 1]} : vector<8x32xbf16> to vector<8x8xbf16>
    %cst_73 = arith.constant dense<0.000000e+00> : vector<8x8xf32>
    %210 = tpu.matmul %208, %209, %cst_73 {dimension_numbers = #tpu.dot_dimension_numbers<[1], [0], [0], [1], [0, 0, 1, 1], [], []>} : vector<8x8xbf16>, vector<8x8xbf16>, vector<8x8xf32> -> vector<8x8xf32>
    %211 = arith.truncf %210 : vector<8x8xf32> to vector<8x8xbf16>
    %c8_74 = arith.constant 8 : index
    %c24_75 = arith.constant 24 : index
    %212 = vector.load %arg31[%c8_74, %c24_75] : memref<16x32xbf16, #tpu.memory_space<vmem>>, vector<8x8xbf16>
    tpu.vector_store %arg31[%c8_74, %c24_75], %211 {strides = array<i32>} : memref<16x32xbf16, #tpu.memory_space<vmem>>, vector<8x8xbf16>,
    %c0_76 = arith.constant 0 : index
    %c0_77 = arith.constant 0 : index
    %213 = vector.load %arg31[%c0_76, %c0_77] : memref<16x32xbf16, #tpu.memory_space<vmem>>, vector<16x32xbf16>
    %c0_78 = arith.constant 0 : index
    %c0_79 = arith.constant 0 : index
    %214 = vector.load %arg12[%c0_78, %c0_79] : memref<32x32xbf16, #tpu.memory_space<vmem>>, vector<32x32xbf16>
    %cst_80 = arith.constant dense<0.000000e+00> : vector<16x32xf32>
    %215 = tpu.matmul %213, %214, %cst_80 {dimension_numbers = #tpu.dot_dimension_numbers<[1], [0], [0], [1], [0, 0, 1, 1], [], []>} : vector<16x32xbf16>, vector<32x32xbf16>, vector<16x32xf32> -> vector<16x32xf32>
    %c0_81 = arith.constant 0 : index
    %c0_82 = arith.constant 0 : index
    %216 = vector.load %arg13[%c0_81, %c0_82] : memref<1x32xf32, #tpu.memory_space<vmem>>, vector<1x32xf32>
    %217 = vector.broadcast %216 : vector<1x32xf32> to vector<16x32xf32>
    %218 = arith.addf %215, %217 : vector<16x32xf32>
    %c0_83 = arith.constant 0 : index
    %c0_84 = arith.constant 0 : index
    %219 = vector.load %arg14[%c0_83, %c0_84] : memref<32x64xbf16, #tpu.memory_space<vmem>>, vector<32x64xbf16>
    %cst_85 = arith.constant dense<0.000000e+00> : vector<16x64xf32>
    %220 = tpu.matmul %29, %219, %cst_85 {dimension_numbers = #tpu.dot_dimension_numbers<[1], [0], [0], [1], [0, 0, 1, 1], [], []>} : vector<16x32xbf16>, vector<32x64xbf16>, vector<16x64xf32> -> vector<16x64xf32>
    %221 = arith.truncf %218 : vector<16x32xf32> to vector<16x32xbf16>
    %c0_86 = arith.constant 0 : index
    %c0_87 = arith.constant 0 : index
    %222 = vector.load %arg15[%c0_86, %c0_87] : memref<32x64xbf16, #tpu.memory_space<vmem>>, vector<32x64xbf16>
    %cst_88 = arith.constant dense<0.000000e+00> : vector<16x64xf32>
    %223 = tpu.matmul %221, %222, %cst_88 {dimension_numbers = #tpu.dot_dimension_numbers<[1], [0], [0], [1], [0, 0, 1, 1], [], []>} : vector<16x32xbf16>, vector<32x64xbf16>, vector<16x64xf32> -> vector<16x64xf32>
    %224 = arith.addf %220, %223 : vector<16x64xf32>
    %c0_89 = arith.constant 0 : index
    %c0_90 = arith.constant 0 : index
    %225 = vector.load %arg16[%c0_89, %c0_90] : memref<1x64xf32, #tpu.memory_space<vmem>>, vector<1x64xf32>
    %226 = vector.broadcast %225 : vector<1x64xf32> to vector<16x64xf32>
    %227 = arith.addf %224, %226 : vector<16x64xf32>
    %cst_91 = arith.constant 0.000000e+00 : f32
    %228 = vector.broadcast %cst_91 : f32 to vector<16x64xf32>
    %229 = arith.maximumf %227, %228 : vector<16x64xf32>
    %230 = arith.truncf %229 : vector<16x64xf32> to vector<16x64xbf16>
    %c0_92 = arith.constant 0 : index
    %c0_93 = arith.constant 0 : index
    %231 = vector.load %arg17[%c0_92, %c0_93] : memref<64x32xbf16, #tpu.memory_space<vmem>>, vector<64x32xbf16>
    %cst_94 = arith.constant dense<0.000000e+00> : vector<16x32xf32>
    %232 = tpu.matmul %230, %231, %cst_94 {dimension_numbers = #tpu.dot_dimension_numbers<[1], [0], [0], [1], [0, 0, 1, 1], [], []>} : vector<16x64xbf16>, vector<64x32xbf16>, vector<16x32xf32> -> vector<16x32xf32>
    %c0_95 = arith.constant 0 : index
    %c0_96 = arith.constant 0 : index
    %233 = vector.load %arg18[%c0_95, %c0_96] : memref<1x32xf32, #tpu.memory_space<vmem>>, vector<1x32xf32>
    %234 = vector.broadcast %233 : vector<1x32xf32> to vector<16x32xf32>
    %235 = arith.addf %232, %234 : vector<16x32xf32>
    %236 = arith.addf %28, %235 : vector<16x32xf32>
    %237 = arith.truncf %236 : vector<16x32xf32> to vector<16x32xbf16>
    %c0_97 = arith.constant 0 : index
    %c0_98 = arith.constant 0 : index
    %238 = vector.load %arg19[%c0_97, %c0_98] : memref<32x96xbf16, #tpu.memory_space<vmem>>, vector<32x96xbf16>
    %cst_99 = arith.constant dense<0.000000e+00> : vector<16x96xf32>
    %239 = tpu.matmul %237, %238, %cst_99 {dimension_numbers = #tpu.dot_dimension_numbers<[1], [0], [0], [1], [0, 0, 1, 1], [], []>} : vector<16x32xbf16>, vector<32x96xbf16>, vector<16x96xf32> -> vector<16x96xf32>
    %c0_100 = arith.constant 0 : index
    %c0_101 = arith.constant 0 : index
    %240 = vector.load %arg20[%c0_100, %c0_101] : memref<1x96xf32, #tpu.memory_space<vmem>>, vector<1x96xf32>
    %241 = vector.broadcast %240 : vector<1x96xf32> to vector<16x96xf32>
    %242 = arith.addf %239, %241 : vector<16x96xf32>
    %243 = vector.extract_strided_slice %242 {offsets = [0, 0], sizes = [16, 32], strides = [1, 1]} : vector<16x96xf32> to vector<16x32xf32>
    %cst_102 = arith.constant 0.353553385 : f32
    %244 = vector.broadcast %cst_102 : f32 to vector<16x32xf32>
    %245 = arith.mulf %243, %244 : vector<16x32xf32>
    %246 = arith.truncf %245 : vector<16x32xf32> to vector<16x32xbf16>
    %247 = vector.extract_strided_slice %242 {offsets = [0, 32], sizes = [16, 32], strides = [1, 1]} : vector<16x96xf32> to vector<16x32xf32>
    %248 = arith.truncf %247 : vector<16x32xf32> to vector<16x32xbf16>
    %249 = vector.extract_strided_slice %242 {offsets = [0, 64], sizes = [16, 32], strides = [1, 1]} : vector<16x96xf32> to vector<16x32xf32>
    %250 = arith.truncf %249 : vector<16x32xf32> to vector<16x32xbf16>
    %251 = vector.extract_strided_slice %246 {offsets = [0, 0], sizes = [8, 32], strides = [1, 1]} : vector<16x32xbf16> to vector<8x32xbf16>
    %252 = vector.extract_strided_slice %248 {offsets = [8, 0], sizes = [8, 32], strides = [1, 1]} : vector<16x32xbf16> to vector<8x32xbf16>
    %253 = vector.extract_strided_slice %250 {offsets = [8, 0], sizes = [8, 32], strides = [1, 1]} : vector<16x32xbf16> to vector<8x32xbf16>
    %254 = vector.extract_strided_slice %3 {offsets = [1, 0, 0], sizes = [1, 1, 8], strides = [1, 1, 1]} : vector<2x1x8xf32> to vector<1x1x8xf32>
    %255 = vector.shape_cast %254 : vector<1x1x8xf32> to vector<1x8xf32>
    %256 = vector.extract_strided_slice %251 {offsets = [0, 0], sizes = [8, 8], strides = [1, 1]} : vector<8x32xbf16> to vector<8x8xbf16>
    %257 = vector.extract_strided_slice %252 {offsets = [0, 0], sizes = [8, 8], strides = [1, 1]} : vector<8x32xbf16> to vector<8x8xbf16>
    %cst_103 = arith.constant dense<0.000000e+00> : vector<8x8xf32>
    %258 = tpu.matmul %256, %257, %cst_103 {dimension_numbers = #tpu.dot_dimension_numbers<[1], [1], [0], [0], [0, 0, 1, 0], [], []>} : vector<8x8xbf16>, vector<8x8xbf16>, vector<8x8xf32> -> vector<8x8xf32>
    %259 = vector.broadcast %255 : vector<1x8xf32> to vector<8x8xf32>
    %260 = arith.addf %258, %259 : vector<8x8xf32>
    %cst_104 = arith.constant dense<0xFF800000> : vector<8xf32>
    %261 = vector.multi_reduction <maximumf>, %260, %cst_104 [1] : vector<8x8xf32> to vector<8xf32>
    %262 = vector.shape_cast %261 : vector<8xf32> to vector<8x1xf32>
    %263 = vector.broadcast %262 : vector<8x1xf32> to vector<8x8xf32>
    %264 = arith.subf %260, %263 : vector<8x8xf32>
    %265 = math.exp %264 : vector<8x8xf32>
    %cst_105 = arith.constant dense<0.000000e+00> : vector<8xf32>
    %266 = vector.multi_reduction <add>, %265, %cst_105 [1] : vector<8x8xf32> to vector<8xf32>
    %267 = vector.shape_cast %266 : vector<8xf32> to vector<8x1xf32>
    %268 = tpu.reciprocal %267 {approx = true} : vector<8x1xf32> -> vector<8x1xf32>
    %269 = vector.broadcast %268 : vector<8x1xf32> to vector<8x8xf32>
    %270 = arith.mulf %265, %269 : vector<8x8xf32>
    %271 = arith.truncf %270 : vector<8x8xf32> to vector<8x8xbf16>
    %272 = vector.extract_strided_slice %253 {offsets = [0, 0], sizes = [8, 8], strides = [1, 1]} : vector<8x32xbf16> to vector<8x8xbf16>
    %cst_106 = arith.constant dense<0.000000e+00> : vector<8x8xf32>
    %273 = tpu.matmul %271, %272, %cst_106 {dimension_numbers = #tpu.dot_dimension_numbers<[1], [0], [0], [1], [0, 0, 1, 1], [], []>} : vector<8x8xbf16>, vector<8x8xbf16>, vector<8x8xf32> -> vector<8x8xf32>
    %274 = arith.truncf %273 : vector<8x8xf32> to vector<8x8xbf16>
    %c0_107 = arith.constant 0 : index
    %c0_108 = arith.constant 0 : index
    %275 = vector.load %arg31[%c0_107, %c0_108] : memref<16x32xbf16, #tpu.memory_space<vmem>>, vector<8x8xbf16>
    tpu.vector_store %arg31[%c0_107, %c0_108], %274 {strides = array<i32>} : memref<16x32xbf16, #tpu.memory_space<vmem>>, vector<8x8xbf16>,
    %276 = vector.extract_strided_slice %251 {offsets = [0, 8], sizes = [8, 8], strides = [1, 1]} : vector<8x32xbf16> to vector<8x8xbf16>
    %277 = vector.extract_strided_slice %252 {offsets = [0, 8], sizes = [8, 8], strides = [1, 1]} : vector<8x32xbf16> to vector<8x8xbf16>
    %cst_109 = arith.constant dense<0.000000e+00> : vector<8x8xf32>
    %278 = tpu.matmul %276, %277, %cst_109 {dimension_numbers = #tpu.dot_dimension_numbers<[1], [1], [0], [0], [0, 0, 1, 0], [], []>} : vector<8x8xbf16>, vector<8x8xbf16>, vector<8x8xf32> -> vector<8x8xf32>
    %279 = vector.broadcast %255 : vector<1x8xf32> to vector<8x8xf32>
    %280 = arith.addf %278, %279 : vector<8x8xf32>
    %cst_110 = arith.constant dense<0xFF800000> : vector<8xf32>
    %281 = vector.multi_reduction <maximumf>, %280, %cst_110 [1] : vector<8x8xf32> to vector<8xf32>
    %282 = vector.shape_cast %281 : vector<8xf32> to vector<8x1xf32>
    %283 = vector.broadcast %282 : vector<8x1xf32> to vector<8x8xf32>
    %284 = arith.subf %280, %283 : vector<8x8xf32>
    %285 = math.exp %284 : vector<8x8xf32>
    %cst_111 = arith.constant dense<0.000000e+00> : vector<8xf32>
    %286 = vector.multi_reduction <add>, %285, %cst_111 [1] : vector<8x8xf32> to vector<8xf32>
    %287 = vector.shape_cast %286 : vector<8xf32> to vector<8x1xf32>
    %288 = tpu.reciprocal %287 {approx = true} : vector<8x1xf32> -> vector<8x1xf32>
    %289 = vector.broadcast %288 : vector<8x1xf32> to vector<8x8xf32>
    %290 = arith.mulf %285, %289 : vector<8x8xf32>
    %291 = arith.truncf %290 : vector<8x8xf32> to vector<8x8xbf16>
    %292 = vector.extract_strided_slice %253 {offsets = [0, 8], sizes = [8, 8], strides = [1, 1]} : vector<8x32xbf16> to vector<8x8xbf16>
    %cst_112 = arith.constant dense<0.000000e+00> : vector<8x8xf32>
    %293 = tpu.matmul %291, %292, %cst_112 {dimension_numbers = #tpu.dot_dimension_numbers<[1], [0], [0], [1], [0, 0, 1, 1], [], []>} : vector<8x8xbf16>, vector<8x8xbf16>, vector<8x8xf32> -> vector<8x8xf32>
    %294 = arith.truncf %293 : vector<8x8xf32> to vector<8x8xbf16>
    %c0_113 = arith.constant 0 : index
    %c8_114 = arith.constant 8 : index
    %295 = vector.load %arg31[%c0_113, %c8_114] : memref<16x32xbf16, #tpu.memory_space<vmem>>, vector<8x8xbf16>
    tpu.vector_store %arg31[%c0_113, %c8_114], %294 {strides = array<i32>} : memref<16x32xbf16, #tpu.memory_space<vmem>>, vector<8x8xbf16>,
    %296 = vector.extract_strided_slice %251 {offsets = [0, 16], sizes = [8, 8], strides = [1, 1]} : vector<8x32xbf16> to vector<8x8xbf16>
    %297 = vector.extract_strided_slice %252 {offsets = [0, 16], sizes = [8, 8], strides = [1, 1]} : vector<8x32xbf16> to vector<8x8xbf16>
    %cst_115 = arith.constant dense<0.000000e+00> : vector<8x8xf32>
    %298 = tpu.matmul %296, %297, %cst_115 {dimension_numbers = #tpu.dot_dimension_numbers<[1], [1], [0], [0], [0, 0, 1, 0], [], []>} : vector<8x8xbf16>, vector<8x8xbf16>, vector<8x8xf32> -> vector<8x8xf32>
    %299 = vector.broadcast %255 : vector<1x8xf32> to vector<8x8xf32>
    %300 = arith.addf %298, %299 : vector<8x8xf32>
    %cst_116 = arith.constant dense<0xFF800000> : vector<8xf32>
    %301 = vector.multi_reduction <maximumf>, %300, %cst_116 [1] : vector<8x8xf32> to vector<8xf32>
    %302 = vector.shape_cast %301 : vector<8xf32> to vector<8x1xf32>
    %303 = vector.broadcast %302 : vector<8x1xf32> to vector<8x8xf32>
    %304 = arith.subf %300, %303 : vector<8x8xf32>
    %305 = math.exp %304 : vector<8x8xf32>
    %cst_117 = arith.constant dense<0.000000e+00> : vector<8xf32>
    %306 = vector.multi_reduction <add>, %305, %cst_117 [1] : vector<8x8xf32> to vector<8xf32>
    %307 = vector.shape_cast %306 : vector<8xf32> to vector<8x1xf32>
    %308 = tpu.reciprocal %307 {approx = true} : vector<8x1xf32> -> vector<8x1xf32>
    %309 = vector.broadcast %308 : vector<8x1xf32> to vector<8x8xf32>
    %310 = arith.mulf %305, %309 : vector<8x8xf32>
    %311 = arith.truncf %310 : vector<8x8xf32> to vector<8x8xbf16>
    %312 = vector.extract_strided_slice %253 {offsets = [0, 16], sizes = [8, 8], strides = [1, 1]} : vector<8x32xbf16> to vector<8x8xbf16>
    %cst_118 = arith.constant dense<0.000000e+00> : vector<8x8xf32>
    %313 = tpu.matmul %311, %312, %cst_118 {dimension_numbers = #tpu.dot_dimension_numbers<[1], [0], [0], [1], [0, 0, 1, 1], [], []>} : vector<8x8xbf16>, vector<8x8xbf16>, vector<8x8xf32> -> vector<8x8xf32>
    %314 = arith.truncf %313 : vector<8x8xf32> to vector<8x8xbf16>
    %c0_119 = arith.constant 0 : index
    %c16_120 = arith.constant 16 : index
    %315 = vector.load %arg31[%c0_119, %c16_120] : memref<16x32xbf16, #tpu.memory_space<vmem>>, vector<8x8xbf16>
    tpu.vector_store %arg31[%c0_119, %c16_120], %314 {strides = array<i32>} : memref<16x32xbf16, #tpu.memory_space<vmem>>, vector<8x8xbf16>,
    %316 = vector.extract_strided_slice %251 {offsets = [0, 24], sizes = [8, 8], strides = [1, 1]} : vector<8x32xbf16> to vector<8x8xbf16>
    %317 = vector.extract_strided_slice %252 {offsets = [0, 24], sizes = [8, 8], strides = [1, 1]} : vector<8x32xbf16> to vector<8x8xbf16>
    %cst_121 = arith.constant dense<0.000000e+00> : vector<8x8xf32>
    %318 = tpu.matmul %316, %317, %cst_121 {dimension_numbers = #tpu.dot_dimension_numbers<[1], [1], [0], [0], [0, 0, 1, 0], [], []>} : vector<8x8xbf16>, vector<8x8xbf16>, vector<8x8xf32> -> vector<8x8xf32>
    %319 = vector.broadcast %255 : vector<1x8xf32> to vector<8x8xf32>
    %320 = arith.addf %318, %319 : vector<8x8xf32>
    %cst_122 = arith.constant dense<0xFF800000> : vector<8xf32>
    %321 = vector.multi_reduction <maximumf>, %320, %cst_122 [1] : vector<8x8xf32> to vector<8xf32>
    %322 = vector.shape_cast %321 : vector<8xf32> to vector<8x1xf32>
    %323 = vector.broadcast %322 : vector<8x1xf32> to vector<8x8xf32>
    %324 = arith.subf %320, %323 : vector<8x8xf32>
    %325 = math.exp %324 : vector<8x8xf32>
    %cst_123 = arith.constant dense<0.000000e+00> : vector<8xf32>
    %326 = vector.multi_reduction <add>, %325, %cst_123 [1] : vector<8x8xf32> to vector<8xf32>
    %327 = vector.shape_cast %326 : vector<8xf32> to vector<8x1xf32>
    %328 = tpu.reciprocal %327 {approx = true} : vector<8x1xf32> -> vector<8x1xf32>
    %329 = vector.broadcast %328 : vector<8x1xf32> to vector<8x8xf32>
    %330 = arith.mulf %325, %329 : vector<8x8xf32>
    %331 = arith.truncf %330 : vector<8x8xf32> to vector<8x8xbf16>
    %332 = vector.extract_strided_slice %253 {offsets = [0, 24], sizes = [8, 8], strides = [1, 1]} : vector<8x32xbf16> to vector<8x8xbf16>
    %cst_124 = arith.constant dense<0.000000e+00> : vector<8x8xf32>
    %333 = tpu.matmul %331, %332, %cst_124 {dimension_numbers = #tpu.dot_dimension_numbers<[1], [0], [0], [1], [0, 0, 1, 1], [], []>} : vector<8x8xbf16>, vector<8x8xbf16>, vector<8x8xf32> -> vector<8x8xf32>
    %334 = arith.truncf %333 : vector<8x8xf32> to vector<8x8xbf16>
    %c0_125 = arith.constant 0 : index
    %c24_126 = arith.constant 24 : index
    %335 = vector.load %arg31[%c0_125, %c24_126] : memref<16x32xbf16, #tpu.memory_space<vmem>>, vector<8x8xbf16>
    tpu.vector_store %arg31[%c0_125, %c24_126], %334 {strides = array<i32>} : memref<16x32xbf16, #tpu.memory_space<vmem>>, vector<8x8xbf16>,
    %336 = vector.extract_strided_slice %246 {offsets = [8, 0], sizes = [8, 32], strides = [1, 1]} : vector<16x32xbf16> to vector<8x32xbf16>
    %337 = vector.extract_strided_slice %248 {offsets = [0, 0], sizes = [8, 32], strides = [1, 1]} : vector<16x32xbf16> to vector<8x32xbf16>
    %338 = vector.extract_strided_slice %250 {offsets = [0, 0], sizes = [8, 32], strides = [1, 1]} : vector<16x32xbf16> to vector<8x32xbf16>
    %339 = vector.extract_strided_slice %3 {offsets = [0, 0, 0], sizes = [1, 1, 8], strides = [1, 1, 1]} : vector<2x1x8xf32> to vector<1x1x8xf32>
    %340 = vector.shape_cast %339 : vector<1x1x8xf32> to vector<1x8xf32>
    %341 = vector.extract_strided_slice %336 {offsets = [0, 0], sizes = [8, 8], strides = [1, 1]} : vector<8x32xbf16> to vector<8x8xbf16>
    %342 = vector.extract_strided_slice %337 {offsets = [0, 0], sizes = [8, 8], strides = [1, 1]} : vector<8x32xbf16> to vector<8x8xbf16>
    %cst_127 = arith.constant dense<0.000000e+00> : vector<8x8xf32>
    %343 = tpu.matmul %341, %342, %cst_127 {dimension_numbers = #tpu.dot_dimension_numbers<[1], [1], [0], [0], [0, 0, 1, 0], [], []>} : vector<8x8xbf16>, vector<8x8xbf16>, vector<8x8xf32> -> vector<8x8xf32>
    %344 = vector.broadcast %340 : vector<1x8xf32> to vector<8x8xf32>
    %345 = arith.addf %343, %344 : vector<8x8xf32>
    %cst_128 = arith.constant dense<0xFF800000> : vector<8xf32>
    %346 = vector.multi_reduction <maximumf>, %345, %cst_128 [1] : vector<8x8xf32> to vector<8xf32>
    %347 = vector.shape_cast %346 : vector<8xf32> to vector<8x1xf32>
    %348 = vector.broadcast %347 : vector<8x1xf32> to vector<8x8xf32>
    %349 = arith.subf %345, %348 : vector<8x8xf32>
    %350 = math.exp %349 : vector<8x8xf32>
    %cst_129 = arith.constant dense<0.000000e+00> : vector<8xf32>
    %351 = vector.multi_reduction <add>, %350, %cst_129 [1] : vector<8x8xf32> to vector<8xf32>
    %352 = vector.shape_cast %351 : vector<8xf32> to vector<8x1xf32>
    %353 = tpu.reciprocal %352 {approx = true} : vector<8x1xf32> -> vector<8x1xf32>
    %354 = vector.broadcast %353 : vector<8x1xf32> to vector<8x8xf32>
    %355 = arith.mulf %350, %354 : vector<8x8xf32>
    %356 = arith.truncf %355 : vector<8x8xf32> to vector<8x8xbf16>
    %357 = vector.extract_strided_slice %338 {offsets = [0, 0], sizes = [8, 8], strides = [1, 1]} : vector<8x32xbf16> to vector<8x8xbf16>
    %cst_130 = arith.constant dense<0.000000e+00> : vector<8x8xf32>
    %358 = tpu.matmul %356, %357, %cst_130 {dimension_numbers = #tpu.dot_dimension_numbers<[1], [0], [0], [1], [0, 0, 1, 1], [], []>} : vector<8x8xbf16>, vector<8x8xbf16>, vector<8x8xf32> -> vector<8x8xf32>
    %359 = arith.truncf %358 : vector<8x8xf32> to vector<8x8xbf16>
    %c8_131 = arith.constant 8 : index
    %c0_132 = arith.constant 0 : index
    %360 = vector.load %arg31[%c8_131, %c0_132] : memref<16x32xbf16, #tpu.memory_space<vmem>>, vector<8x8xbf16>
    tpu.vector_store %arg31[%c8_131, %c0_132], %359 {strides = array<i32>} : memref<16x32xbf16, #tpu.memory_space<vmem>>, vector<8x8xbf16>,
    %361 = vector.extract_strided_slice %336 {offsets = [0, 8], sizes = [8, 8], strides = [1, 1]} : vector<8x32xbf16> to vector<8x8xbf16>
    %362 = vector.extract_strided_slice %337 {offsets = [0, 8], sizes = [8, 8], strides = [1, 1]} : vector<8x32xbf16> to vector<8x8xbf16>
    %cst_133 = arith.constant dense<0.000000e+00> : vector<8x8xf32>
    %363 = tpu.matmul %361, %362, %cst_133 {dimension_numbers = #tpu.dot_dimension_numbers<[1], [1], [0], [0], [0, 0, 1, 0], [], []>} : vector<8x8xbf16>, vector<8x8xbf16>, vector<8x8xf32> -> vector<8x8xf32>
    %364 = vector.broadcast %340 : vector<1x8xf32> to vector<8x8xf32>
    %365 = arith.addf %363, %364 : vector<8x8xf32>
    %cst_134 = arith.constant dense<0xFF800000> : vector<8xf32>
    %366 = vector.multi_reduction <maximumf>, %365, %cst_134 [1] : vector<8x8xf32> to vector<8xf32>
    %367 = vector.shape_cast %366 : vector<8xf32> to vector<8x1xf32>
    %368 = vector.broadcast %367 : vector<8x1xf32> to vector<8x8xf32>
    %369 = arith.subf %365, %368 : vector<8x8xf32>
    %370 = math.exp %369 : vector<8x8xf32>
    %cst_135 = arith.constant dense<0.000000e+00> : vector<8xf32>
    %371 = vector.multi_reduction <add>, %370, %cst_135 [1] : vector<8x8xf32> to vector<8xf32>
    %372 = vector.shape_cast %371 : vector<8xf32> to vector<8x1xf32>
    %373 = tpu.reciprocal %372 {approx = true} : vector<8x1xf32> -> vector<8x1xf32>
    %374 = vector.broadcast %373 : vector<8x1xf32> to vector<8x8xf32>
    %375 = arith.mulf %370, %374 : vector<8x8xf32>
    %376 = arith.truncf %375 : vector<8x8xf32> to vector<8x8xbf16>
    %377 = vector.extract_strided_slice %338 {offsets = [0, 8], sizes = [8, 8], strides = [1, 1]} : vector<8x32xbf16> to vector<8x8xbf16>
    %cst_136 = arith.constant dense<0.000000e+00> : vector<8x8xf32>
    %378 = tpu.matmul %376, %377, %cst_136 {dimension_numbers = #tpu.dot_dimension_numbers<[1], [0], [0], [1], [0, 0, 1, 1], [], []>} : vector<8x8xbf16>, vector<8x8xbf16>, vector<8x8xf32> -> vector<8x8xf32>
    %379 = arith.truncf %378 : vector<8x8xf32> to vector<8x8xbf16>
    %c8_137 = arith.constant 8 : index
    %c8_138 = arith.constant 8 : index
    %380 = vector.load %arg31[%c8_137, %c8_138] : memref<16x32xbf16, #tpu.memory_space<vmem>>, vector<8x8xbf16>
    tpu.vector_store %arg31[%c8_137, %c8_138], %379 {strides = array<i32>} : memref<16x32xbf16, #tpu.memory_space<vmem>>, vector<8x8xbf16>,
    %381 = vector.extract_strided_slice %336 {offsets = [0, 16], sizes = [8, 8], strides = [1, 1]} : vector<8x32xbf16> to vector<8x8xbf16>
    %382 = vector.extract_strided_slice %337 {offsets = [0, 16], sizes = [8, 8], strides = [1, 1]} : vector<8x32xbf16> to vector<8x8xbf16>
    %cst_139 = arith.constant dense<0.000000e+00> : vector<8x8xf32>
    %383 = tpu.matmul %381, %382, %cst_139 {dimension_numbers = #tpu.dot_dimension_numbers<[1], [1], [0], [0], [0, 0, 1, 0], [], []>} : vector<8x8xbf16>, vector<8x8xbf16>, vector<8x8xf32> -> vector<8x8xf32>
    %384 = vector.broadcast %340 : vector<1x8xf32> to vector<8x8xf32>
    %385 = arith.addf %383, %384 : vector<8x8xf32>
    %cst_140 = arith.constant dense<0xFF800000> : vector<8xf32>
    %386 = vector.multi_reduction <maximumf>, %385, %cst_140 [1] : vector<8x8xf32> to vector<8xf32>
    %387 = vector.shape_cast %386 : vector<8xf32> to vector<8x1xf32>
    %388 = vector.broadcast %387 : vector<8x1xf32> to vector<8x8xf32>
    %389 = arith.subf %385, %388 : vector<8x8xf32>
    %390 = math.exp %389 : vector<8x8xf32>
    %cst_141 = arith.constant dense<0.000000e+00> : vector<8xf32>
    %391 = vector.multi_reduction <add>, %390, %cst_141 [1] : vector<8x8xf32> to vector<8xf32>
    %392 = vector.shape_cast %391 : vector<8xf32> to vector<8x1xf32>
    %393 = tpu.reciprocal %392 {approx = true} : vector<8x1xf32> -> vector<8x1xf32>
    %394 = vector.broadcast %393 : vector<8x1xf32> to vector<8x8xf32>
    %395 = arith.mulf %390, %394 : vector<8x8xf32>
    %396 = arith.truncf %395 : vector<8x8xf32> to vector<8x8xbf16>
    %397 = vector.extract_strided_slice %338 {offsets = [0, 16], sizes = [8, 8], strides = [1, 1]} : vector<8x32xbf16> to vector<8x8xbf16>
    %cst_142 = arith.constant dense<0.000000e+00> : vector<8x8xf32>
    %398 = tpu.matmul %396, %397, %cst_142 {dimension_numbers = #tpu.dot_dimension_numbers<[1], [0], [0], [1], [0, 0, 1, 1], [], []>} : vector<8x8xbf16>, vector<8x8xbf16>, vector<8x8xf32> -> vector<8x8xf32>
    %399 = arith.truncf %398 : vector<8x8xf32> to vector<8x8xbf16>
    %c8_143 = arith.constant 8 : index
    %c16_144 = arith.constant 16 : index
    %400 = vector.load %arg31[%c8_143, %c16_144] : memref<16x32xbf16, #tpu.memory_space<vmem>>, vector<8x8xbf16>
    tpu.vector_store %arg31[%c8_143, %c16_144], %399 {strides = array<i32>} : memref<16x32xbf16, #tpu.memory_space<vmem>>, vector<8x8xbf16>,
    %401 = vector.extract_strided_slice %336 {offsets = [0, 24], sizes = [8, 8], strides = [1, 1]} : vector<8x32xbf16> to vector<8x8xbf16>
    %402 = vector.extract_strided_slice %337 {offsets = [0, 24], sizes = [8, 8], strides = [1, 1]} : vector<8x32xbf16> to vector<8x8xbf16>
    %cst_145 = arith.constant dense<0.000000e+00> : vector<8x8xf32>
    %403 = tpu.matmul %401, %402, %cst_145 {dimension_numbers = #tpu.dot_dimension_numbers<[1], [1], [0], [0], [0, 0, 1, 0], [], []>} : vector<8x8xbf16>, vector<8x8xbf16>, vector<8x8xf32> -> vector<8x8xf32>
    %404 = vector.broadcast %340 : vector<1x8xf32> to vector<8x8xf32>
    %405 = arith.addf %403, %404 : vector<8x8xf32>
    %cst_146 = arith.constant dense<0xFF800000> : vector<8xf32>
    %406 = vector.multi_reduction <maximumf>, %405, %cst_146 [1] : vector<8x8xf32> to vector<8xf32>
    %407 = vector.shape_cast %406 : vector<8xf32> to vector<8x1xf32>
    %408 = vector.broadcast %407 : vector<8x1xf32> to vector<8x8xf32>
    %409 = arith.subf %405, %408 : vector<8x8xf32>
    %410 = math.exp %409 : vector<8x8xf32>
    %cst_147 = arith.constant dense<0.000000e+00> : vector<8xf32>
    %411 = vector.multi_reduction <add>, %410, %cst_147 [1] : vector<8x8xf32> to vector<8xf32>
    %412 = vector.shape_cast %411 : vector<8xf32> to vector<8x1xf32>
    %413 = tpu.reciprocal %412 {approx = true} : vector<8x1xf32> -> vector<8x1xf32>
    %414 = vector.broadcast %413 : vector<8x1xf32> to vector<8x8xf32>
    %415 = arith.mulf %410, %414 : vector<8x8xf32>
    %416 = arith.truncf %415 : vector<8x8xf32> to vector<8x8xbf16>
    %417 = vector.extract_strided_slice %338 {offsets = [0, 24], sizes = [8, 8], strides = [1, 1]} : vector<8x32xbf16> to vector<8x8xbf16>
    %cst_148 = arith.constant dense<0.000000e+00> : vector<8x8xf32>
    %418 = tpu.matmul %416, %417, %cst_148 {dimension_numbers = #tpu.dot_dimension_numbers<[1], [0], [0], [1], [0, 0, 1, 1], [], []>} : vector<8x8xbf16>, vector<8x8xbf16>, vector<8x8xf32> -> vector<8x8xf32>
    %419 = arith.truncf %418 : vector<8x8xf32> to vector<8x8xbf16>
    %c8_149 = arith.constant 8 : index
    %c24_150 = arith.constant 24 : index
    %420 = vector.load %arg31[%c8_149, %c24_150] : memref<16x32xbf16, #tpu.memory_space<vmem>>, vector<8x8xbf16>
    tpu.vector_store %arg31[%c8_149, %c24_150], %419 {strides = array<i32>} : memref<16x32xbf16, #tpu.memory_space<vmem>>, vector<8x8xbf16>,
    %c0_151 = arith.constant 0 : index
    %c0_152 = arith.constant 0 : index
    %421 = vector.load %arg31[%c0_151, %c0_152] : memref<16x32xbf16, #tpu.memory_space<vmem>>, vector<16x32xbf16>
    %c0_153 = arith.constant 0 : index
    %c0_154 = arith.constant 0 : index
    %422 = vector.load %arg21[%c0_153, %c0_154] : memref<32x32xbf16, #tpu.memory_space<vmem>>, vector<32x32xbf16>
    %cst_155 = arith.constant dense<0.000000e+00> : vector<16x32xf32>
    %423 = tpu.matmul %421, %422, %cst_155 {dimension_numbers = #tpu.dot_dimension_numbers<[1], [0], [0], [1], [0, 0, 1, 1], [], []>} : vector<16x32xbf16>, vector<32x32xbf16>, vector<16x32xf32> -> vector<16x32xf32>
    %c0_156 = arith.constant 0 : index
    %c0_157 = arith.constant 0 : index
    %424 = vector.load %arg22[%c0_156, %c0_157] : memref<1x32xf32, #tpu.memory_space<vmem>>, vector<1x32xf32>
    %425 = vector.broadcast %424 : vector<1x32xf32> to vector<16x32xf32>
    %426 = arith.addf %423, %425 : vector<16x32xf32>
    %c0_158 = arith.constant 0 : index
    %c0_159 = arith.constant 0 : index
    %427 = vector.load %arg23[%c0_158, %c0_159] : memref<32x64xbf16, #tpu.memory_space<vmem>>, vector<32x64xbf16>
    %cst_160 = arith.constant dense<0.000000e+00> : vector<16x64xf32>
    %428 = tpu.matmul %237, %427, %cst_160 {dimension_numbers = #tpu.dot_dimension_numbers<[1], [0], [0], [1], [0, 0, 1, 1], [], []>} : vector<16x32xbf16>, vector<32x64xbf16>, vector<16x64xf32> -> vector<16x64xf32>
    %429 = arith.truncf %426 : vector<16x32xf32> to vector<16x32xbf16>
    %c0_161 = arith.constant 0 : index
    %c0_162 = arith.constant 0 : index
    %430 = vector.load %arg24[%c0_161, %c0_162] : memref<32x64xbf16, #tpu.memory_space<vmem>>, vector<32x64xbf16>
    %cst_163 = arith.constant dense<0.000000e+00> : vector<16x64xf32>
    %431 = tpu.matmul %429, %430, %cst_163 {dimension_numbers = #tpu.dot_dimension_numbers<[1], [0], [0], [1], [0, 0, 1, 1], [], []>} : vector<16x32xbf16>, vector<32x64xbf16>, vector<16x64xf32> -> vector<16x64xf32>
    %432 = arith.addf %428, %431 : vector<16x64xf32>
    %c0_164 = arith.constant 0 : index
    %c0_165 = arith.constant 0 : index
    %433 = vector.load %arg25[%c0_164, %c0_165] : memref<1x64xf32, #tpu.memory_space<vmem>>, vector<1x64xf32>
    %434 = vector.broadcast %433 : vector<1x64xf32> to vector<16x64xf32>
    %435 = arith.addf %432, %434 : vector<16x64xf32>
    %cst_166 = arith.constant 0.000000e+00 : f32
    %436 = vector.broadcast %cst_166 : f32 to vector<16x64xf32>
    %437 = arith.maximumf %435, %436 : vector<16x64xf32>
    %438 = arith.truncf %437 : vector<16x64xf32> to vector<16x64xbf16>
    %c0_167 = arith.constant 0 : index
    %c0_168 = arith.constant 0 : index
    %439 = vector.load %arg26[%c0_167, %c0_168] : memref<64x32xbf16, #tpu.memory_space<vmem>>, vector<64x32xbf16>
    %cst_169 = arith.constant dense<0.000000e+00> : vector<16x32xf32>
    %440 = tpu.matmul %438, %439, %cst_169 {dimension_numbers = #tpu.dot_dimension_numbers<[1], [0], [0], [1], [0, 0, 1, 1], [], []>} : vector<16x64xbf16>, vector<64x32xbf16>, vector<16x32xf32> -> vector<16x32xf32>
    %c0_170 = arith.constant 0 : index
    %c0_171 = arith.constant 0 : index
    %441 = vector.load %arg27[%c0_170, %c0_171] : memref<1x32xf32, #tpu.memory_space<vmem>>, vector<1x32xf32>
    %442 = vector.broadcast %441 : vector<1x32xf32> to vector<16x32xf32>
    %443 = arith.addf %440, %442 : vector<16x32xf32>
    %444 = arith.addf %236, %443 : vector<16x32xf32>
    %c0_172 = arith.constant 0 : index
    %c0_173 = arith.constant 0 : index
    %445 = vector.load %arg28[%c0_172, %c0_173] : memref<32x32xbf16, #tpu.memory_space<vmem>>, vector<32x32xbf16>
    %c0_174 = arith.constant 0 : index
    %c0_175 = arith.constant 0 : index
    %446 = vector.load %arg29[%c0_174, %c0_175] : memref<1x32xf32, #tpu.memory_space<vmem>>, vector<1x32xf32>
    %447 = arith.truncf %444 : vector<16x32xf32> to vector<16x32xbf16>
    %cst_176 = arith.constant dense<0.000000e+00> : vector<16x32xf32>
    %448 = tpu.matmul %447, %445, %cst_176 {dimension_numbers = #tpu.dot_dimension_numbers<[1], [0], [0], [1], [0, 0, 1, 1], [], []>} : vector<16x32xbf16>, vector<32x32xbf16>, vector<16x32xf32> -> vector<16x32xf32>
    %449 = vector.broadcast %446 : vector<1x32xf32> to vector<16x32xf32>
    %450 = arith.addf %448, %449 : vector<16x32xf32>
    %451 = arith.mulf %450, %450 : vector<16x32xf32>
    %cst_177 = arith.constant dense<0.000000e+00> : vector<16xf32>
    %452 = vector.multi_reduction <add>, %451, %cst_177 [1] : vector<16x32xf32> to vector<16xf32>
    %453 = vector.shape_cast %452 : vector<16xf32> to vector<16x1xf32>
    %cst_178 = arith.constant 1.000000e-24 : f32
    %454 = vector.broadcast %cst_178 : f32 to vector<16x1xf32>
    %455 = arith.maximumf %453, %454 : vector<16x1xf32>
    %456 = math.rsqrt %455 : vector<16x1xf32>
    %457 = vector.broadcast %456 : vector<16x1xf32> to vector<16x32xf32>
    %458 = arith.mulf %450, %457 : vector<16x32xf32>
    %459 = arith.truncf %458 : vector<16x32xf32> to vector<16x32xbf16>
    %460 = vector.extract_strided_slice %459 {offsets = [0, 0], sizes = [8, 32], strides = [1, 1]} : vector<16x32xbf16> to vector<8x32xbf16>
    %461 = vector.extract_strided_slice %459 {offsets = [8, 0], sizes = [8, 32], strides = [1, 1]} : vector<16x32xbf16> to vector<8x32xbf16>
    %cst_179 = arith.constant dense<0.000000e+00> : vector<8x8xf32>
    %462 = tpu.matmul %460, %461, %cst_179 {dimension_numbers = #tpu.dot_dimension_numbers<[1], [1], [0], [0], [0, 0, 1, 0], [], []>} : vector<8x32xbf16>, vector<8x32xbf16>, vector<8x8xf32> -> vector<8x8xf32>
    %cst_180 = arith.constant 4.999750e-01 : f32
    %463 = vector.broadcast %cst_180 : f32 to vector<8x8xf32>
    %464 = arith.mulf %462, %463 : vector<8x8xf32>
    %cst_181 = arith.constant 5.000000e-01 : f32
    %465 = vector.broadcast %cst_181 : f32 to vector<8x8xf32>
    %466 = arith.addf %464, %465 : vector<8x8xf32>
    %c0_182 = arith.constant 0 : index
    %c0_183 = arith.constant 0 : index
    %c0_184 = arith.constant 0 : index
    %467 = vector.load %arg30[%c0_182, %c0_183, %c0_184] : memref<1x8x8xf32, #tpu.memory_space<vmem>>, vector<1x8x8xf32>
    %468 = vector.shape_cast %467 : vector<1x8x8xf32> to vector<8x8xf32>
    %469 = vector.shape_cast %466 : vector<8x8xf32> to vector<1x8x8xf32>
    tpu.vector_store %arg30[%c0_182, %c0_183, %c0_184], %469 {strides = array<i32>} : memref<1x8x8xf32, #tpu.memory_space<vmem>>, vector<1x8x8xf32>,
    return
  }
  func.func @transform_0(%arg0: i32) -> (i32, i32, i32) {
    %c0_i32 = arith.constant 0 : i32
    %c0_i32_0 = arith.constant 0 : i32
    %c0_i32_1 = arith.constant 0 : i32
    return %arg0, %c0_i32, %c0_i32_0 : i32, i32, i32
  }
  func.func @transform_1(%arg0: i32) -> (i32, i32, i32) {
    %c0_i32 = arith.constant 0 : i32
    %c0_i32_0 = arith.constant 0 : i32
    %c0_i32_1 = arith.constant 0 : i32
    return %arg0, %c0_i32, %c0_i32_0 : i32, i32, i32
  }
  func.func @transform_2(%arg0: i32) -> (i32, i32, i32, i32) {
    %c0_i32 = arith.constant 0 : i32
    %c0_i32_0 = arith.constant 0 : i32
    %c0_i32_1 = arith.constant 0 : i32
    %c0_i32_2 = arith.constant 0 : i32
    return %arg0, %c0_i32, %c0_i32_0, %c0_i32_1 : i32, i32, i32, i32
  }
  func.func @transform_3(%arg0: i32) -> (i32, i32) {
    %c0_i32 = arith.constant 0 : i32
    %c0_i32_0 = arith.constant 0 : i32
    %c0_i32_1 = arith.constant 0 : i32
    return %c0_i32, %c0_i32_0 : i32, i32
  }
  func.func @transform_4(%arg0: i32) -> (i32, i32) {
    %c0_i32 = arith.constant 0 : i32
    %c0_i32_0 = arith.constant 0 : i32
    %c0_i32_1 = arith.constant 0 : i32
    return %c0_i32, %c0_i32_0 : i32, i32
  }
  func.func @transform_5(%arg0: i32) -> (i32, i32) {
    %c0_i32 = arith.constant 0 : i32
    %c0_i32_0 = arith.constant 0 : i32
    %c0_i32_1 = arith.constant 0 : i32
    return %c0_i32, %c0_i32_0 : i32, i32
  }
  func.func @transform_6(%arg0: i32) -> (i32, i32) {
    %c0_i32 = arith.constant 0 : i32
    %c0_i32_0 = arith.constant 0 : i32
    %c0_i32_1 = arith.constant 0 : i32
    return %c0_i32, %c0_i32_0 : i32, i32
  }
  func.func @transform_7(%arg0: i32) -> (i32, i32) {
    %c0_i32 = arith.constant 0 : i32
    %c0_i32_0 = arith.constant 0 : i32
    %c0_i32_1 = arith.constant 0 : i32
    return %c0_i32, %c0_i32_0 : i32, i32
  }
  func.func @transform_8(%arg0: i32) -> (i32, i32) {
    %c0_i32 = arith.constant 0 : i32
    %c0_i32_0 = arith.constant 0 : i32
    %c0_i32_1 = arith.constant 0 : i32
    return %c0_i32, %c0_i32_0 : i32, i32
  }
  func.func @transform_9(%arg0: i32) -> (i32, i32) {
    %c0_i32 = arith.constant 0 : i32
    %c0_i32_0 = arith.constant 0 : i32
    %c0_i32_1 = arith.constant 0 : i32
    return %c0_i32, %c0_i32_0 : i32, i32
  }
  func.func @transform_10(%arg0: i32) -> (i32, i32) {
    %c0_i32 = arith.constant 0 : i32
    %c0_i32_0 = arith.constant 0 : i32
    %c0_i32_1 = arith.constant 0 : i32
    return %c0_i32, %c0_i32_0 : i32, i32
  }
  func.func @transform_11(%arg0: i32) -> (i32, i32) {
    %c0_i32 = arith.constant 0 : i32
    %c0_i32_0 = arith.constant 0 : i32
    %c0_i32_1 = arith.constant 0 : i32
    return %c0_i32, %c0_i32_0 : i32, i32
  }
  func.func @transform_12(%arg0: i32) -> (i32, i32) {
    %c0_i32 = arith.constant 0 : i32
    %c0_i32_0 = arith.constant 0 : i32
    %c0_i32_1 = arith.constant 0 : i32
    return %c0_i32, %c0_i32_0 : i32, i32
  }
  func.func @transform_13(%arg0: i32) -> (i32, i32) {
    %c0_i32 = arith.constant 0 : i32
    %c0_i32_0 = arith.constant 0 : i32
    %c0_i32_1 = arith.constant 0 : i32
    return %c0_i32, %c0_i32_0 : i32, i32
  }
  func.func @transform_14(%arg0: i32) -> (i32, i32) {
    %c0_i32 = arith.constant 0 : i32
    %c0_i32_0 = arith.constant 0 : i32
    %c0_i32_1 = arith.constant 0 : i32
    return %c0_i32, %c0_i32_0 : i32, i32
  }
  func.func @transform_15(%arg0: i32) -> (i32, i32) {
    %c0_i32 = arith.constant 0 : i32
    %c0_i32_0 = arith.constant 0 : i32
    %c0_i32_1 = arith.constant 0 : i32
    return %c0_i32, %c0_i32_0 : i32, i32
  }
  func.func @transform_16(%arg0: i32) -> (i32, i32) {
    %c0_i32 = arith.constant 0 : i32
    %c0_i32_0 = arith.constant 0 : i32
    %c0_i32_1 = arith.constant 0 : i32
    return %c0_i32, %c0_i32_0 : i32, i32
  }
  func.func @transform_17(%arg0: i32) -> (i32, i32) {
    %c0_i32 = arith.constant 0 : i32
    %c0_i32_0 = arith.constant 0 : i32
    %c0_i32_1 = arith.constant 0 : i32
    return %c0_i32, %c0_i32_0 : i32, i32
  }
  func.func @transform_18(%arg0: i32) -> (i32, i32) {
    %c0_i32 = arith.constant 0 : i32
    %c0_i32_0 = arith.constant 0 : i32
    %c0_i32_1 = arith.constant 0 : i32
    return %c0_i32, %c0_i32_0 : i32, i32
  }
  func.func @transform_19(%arg0: i32) -> (i32, i32) {
    %c0_i32 = arith.constant 0 : i32
    %c0_i32_0 = arith.constant 0 : i32
    %c0_i32_1 = arith.constant 0 : i32
    return %c0_i32, %c0_i32_0 : i32, i32
  }
  func.func @transform_20(%arg0: i32) -> (i32, i32) {
    %c0_i32 = arith.constant 0 : i32
    %c0_i32_0 = arith.constant 0 : i32
    %c0_i32_1 = arith.constant 0 : i32
    return %c0_i32, %c0_i32_0 : i32, i32
  }
  func.func @transform_21(%arg0: i32) -> (i32, i32) {
    %c0_i32 = arith.constant 0 : i32
    %c0_i32_0 = arith.constant 0 : i32
    %c0_i32_1 = arith.constant 0 : i32
    return %c0_i32, %c0_i32_0 : i32, i32
  }
  func.func @transform_22(%arg0: i32) -> (i32, i32) {
    %c0_i32 = arith.constant 0 : i32
    %c0_i32_0 = arith.constant 0 : i32
    %c0_i32_1 = arith.constant 0 : i32
    return %c0_i32, %c0_i32_0 : i32, i32
  }
  func.func @transform_23(%arg0: i32) -> (i32, i32) {
    %c0_i32 = arith.constant 0 : i32
    %c0_i32_0 = arith.constant 0 : i32
    %c0_i32_1 = arith.constant 0 : i32
    return %c0_i32, %c0_i32_0 : i32, i32
  }
  func.func @transform_24(%arg0: i32) -> (i32, i32) {
    %c0_i32 = arith.constant 0 : i32
    %c0_i32_0 = arith.constant 0 : i32
    %c0_i32_1 = arith.constant 0 : i32
    return %c0_i32, %c0_i32_0 : i32, i32
  }
  func.func @transform_25(%arg0: i32) -> (i32, i32) {
    %c0_i32 = arith.constant 0 : i32
    %c0_i32_0 = arith.constant 0 : i32
    %c0_i32_1 = arith.constant 0 : i32
    return %c0_i32, %c0_i32_0 : i32, i32
  }
  func.func @transform_26(%arg0: i32) -> (i32, i32) {
    %c0_i32 = arith.constant 0 : i32
    %c0_i32_0 = arith.constant 0 : i32
    %c0_i32_1 = arith.constant 0 : i32
    return %c0_i32, %c0_i32_0 : i32, i32
  }
  func.func @transform_27(%arg0: i32) -> (i32, i32) {
    %c0_i32 = arith.constant 0 : i32
    %c0_i32_0 = arith.constant 0 : i32
    %c0_i32_1 = arith.constant 0 : i32
    return %c0_i32, %c0_i32_0 : i32, i32
  }
  func.func @transform_28(%arg0: i32) -> (i32, i32) {
    %c0_i32 = arith.constant 0 : i32
    %c0_i32_0 = arith.constant 0 : i32
    %c0_i32_1 = arith.constant 0 : i32
    return %c0_i32, %c0_i32_0 : i32, i32
  }
  func.func @transform_29(%arg0: i32) -> (i32, i32, i32) {
    %c0_i32 = arith.constant 0 : i32
    %c0_i32_0 = arith.constant 0 : i32
    %c0_i32_1 = arith.constant 0 : i32
    return %arg0, %c0_i32, %c0_i32_0 : i32, i32, i32
  }
}

</mosaic_0001>

<llo_original>
// kernel: pose_gat_forward.1
$region0: #{pose_gat_forward.1}
  #allocation0 [shape = 'u32[]', space=smem, size = 0x4, offset = 0x4, fixed_abs, tag = 'smem constant byte address 0x4 - core index']
  #allocation1 [shape = 'u32[72,128]{1,0:T(1,128)}', space=vmem, size = 0x9000, scoped, tag = 'internal scratch']
  #allocation2 [shape = 'bf16[16,32]{1,0:T(8,128)(2,1)}', space=vmem, size = 0x1000, scoped, tag = 'scratch operand']
  %s0 = inlined_call_operand.smem [shape: u32[30], index: -1, kind: input, shape index: {}]
  %s1 = sld [smem:[%s0]]
  %s2 = scalar_lea.smem %s0, 1
  %s3 = sld [smem:[%s2]]
  %s4 = scalar_lea.smem %s0, 2
  %s5 = sld [smem:[%s4]]
  %s6 = scalar_lea.smem %s0, 3
  %s7 = sld [smem:[%s6]]
  %s8 = scalar_lea.smem %s0, 4
  %s9 = sld [smem:[%s8]]
  %s10 = scalar_lea.smem %s0, 5
  %s11 = sld [smem:[%s10]]
  %s12 = scalar_lea.smem %s0, 6
  %s13 = sld [smem:[%s12]]
  %s14 = scalar_lea.smem %s0, 7
  %s15 = sld [smem:[%s14]]
  %s16 = scalar_lea.smem %s0, 8
  %s17 = sld [smem:[%s16]]
  %s18 = scalar_lea.smem %s0, 9
  %s19 = sld [smem:[%s18]]
  %s20 = scalar_lea.smem %s0, 10
  %s21 = sld [smem:[%s20]]
  %s22 = scalar_lea.smem %s0, 11
  %s23 = sld [smem:[%s22]]
  %s24 = scalar_lea.smem %s0, 12
  %s25 = sld [smem:[%s24]]
  %s26 = scalar_lea.smem %s0, 13
  %s27 = sld [smem:[%s26]]
  %s28 = scalar_lea.smem %s0, 14
  %s29 = sld [smem:[%s28]]
  %s30 = scalar_lea.smem %s0, 15
  %s31 = sld [smem:[%s30]]
  %s32 = scalar_lea.smem %s0, 16
  %s33 = sld [smem:[%s32]]
  %s34 = scalar_lea.smem %s0, 17
  %s35 = sld [smem:[%s34]]
  %s36 = scalar_lea.smem %s0, 18
  %s37 = sld [smem:[%s36]]
  %s38 = scalar_lea.smem %s0, 19
  %s39 = sld [smem:[%s38]]
  %s40 = scalar_lea.smem %s0, 20
  %s41 = sld [smem:[%s40]]
  %s42 = scalar_lea.smem %s0, 21
  %s43 = sld [smem:[%s42]]
  %s44 = scalar_lea.smem %s0, 22
  %s45 = sld [smem:[%s44]]
  %s46 = scalar_lea.smem %s0, 23
  %s47 = sld [smem:[%s46]]
  %s48 = scalar_lea.smem %s0, 24
  %s49 = sld [smem:[%s48]]
  %s50 = scalar_lea.smem %s0, 25
  %s51 = sld [smem:[%s50]]
  %s52 = scalar_lea.smem %s0, 26
  %s53 = sld [smem:[%s52]]
  %s54 = scalar_lea.smem %s0, 27
  %s55 = sld [smem:[%s54]]
  %s56 = scalar_lea.smem %s0, 28
  %s57 = sld [smem:[%s56]]
  %s58 = scalar_lea.smem %s0, 29
  %s59 = sld [smem:[%s58]]
  %s60 = sld [smem:[#allocation0]]
  $region205: #{pose_gat_forward.1} parent=0
    _
  %s62 = ssub.s32 1, %s60
  %s63 = scalar_select 0, %s62, %s60
  $region1: #{pose_gat_forward.1} parent=0
    #allocation3 [shape = 'u8[4096]{0}', space=vmem, size = 0x1000, scoped, tag = 'input window, operand 5, single buffered']
    #allocation4 [shape = 's32[2]{0}', space=sflag, size = 0x8, scoped, tag = 'scoped memory for pose_gat_forward.1']
    #allocation5 [shape = 's32[2]{0}', space=sflag, size = 0x8, scoped, tag = 'scoped memory for pose_gat_forward.1']
    #allocation6 [shape = 'u8[512]{0}', space=vmem, size = 0x400, scoped, tag = 'input window, operand 6, single buffered']
    #allocation7 [shape = 's32[1]{0}', space=sflag, size = 0x4, scoped, tag = 'scoped memory for pose_gat_forward.1']
    #allocation8 [shape = 'u8[512]{0}', space=vmem, size = 0x400, scoped, tag = 'input window, operand 8, single buffered']
    #allocation9 [shape = 'u8[512]{0}', space=vmem, size = 0x400, scoped, tag = 'input window, operand 10, single buffered']
    #allocation10 [shape = 's32[1]{0}', space=sflag, size = 0x4, scoped, tag = 'scoped memory for pose_gat_forward.1']
    #allocation11 [shape = 'u8[512]{0}', space=vmem, size = 0x400, scoped, tag = 'input window, operand 12, single buffered']
    #allocation12 [shape = 'u8[512]{0}', space=vmem, size = 0x400, scoped, tag = 'input window, operand 15, single buffered']
    #allocation13 [shape = 's32[1]{0}', space=sflag, size = 0x4, scoped, tag = 'scoped memory for pose_gat_forward.1']
    #allocation14 [shape = 'u8[512]{0}', space=vmem, size = 0x400, scoped, tag = 'input window, operand 17, single buffered']
    #allocation15 [shape = 'u8[8192]{0}', space=vmem, size = 0x2000, scoped, tag = 'input window, operand 18, single buffered']
    #allocation16 [shape = 's32[1]{0}', space=sflag, size = 0x4, scoped, tag = 'scoped memory for pose_gat_forward.1']
    #allocation17 [shape = 'u8[8192]{0}', space=vmem, size = 0x2000, scoped, tag = 'input window, operand 20, single buffered']
    #allocation18 [shape = 'u8[8192]{0}', space=vmem, size = 0x2000, scoped, tag = 'input window, operand 22, single buffered']
    #allocation19 [shape = 's32[1]{0}', space=sflag, size = 0x4, scoped, tag = 'scoped memory for pose_gat_forward.1']
    #allocation20 [shape = 'u8[8192]{0}', space=vmem, size = 0x2000, scoped, tag = 'input window, operand 23, single buffered']
    #allocation21 [shape = 'u8[512]{0}', space=vmem, size = 0x400, scoped, tag = 'input window, operand 24, single buffered']
    #allocation22 [shape = 's32[1]{0}', space=sflag, size = 0x4, scoped, tag = 'scoped memory for pose_gat_forward.1']
    #allocation23 [shape = 'u8[512]{0}', space=vmem, size = 0x400, scoped, tag = 'input window, operand 26, single buffered']
    #allocation24 [shape = 'u8[8192]{0}', space=vmem, size = 0x2000, scoped, tag = 'input window, operand 27, single buffered']
    #allocation25 [shape = 's32[1]{0}', space=sflag, size = 0x4, scoped, tag = 'scoped memory for pose_gat_forward.1']
    #allocation26 [shape = 'u8[8192]{0}', space=vmem, size = 0x2000, scoped, tag = 'output window, operand 0']
    %64 = vsyncpa [#allocation4], 0
    %65 = vsyncpa [#allocation7], 0
    %66 = vsyncpa [#allocation10], 0
    %67 = vsyncpa [#allocation13], 0
    %68 = vsyncpa [#allocation16], 0
    %69 = vsyncpa [#allocation19], 0
    %70 = vsyncpa [#allocation22], 0
    %71 = vsyncpa [#allocation25], 0
    %72 = vsyncpa [#allocation5], 0
    %s73 = scalar_lea.sflag [#allocation5], 1
    %74 = vsyncpa %s73, 0
    loop: start=0, step=1, limit=4
    $region2: #{pose_gat_forward.1} parent=1 // loop_pre_header
      _
    $region3: #{pose_gat_forward.1} parent=1 // loop_header
      %s76 = sphi 0, %s80
      %p77 = scmp.ge.s32.totalorder %s76, 4
      %s86 = sphi 0, %s88
      %s89 = sphi 0, %s86
      %s90 = sphi 0, %s89
      %s106 = sphi 0, %s90
      %s112 = sphi 0, %s114
      %s115 = sphi 0, %s112
      %s116 = sphi 0, %s115
      %s132 = sphi 0, %s116
      %s138 = sphi 0, %s140
      %s141 = sphi 0, %s138
      %s142 = sphi 0, %s141
      %s158 = sphi 0, %s142
      %s162 = sphi 0, %s162
      %s164 = sphi 0, %s162
      %s165 = sphi 0, %s164
      %s179 = sphi 0, %s165
      %s183 = sphi 0, %s183
      %s185 = sphi 0, %s183
      %s186 = sphi 0, %s185
      %s200 = sphi 0, %s186
      %s204 = sphi 0, %s204
      %s206 = sphi 0, %s204
      %s207 = sphi 0, %s206
      %s221 = sphi 0, %s207
      %s225 = sphi 0, %s225
      %s227 = sphi 0, %s225
      %s228 = sphi 0, %s227
      %s242 = sphi 0, %s228
      %s246 = sphi 0, %s246
      %s248 = sphi 0, %s246
      %s249 = sphi 0, %s248
      %s263 = sphi 0, %s249
      %s267 = sphi 0, %s267
      %s269 = sphi 0, %s267
      %s270 = sphi 0, %s269
      %s284 = sphi 0, %s270
      %s288 = sphi 0, %s288
      %s290 = sphi 0, %s288
      %s291 = sphi 0, %s290
      %s305 = sphi 0, %s291
      %s309 = sphi 0, %s309
      %s311 = sphi 0, %s309
      %s312 = sphi 0, %s311
      %s326 = sphi 0, %s312
      %s330 = sphi 0, %s330
      %s332 = sphi 0, %s330
      %s333 = sphi 0, %s332
      %s347 = sphi 0, %s333
      %s351 = sphi 0, %s351
      %s353 = sphi 0, %s351
      %s354 = sphi 0, %s353
      %s368 = sphi 0, %s354
      %s372 = sphi 0, %s372
      %s374 = sphi 0, %s372
      %s375 = sphi 0, %s374
      %s389 = sphi 0, %s375
      %s393 = sphi 0, %s393
      %s395 = sphi 0, %s393
      %s396 = sphi 0, %s395
      %s410 = sphi 0, %s396
      %s414 = sphi 0, %s414
      %s416 = sphi 0, %s414
      %s417 = sphi 0, %s416
      %s431 = sphi 0, %s417
      %s435 = sphi 0, %s435
      %s437 = sphi 0, %s435
      %s438 = sphi 0, %s437
      %s452 = sphi 0, %s438
      %s456 = sphi 0, %s456
      %s458 = sphi 0, %s456
      %s459 = sphi 0, %s458
      %s473 = sphi 0, %s459
      %s477 = sphi 0, %s477
      %s479 = sphi 0, %s477
      %s480 = sphi 0, %s479
      %s494 = sphi 0, %s480
      %s498 = sphi 0, %s498
      %s500 = sphi 0, %s498
      %s501 = sphi 0, %s500
      %s515 = sphi 0, %s501
      %s519 = sphi 0, %s519
      %s521 = sphi 0, %s519
      %s522 = sphi 0, %s521
      %s536 = sphi 0, %s522
      %s540 = sphi 0, %s540
      %s542 = sphi 0, %s540
      %s543 = sphi 0, %s542
      %s557 = sphi 0, %s543
      %s561 = sphi 0, %s561
      %s563 = sphi 0, %s561
      %s564 = sphi 0, %s563
      %s578 = sphi 0, %s564
      %s582 = sphi 0, %s582
      %s584 = sphi 0, %s582
      %s585 = sphi 0, %s584
      %s599 = sphi 0, %s585
      %s603 = sphi 0, %s603
      %s605 = sphi 0, %s603
      %s606 = sphi 0, %s605
      %s620 = sphi 0, %s606
      %s624 = sphi 0, %s624
      %s626 = sphi 0, %s624
      %s627 = sphi 0, %s626
      %s641 = sphi 0, %s627
      %s645 = sphi 0, %s645
      %s647 = sphi 0, %s645
      %s648 = sphi 0, %s647
      %s662 = sphi 0, %s648
      %s666 = sphi 0, %s666
      %s668 = sphi 0, %s666
      %s669 = sphi 0, %s668
      %s683 = sphi 0, %s669
      %s687 = sphi 0, %s687
      %s689 = sphi 0, %s687
      %s690 = sphi 0, %s689
      %s704 = sphi 0, %s690
      %s710 = sphi 0, %s712
      %s713 = sphi 0, %s710
      %s714 = sphi 0, %s713
      %s730 = sphi 0, %s714
    $region4: #{pose_gat_forward.1} parent=1 // loop_header_branch
      %79 = sbr.rel (%p77) target = $region8
    $region5: #{pose_gat_forward.1} parent=1 // loop_body
      %s81 = ssub.s32 %s76, 1
      %s82 = ssub.s32 %s76, 2
      %s83 = sadd.s32 %s76, 1
      %s84 = ssub.s32 %s76, %s83
      %p85 = scmp.eq.s32.totalorder %s84, 0
      %s87 = sadd.s32 %s86, 1
      %s88 = scalar_select %p85, %s86, %s87
      %p91 = pneg %p85
      %p92 = scmp.eq.s32.totalorder %s76, 1
      %p93 = por %p91, %p92
      %p94 = scmp.ne.s32.totalorder %s86, %s89
      %p95 = scmp.eq.s32.totalorder %s76, 0
      %p96 = por %p94, %p95
      %p97 = scmp.ne.s32.totalorder %s86, %s89
      %p98 = scmp.eq.s32.totalorder %s81, 1
      %p99 = por %p97, %p98
      %p100 = scmp.ne.s32.totalorder %s89, %s90
      %p101 = scmp.eq.s32.totalorder %s81, 0
      %p102 = por %p100, %p101
      %p103 = scmp.ne.s32.totalorder %s89, %s90
      %p104 = scmp.eq.s32.totalorder %s82, 1
      %p105 = por %p103, %p104
      %p107 = scmp.ne.s32.totalorder %s90, %s106
      %p108 = scmp.eq.s32.totalorder %s82, 0
      %p109 = por %p107, %p108
      %s110 = ssub.s32 %s76, %s83
      %p111 = scmp.eq.s32.totalorder %s110, 0
      %s113 = sadd.s32 %s112, 1
      %s114 = scalar_select %p111, %s112, %s113
      %p117 = pneg %p111
      %p118 = scmp.eq.s32.totalorder %s76, 1
      %p119 = por %p117, %p118
      %p120 = scmp.ne.s32.totalorder %s112, %s115
      %p121 = scmp.eq.s32.totalorder %s76, 0
      %p122 = por %p120, %p121
      %p123 = scmp.ne.s32.totalorder %s112, %s115
      %p124 = scmp.eq.s32.totalorder %s81, 1
      %p125 = por %p123, %p124
      %p126 = scmp.ne.s32.totalorder %s115, %s116
      %p127 = scmp.eq.s32.totalorder %s81, 0
      %p128 = por %p126, %p127
      %p129 = scmp.ne.s32.totalorder %s115, %s116
      %p130 = scmp.eq.s32.totalorder %s82, 1
      %p131 = por %p129, %p130
      %p133 = scmp.ne.s32.totalorder %s116, %s132
      %p134 = scmp.eq.s32.totalorder %s82, 0
      %p135 = por %p133, %p134
      %s136 = ssub.s32 %s76, %s83
      %p137 = scmp.eq.s32.totalorder %s136, 0
      %s139 = sadd.s32 %s138, 1
      %s140 = scalar_select %p137, %s138, %s139
      %p143 = pneg %p137
      %p144 = scmp.eq.s32.totalorder %s76, 1
      %p145 = por %p143, %p144
      %p146 = scmp.ne.s32.totalorder %s138, %s141
      %p147 = scmp.eq.s32.totalorder %s76, 0
      %p148 = por %p146, %p147
      %p149 = scmp.ne.s32.totalorder %s138, %s141
      %p150 = scmp.eq.s32.totalorder %s81, 1
      %p151 = por %p149, %p150
      %p152 = scmp.ne.s32.totalorder %s141, %s142
      %p153 = scmp.eq.s32.totalorder %s81, 0
      %p154 = por %p152, %p153
      %p155 = scmp.ne.s32.totalorder %s141, %s142
      %p156 = scmp.eq.s32.totalorder %s82, 1
      %p157 = por %p155, %p156
      %p159 = scmp.ne.s32.totalorder %s142, %s158
      %p160 = scmp.eq.s32.totalorder %s82, 0
      %p161 = por %p159, %p160
      %s163 = sadd.s32 %s162, 1
      %p166 = scmp.eq.s32.totalorder %s76, 1
      %p167 = scmp.ne.s32.totalorder %s162, %s164
      %p168 = scmp.eq.s32.totalorder %s76, 0
      %p169 = por %p167, %p168
      %p170 = scmp.ne.s32.totalorder %s162, %s164
      %p171 = scmp.eq.s32.totalorder %s81, 1
      %p172 = por %p170, %p171
      %p173 = scmp.ne.s32.totalorder %s164, %s165
      %p174 = scmp.eq.s32.totalorder %s81, 0
      %p175 = por %p173, %p174
      %p176 = scmp.ne.s32.totalorder %s164, %s165
      %p177 = scmp.eq.s32.totalorder %s82, 1
      %p178 = por %p176, %p177
      %p180 = scmp.ne.s32.totalorder %s165, %s179
      %p181 = scmp.eq.s32.totalorder %s82, 0
      %p182 = por %p180, %p181
      %s184 = sadd.s32 %s183, 1
      %p187 = scmp.eq.s32.totalorder %s76, 1
      %p188 = scmp.ne.s32.totalorder %s183, %s185
      %p189 = scmp.eq.s32.totalorder %s76, 0
      %p190 = por %p188, %p189
      %p191 = scmp.ne.s32.totalorder %s183, %s185
      %p192 = scmp.eq.s32.totalorder %s81, 1
      %p193 = por %p191, %p192
      %p194 = scmp.ne.s32.totalorder %s185, %s186
      %p195 = scmp.eq.s32.totalorder %s81, 0
      %p196 = por %p194, %p195
      %p197 = scmp.ne.s32.totalorder %s185, %s186
      %p198 = scmp.eq.s32.totalorder %s82, 1
      %p199 = por %p197, %p198
      %p201 = scmp.ne.s32.totalorder %s186, %s200
      %p202 = scmp.eq.s32.totalorder %s82, 0
      %p203 = por %p201, %p202
      %s205 = sadd.s32 %s204, 1
      %p208 = scmp.eq.s32.totalorder %s76, 1
      %p209 = scmp.ne.s32.totalorder %s204, %s206
      %p210 = scmp.eq.s32.totalorder %s76, 0
      %p211 = por %p209, %p210
      %p212 = scmp.ne.s32.totalorder %s204, %s206
      %p213 = scmp.eq.s32.totalorder %s81, 1
      %p214 = por %p212, %p213
      %p215 = scmp.ne.s32.totalorder %s206, %s207
      %p216 = scmp.eq.s32.totalorder %s81, 0
      %p217 = por %p215, %p216
      %p218 = scmp.ne.s32.totalorder %s206, %s207
      %p219 = scmp.eq.s32.totalorder %s82, 1
      %p220 = por %p218, %p219
      %p222 = scmp.ne.s32.totalorder %s207, %s221
      %p223 = scmp.eq.s32.totalorder %s82, 0
      %p224 = por %p222, %p223
      %s226 = sadd.s32 %s225, 1
      %p229 = scmp.eq.s32.totalorder %s76, 1
      %p230 = scmp.ne.s32.totalorder %s225, %s227
      %p231 = scmp.eq.s32.totalorder %s76, 0
      %p232 = por %p230, %p231
      %p233 = scmp.ne.s32.totalorder %s225, %s227
      %p234 = scmp.eq.s32.totalorder %s81, 1
      %p235 = por %p233, %p234
      %p236 = scmp.ne.s32.totalorder %s227, %s228
      %p237 = scmp.eq.s32.totalorder %s81, 0
      %p238 = por %p236, %p237
      %p239 = scmp.ne.s32.totalorder %s227, %s228
      %p240 = scmp.eq.s32.totalorder %s82, 1
      %p241 = por %p239, %p240
      %p243 = scmp.ne.s32.totalorder %s228, %s242
      %p244 = scmp.eq.s32.totalorder %s82, 0
      %p245 = por %p243, %p244
      %s247 = sadd.s32 %s246, 1
      %p250 = scmp.eq.s32.totalorder %s76, 1
      %p251 = scmp.ne.s32.totalorder %s246, %s248
      %p252 = scmp.eq.s32.totalorder %s76, 0
      %p253 = por %p251, %p252
      %p254 = scmp.ne.s32.totalorder %s246, %s248
      %p255 = scmp.eq.s32.totalorder %s81, 1
      %p256 = por %p254, %p255
      %p257 = scmp.ne.s32.totalorder %s248, %s249
      %p258 = scmp.eq.s32.totalorder %s81, 0
      %p259 = por %p257, %p258
      %p260 = scmp.ne.s32.totalorder %s248, %s249
      %p261 = scmp.eq.s32.totalorder %s82, 1
      %p262 = por %p260, %p261
      %p264 = scmp.ne.s32.totalorder %s249, %s263
      %p265 = scmp.eq.s32.totalorder %s82, 0
      %p266 = por %p264, %p265
      %s268 = sadd.s32 %s267, 1
      %p271 = scmp.eq.s32.totalorder %s76, 1
      %p272 = scmp.ne.s32.totalorder %s267, %s269
      %p273 = scmp.eq.s32.totalorder %s76, 0
      %p274 = por %p272, %p273
      %p275 = scmp.ne.s32.totalorder %s267, %s269
      %p276 = scmp.eq.s32.totalorder %s81, 1
      %p277 = por %p275, %p276
      %p278 = scmp.ne.s32.totalorder %s269, %s270
      %p279 = scmp.eq.s32.totalorder %s81, 0
      %p280 = por %p278, %p279
      %p281 = scmp.ne.s32.totalorder %s269, %s270
      %p282 = scmp.eq.s32.totalorder %s82, 1
      %p283 = por %p281, %p282
      %p285 = scmp.ne.s32.totalorder %s270, %s284
      %p286 = scmp.eq.s32.totalorder %s82, 0
      %p287 = por %p285, %p286
      %s289 = sadd.s32 %s288, 1
      %p292 = scmp.eq.s32.totalorder %s76, 1
      %p293 = scmp.ne.s32.totalorder %s288, %s290
      %p294 = scmp.eq.s32.totalorder %s76, 0
      %p295 = por %p293, %p294
      %p296 = scmp.ne.s32.totalorder %s288, %s290
      %p297 = scmp.eq.s32.totalorder %s81, 1
      %p298 = por %p296, %p297
      %p299 = scmp.ne.s32.totalorder %s290, %s291
      %p300 = scmp.eq.s32.totalorder %s81, 0
      %p301 = por %p299, %p300
      %p302 = scmp.ne.s32.totalorder %s290, %s291
      %p303 = scmp.eq.s32.totalorder %s82, 1
      %p304 = por %p302, %p303
      %p306 = scmp.ne.s32.totalorder %s291, %s305
      %p307 = scmp.eq.s32.totalorder %s82, 0
      %p308 = por %p306, %p307
      %s310 = sadd.s32 %s309, 1
      %p313 = scmp.eq.s32.totalorder %s76, 1
      %p314 = scmp.ne.s32.totalorder %s309, %s311
      %p315 = scmp.eq.s32.totalorder %s76, 0
      %p316 = por %p314, %p315
      %p317 = scmp.ne.s32.totalorder %s309, %s311
      %p318 = scmp.eq.s32.totalorder %s81, 1
      %p319 = por %p317, %p318
      %p320 = scmp.ne.s32.totalorder %s311, %s312
      %p321 = scmp.eq.s32.totalorder %s81, 0
      %p322 = por %p320, %p321
      %p323 = scmp.ne.s32.totalorder %s311, %s312
      %p324 = scmp.eq.s32.totalorder %s82, 1
      %p325 = por %p323, %p324
      %p327 = scmp.ne.s32.totalorder %s312, %s326
      %p328 = scmp.eq.s32.totalorder %s82, 0
      %p329 = por %p327, %p328
      %s331 = sadd.s32 %s330, 1
      %p334 = scmp.eq.s32.totalorder %s76, 1
      %p335 = scmp.ne.s32.totalorder %s330, %s332
      %p336 = scmp.eq.s32.totalorder %s76, 0
      %p337 = por %p335, %p336
      %p338 = scmp.ne.s32.totalorder %s330, %s332
      %p339 = scmp.eq.s32.totalorder %s81, 1
      %p340 = por %p338, %p339
      %p341 = scmp.ne.s32.totalorder %s332, %s333
      %p342 = scmp.eq.s32.totalorder %s81, 0
      %p343 = por %p341, %p342
      %p344 = scmp.ne.s32.totalorder %s332, %s333
      %p345 = scmp.eq.s32.totalorder %s82, 1
      %p346 = por %p344, %p345
      %p348 = scmp.ne.s32.totalorder %s333, %s347
      %p349 = scmp.eq.s32.totalorder %s82, 0
      %p350 = por %p348, %p349
      %s352 = sadd.s32 %s351, 1
      %p355 = scmp.eq.s32.totalorder %s76, 1
      %p356 = scmp.ne.s32.totalorder %s351, %s353
      %p357 = scmp.eq.s32.totalorder %s76, 0
      %p358 = por %p356, %p357
      %p359 = scmp.ne.s32.totalorder %s351, %s353
      %p360 = scmp.eq.s32.totalorder %s81, 1
      %p361 = por %p359, %p360
      %p362 = scmp.ne.s32.totalorder %s353, %s354
      %p363 = scmp.eq.s32.totalorder %s81, 0
      %p364 = por %p362, %p363
      %p365 = scmp.ne.s32.totalorder %s353, %s354
      %p366 = scmp.eq.s32.totalorder %s82, 1
      %p367 = por %p365, %p366
      %p369 = scmp.ne.s32.totalorder %s354, %s368
      %p370 = scmp.eq.s32.totalorder %s82, 0
      %p371 = por %p369, %p370
      %s373 = sadd.s32 %s372, 1
      %p376 = scmp.eq.s32.totalorder %s76, 1
      %p377 = scmp.ne.s32.totalorder %s372, %s374
      %p378 = scmp.eq.s32.totalorder %s76, 0
      %p379 = por %p377, %p378
      %p380 = scmp.ne.s32.totalorder %s372, %s374
      %p381 = scmp.eq.s32.totalorder %s81, 1
      %p382 = por %p380, %p381
      %p383 = scmp.ne.s32.totalorder %s374, %s375
      %p384 = scmp.eq.s32.totalorder %s81, 0
      %p385 = por %p383, %p384
      %p386 = scmp.ne.s32.totalorder %s374, %s375
      %p387 = scmp.eq.s32.totalorder %s82, 1
      %p388 = por %p386, %p387
      %p390 = scmp.ne.s32.totalorder %s375, %s389
      %p391 = scmp.eq.s32.totalorder %s82, 0
      %p392 = por %p390, %p391
      %s394 = sadd.s32 %s393, 1
      %p397 = scmp.eq.s32.totalorder %s76, 1
      %p398 = scmp.ne.s32.totalorder %s393, %s395
      %p399 = scmp.eq.s32.totalorder %s76, 0
      %p400 = por %p398, %p399
      %p401 = scmp.ne.s32.totalorder %s393, %s395
      %p402 = scmp.eq.s32.totalorder %s81, 1
      %p403 = por %p401, %p402
      %p404 = scmp.ne.s32.totalorder %s395, %s396
      %p405 = scmp.eq.s32.totalorder %s81, 0
      %p406 = por %p404, %p405
      %p407 = scmp.ne.s32.totalorder %s395, %s396
      %p408 = scmp.eq.s32.totalorder %s82, 1
      %p409 = por %p407, %p408
      %p411 = scmp.ne.s32.totalorder %s396, %s410
      %p412 = scmp.eq.s32.totalorder %s82, 0
      %p413 = por %p411, %p412
      %s415 = sadd.s32 %s414, 1
      %p418 = scmp.eq.s32.totalorder %s76, 1
      %p419 = scmp.ne.s32.totalorder %s414, %s416
      %p420 = scmp.eq.s32.totalorder %s76, 0
      %p421 = por %p419, %p420
      %p422 = scmp.ne.s32.totalorder %s414, %s416
      %p423 = scmp.eq.s32.totalorder %s81, 1
      %p424 = por %p422, %p423
      %p425 = scmp.ne.s32.totalorder %s416, %s417
      %p426 = scmp.eq.s32.totalorder %s81, 0
      %p427 = por %p425, %p426
      %p428 = scmp.ne.s32.totalorder %s416, %s417
      %p429 = scmp.eq.s32.totalorder %s82, 1
      %p430 = por %p428, %p429
      %p432 = scmp.ne.s32.totalorder %s417, %s431
      %p433 = scmp.eq.s32.totalorder %s82, 0
      %p434 = por %p432, %p433
      %s436 = sadd.s32 %s435, 1
      %p439 = scmp.eq.s32.totalorder %s76, 1
      %p440 = scmp.ne.s32.totalorder %s435, %s437
      %p441 = scmp.eq.s32.totalorder %s76, 0
      %p442 = por %p440, %p441
      %p443 = scmp.ne.s32.totalorder %s435, %s437
      %p444 = scmp.eq.s32.totalorder %s81, 1
      %p445 = por %p443, %p444
      %p446 = scmp.ne.s32.totalorder %s437, %s438
      %p447 = scmp.eq.s32.totalorder %s81, 0
      %p448 = por %p446, %p447
      %p449 = scmp.ne.s32.totalorder %s437, %s438
      %p450 = scmp.eq.s32.totalorder %s82, 1
      %p451 = por %p449, %p450
      %p453 = scmp.ne.s32.totalorder %s438, %s452
      %p454 = scmp.eq.s32.totalorder %s82, 0
      %p455 = por %p453, %p454
      %s457 = sadd.s32 %s456, 1
      %p460 = scmp.eq.s32.totalorder %s76, 1
      %p461 = scmp.ne.s32.totalorder %s456, %s458
      %p462 = scmp.eq.s32.totalorder %s76, 0
      %p463 = por %p461, %p462
      %p464 = scmp.ne.s32.totalorder %s456, %s458
      %p465 = scmp.eq.s32.totalorder %s81, 1
      %p466 = por %p464, %p465
      %p467 = scmp.ne.s32.totalorder %s458, %s459
      %p468 = scmp.eq.s32.totalorder %s81, 0
      %p469 = por %p467, %p468
      %p470 = scmp.ne.s32.totalorder %s458, %s459
      %p471 = scmp.eq.s32.totalorder %s82, 1
      %p472 = por %p470, %p471
      %p474 = scmp.ne.s32.totalorder %s459, %s473
      %p475 = scmp.eq.s32.totalorder %s82, 0
      %p476 = por %p474, %p475
      %s478 = sadd.s32 %s477, 1
      %p481 = scmp.eq.s32.totalorder %s76, 1
      %p482 = scmp.ne.s32.totalorder %s477, %s479
      %p483 = scmp.eq.s32.totalorder %s76, 0
      %p484 = por %p482, %p483
      %p485 = scmp.ne.s32.totalorder %s477, %s479
      %p486 = scmp.eq.s32.totalorder %s81, 1
      %p487 = por %p485, %p486
      %p488 = scmp.ne.s32.totalorder %s479, %s480
      %p489 = scmp.eq.s32.totalorder %s81, 0
      %p490 = por %p488, %p489
      %p491 = scmp.ne.s32.totalorder %s479, %s480
      %p492 = scmp.eq.s32.totalorder %s82, 1
      %p493 = por %p491, %p492
      %p495 = scmp.ne.s32.totalorder %s480, %s494
      %p496 = scmp.eq.s32.totalorder %s82, 0
      %p497 = por %p495, %p496
      %s499 = sadd.s32 %s498, 1
      %p502 = scmp.eq.s32.totalorder %s76, 1
      %p503 = scmp.ne.s32.totalorder %s498, %s500
      %p504 = scmp.eq.s32.totalorder %s76, 0
      %p505 = por %p503, %p504
      %p506 = scmp.ne.s32.totalorder %s498, %s500
      %p507 = scmp.eq.s32.totalorder %s81, 1
      %p508 = por %p506, %p507
      %p509 = scmp.ne.s32.totalorder %s500, %s501
      %p510 = scmp.eq.s32.totalorder %s81, 0
      %p511 = por %p509, %p510
      %p512 = scmp.ne.s32.totalorder %s500, %s501
      %p513 = scmp.eq.s32.totalorder %s82, 1
      %p514 = por %p512, %p513
      %p516 = scmp.ne.s32.totalorder %s501, %s515
      %p517 = scmp.eq.s32.totalorder %s82, 0
      %p518 = por %p516, %p517
      %s520 = sadd.s32 %s519, 1
      %p523 = scmp.eq.s32.totalorder %s76, 1
      %p524 = scmp.ne.s32.totalorder %s519, %s521
      %p525 = scmp.eq.s32.totalorder %s76, 0
      %p526 = por %p524, %p525
      %p527 = scmp.ne.s32.totalorder %s519, %s521
      %p528 = scmp.eq.s32.totalorder %s81, 1
      %p529 = por %p527, %p528
      %p530 = scmp.ne.s32.totalorder %s521, %s522
      %p531 = scmp.eq.s32.totalorder %s81, 0
      %p532 = por %p530, %p531
      %p533 = scmp.ne.s32.totalorder %s521, %s522
      %p534 = scmp.eq.s32.totalorder %s82, 1
      %p535 = por %p533, %p534
      %p537 = scmp.ne.s32.totalorder %s522, %s536
      %p538 = scmp.eq.s32.totalorder %s82, 0
      %p539 = por %p537, %p538
      %s541 = sadd.s32 %s540, 1
      %p544 = scmp.eq.s32.totalorder %s76, 1
      %p545 = scmp.ne.s32.totalorder %s540, %s542
      %p546 = scmp.eq.s32.totalorder %s76, 0
      %p547 = por %p545, %p546
      %p548 = scmp.ne.s32.totalorder %s540, %s542
      %p549 = scmp.eq.s32.totalorder %s81, 1
      %p550 = por %p548, %p549
      %p551 = scmp.ne.s32.totalorder %s542, %s543
      %p552 = scmp.eq.s32.totalorder %s81, 0
      %p553 = por %p551, %p552
      %p554 = scmp.ne.s32.totalorder %s542, %s543
      %p555 = scmp.eq.s32.totalorder %s82, 1
      %p556 = por %p554, %p555
      %p558 = scmp.ne.s32.totalorder %s543, %s557
      %p559 = scmp.eq.s32.totalorder %s82, 0
      %p560 = por %p558, %p559
      %s562 = sadd.s32 %s561, 1
      %p565 = scmp.eq.s32.totalorder %s76, 1
      %p566 = scmp.ne.s32.totalorder %s561, %s563
      %p567 = scmp.eq.s32.totalorder %s76, 0
      %p568 = por %p566, %p567
      %p569 = scmp.ne.s32.totalorder %s561, %s563
      %p570 = scmp.eq.s32.totalorder %s81, 1
      %p571 = por %p569, %p570
      %p572 = scmp.ne.s32.totalorder %s563, %s564
      %p573 = scmp.eq.s32.totalorder %s81, 0
      %p574 = por %p572, %p573
      %p575 = scmp.ne.s32.totalorder %s563, %s564
      %p576 = scmp.eq.s32.totalorder %s82, 1
      %p577 = por %p575, %p576
      %p579 = scmp.ne.s32.totalorder %s564, %s578
      %p580 = scmp.eq.s32.totalorder %s82, 0
      %p581 = por %p579, %p580
      %s583 = sadd.s32 %s582, 1
      %p586 = scmp.eq.s32.totalorder %s76, 1
      %p587 = scmp.ne.s32.totalorder %s582, %s584
      %p588 = scmp.eq.s32.totalorder %s76, 0
      %p589 = por %p587, %p588
      %p590 = scmp.ne.s32.totalorder %s582, %s584
      %p591 = scmp.eq.s32.totalorder %s81, 1
      %p592 = por %p590, %p591
      %p593 = scmp.ne.s32.totalorder %s584, %s585
      %p594 = scmp.eq.s32.totalorder %s81, 0
      %p595 = por %p593, %p594
      %p596 = scmp.ne.s32.totalorder %s584, %s585
      %p597 = scmp.eq.s32.totalorder %s82, 1
      %p598 = por %p596, %p597
      %p600 = scmp.ne.s32.totalorder %s585, %s599
      %p601 = scmp.eq.s32.totalorder %s82, 0
      %p602 = por %p600, %p601
      %s604 = sadd.s32 %s603, 1
      %p607 = scmp.eq.s32.totalorder %s76, 1
      %p608 = scmp.ne.s32.totalorder %s603, %s605
      %p609 = scmp.eq.s32.totalorder %s76, 0
      %p610 = por %p608, %p609
      %p611 = scmp.ne.s32.totalorder %s603, %s605
      %p612 = scmp.eq.s32.totalorder %s81, 1
      %p613 = por %p611, %p612
      %p614 = scmp.ne.s32.totalorder %s605, %s606
      %p615 = scmp.eq.s32.totalorder %s81, 0
      %p616 = por %p614, %p615
      %p617 = scmp.ne.s32.totalorder %s605, %s606
      %p618 = scmp.eq.s32.totalorder %s82, 1
      %p619 = por %p617, %p618
      %p621 = scmp.ne.s32.totalorder %s606, %s620
      %p622 = scmp.eq.s32.totalorder %s82, 0
      %p623 = por %p621, %p622
      %s625 = sadd.s32 %s624, 1
      %p628 = scmp.eq.s32.totalorder %s76, 1
      %p629 = scmp.ne.s32.totalorder %s624, %s626
      %p630 = scmp.eq.s32.totalorder %s76, 0
      %p631 = por %p629, %p630
      %p632 = scmp.ne.s32.totalorder %s624, %s626
      %p633 = scmp.eq.s32.totalorder %s81, 1
      %p634 = por %p632, %p633
      %p635 = scmp.ne.s32.totalorder %s626, %s627
      %p636 = scmp.eq.s32.totalorder %s81, 0
      %p637 = por %p635, %p636
      %p638 = scmp.ne.s32.totalorder %s626, %s627
      %p639 = scmp.eq.s32.totalorder %s82, 1
      %p640 = por %p638, %p639
      %p642 = scmp.ne.s32.totalorder %s627, %s641
      %p643 = scmp.eq.s32.totalorder %s82, 0
      %p644 = por %p642, %p643
      %s646 = sadd.s32 %s645, 1
      %p649 = scmp.eq.s32.totalorder %s76, 1
      %p650 = scmp.ne.s32.totalorder %s645, %s647
      %p651 = scmp.eq.s32.totalorder %s76, 0
      %p652 = por %p650, %p651
      %p653 = scmp.ne.s32.totalorder %s645, %s647
      %p654 = scmp.eq.s32.totalorder %s81, 1
      %p655 = por %p653, %p654
      %p656 = scmp.ne.s32.totalorder %s647, %s648
      %p657 = scmp.eq.s32.totalorder %s81, 0
      %p658 = por %p656, %p657
      %p659 = scmp.ne.s32.totalorder %s647, %s648
      %p660 = scmp.eq.s32.totalorder %s82, 1
      %p661 = por %p659, %p660
      %p663 = scmp.ne.s32.totalorder %s648, %s662
      %p664 = scmp.eq.s32.totalorder %s82, 0
      %p665 = por %p663, %p664
      %s667 = sadd.s32 %s666, 1
      %p670 = scmp.eq.s32.totalorder %s76, 1
      %p671 = scmp.ne.s32.totalorder %s666, %s668
      %p672 = scmp.eq.s32.totalorder %s76, 0
      %p673 = por %p671, %p672
      %p674 = scmp.ne.s32.totalorder %s666, %s668
      %p675 = scmp.eq.s32.totalorder %s81, 1
      %p676 = por %p674, %p675
      %p677 = scmp.ne.s32.totalorder %s668, %s669
      %p678 = scmp.eq.s32.totalorder %s81, 0
      %p679 = por %p677, %p678
      %p680 = scmp.ne.s32.totalorder %s668, %s669
      %p681 = scmp.eq.s32.totalorder %s82, 1
      %p682 = por %p680, %p681
      %p684 = scmp.ne.s32.totalorder %s669, %s683
      %p685 = scmp.eq.s32.totalorder %s82, 0
      %p686 = por %p684, %p685
      %s688 = sadd.s32 %s687, 1
      %p691 = scmp.eq.s32.totalorder %s76, 1
      %p692 = scmp.ne.s32.totalorder %s687, %s689
      %p693 = scmp.eq.s32.totalorder %s76, 0
      %p694 = por %p692, %p693
      %p695 = scmp.ne.s32.totalorder %s687, %s689
      %p696 = scmp.eq.s32.totalorder %s81, 1
      %p697 = por %p695, %p696
      %p698 = scmp.ne.s32.totalorder %s689, %s690
      %p699 = scmp.eq.s32.totalorder %s81, 0
      %p700 = por %p698, %p699
      %p701 = scmp.ne.s32.totalorder %s689, %s690
      %p702 = scmp.eq.s32.totalorder %s82, 1
      %p703 = por %p701, %p702
      %p705 = scmp.ne.s32.totalorder %s690, %s704
      %p706 = scmp.eq.s32.totalorder %s82, 0
      %p707 = por %p705, %p706
      %s708 = ssub.s32 %s76, %s83
      %p709 = scmp.eq.s32.totalorder %s708, 0
      %s711 = sadd.s32 %s710, 1
      %s712 = scalar_select %p709, %s710, %s711
      %p715 = pneg %p709
      %p716 = scmp.eq.s32.totalorder %s76, 1
      %p717 = por %p715, %p716
      %p718 = scmp.ne.s32.totalorder %s710, %s713
      %p719 = scmp.eq.s32.totalorder %s76, 0
      %p720 = por %p718, %p719
      %p721 = scmp.ne.s32.totalorder %s710, %s713
      %p722 = scmp.eq.s32.totalorder %s81, 1
      %p723 = por %p721, %p722
      %p724 = scmp.ne.s32.totalorder %s713, %s714
      %p725 = scmp.eq.s32.totalorder %s81, 0
      %p726 = por %p724, %p725
      %p727 = scmp.ne.s32.totalorder %s713, %s714
      %p728 = scmp.eq.s32.totalorder %s82, 1
      %p729 = por %p727, %p728
      %p731 = scmp.ne.s32.totalorder %s714, %s730
      %p732 = scmp.eq.s32.totalorder %s82, 0
      %p733 = por %p731, %p732
      %p734 = scmp.le.s32.totalorder 1, %s76
      %p735 = scmp.lt.s32.totalorder %s76, 3
      %p736 = pnand %p734, %p735
      %p737 = pneg %p736
      // Predicated region
      $region9: #{pose_gat_forward.1} parent=5 // pred_check
        _
      $region10: #{pose_gat_forward.1} parent=5 // pred_check_branch
        %739 = sbr.rel (%p736) target = $region12
      $region11: #{pose_gat_forward.1} parent=5 // pred_region
        %s740 = ssub.s32 %s76, 1
        // Predicated region
        $region13: #{pose_gat_forward.1} parent=11 // pred_check
          %p741 = pneg %p175
        $region14: #{pose_gat_forward.1} parent=11 // pred_check_branch
          %743 = sbr.rel (%p741) target = $region16
        $region15: #{pose_gat_forward.1} parent=11 // pred_region
          _
        $region16: #{pose_gat_forward.1} parent=11 // pred_fallthru
          _
        // Predicated region
        $region17: #{pose_gat_forward.1} parent=11 // pred_check
          %p744 = pneg %p196
        $region18: #{pose_gat_forward.1} parent=11 // pred_check_branch
          %746 = sbr.rel (%p744) target = $region20
        $region19: #{pose_gat_forward.1} parent=11 // pred_region
          _
        $region20: #{pose_gat_forward.1} parent=11 // pred_fallthru
          _
        // Predicated region
        $region21: #{pose_gat_forward.1} parent=11 // pred_check
          %p747 = pneg %p217
        $region22: #{pose_gat_forward.1} parent=11 // pred_check_branch
          %749 = sbr.rel (%p747) target = $region24
        $region23: #{pose_gat_forward.1} parent=11 // pred_region
          %751 = vsyncadd [#allocation4], 0
          %s752 = sshll.u32 %s11, 4
          %s753 = int_to_ptr.hbm [resolvable:$true] %s752
          %s754 = sshll.u32 [#allocation3], 4
          %s755 = int_to_ptr.vmem [resolvable:$true] %s754
          %760 = dma.hbm_to_vmem [thread:$0]  %s753, 128, %s755, [#allocation4], 64, 64, 4
        $region24: #{pose_gat_forward.1} parent=11 // pred_fallthru
          _
        // Predicated region
        $region25: #{pose_gat_forward.1} parent=11 // pred_check
          %p761 = pneg %p238
        $region26: #{pose_gat_forward.1} parent=11 // pred_check_branch
          %763 = sbr.rel (%p761) target = $region28
        $region27: #{pose_gat_forward.1} parent=11 // pred_region
          %765 = vsyncadd [#allocation7], 0
          %s767 = sshll.u32 %s13, 4
          %s768 = int_to_ptr.hbm [resolvable:$true] %s767
          %s769 = sshll.u32 [#allocation6], 4
          %s770 = int_to_ptr.vmem [resolvable:$true] %s769
          %772 = dma.hbm_to_vmem [thread:$0]  %s768, 16, %s770, [#allocation7]
        $region28: #{pose_gat_forward.1} parent=11 // pred_fallthru
          _
        // Predicated region
        $region29: #{pose_gat_forward.1} parent=11 // pred_check
          %p773 = pneg %p259
        $region30: #{pose_gat_forward.1} parent=11 // pred_check_branch
          %775 = sbr.rel (%p773) target = $region32
        $region31: #{pose_gat_forward.1} parent=11 // pred_region
          _
        $region32: #{pose_gat_forward.1} parent=11 // pred_fallthru
          _
        // Predicated region
        $region33: #{pose_gat_forward.1} parent=11 // pred_check
          %p776 = pneg %p280
        $region34: #{pose_gat_forward.1} parent=11 // pred_check_branch
          %778 = sbr.rel (%p776) target = $region36
        $region35: #{pose_gat_forward.1} parent=11 // pred_region
          %780 = vsyncadd [#allocation7], 0
          %s782 = sshll.u32 %s17, 4
          %s783 = int_to_ptr.hbm [resolvable:$true] %s782
          %s784 = sshll.u32 [#allocation8], 4
          %s785 = int_to_ptr.vmem [resolvable:$true] %s784
          %787 = dma.hbm_to_vmem [thread:$0]  %s783, 16, %s785, [#allocation7]
        $region36: #{pose_gat_forward.1} parent=11 // pred_fallthru
          _
        // Predicated region
        $region37: #{pose_gat_forward.1} parent=11 // pred_check
          %p788 = pneg %p301
        $region38: #{pose_gat_forward.1} parent=11 // pred_check_branch
          %790 = sbr.rel (%p788) target = $region40
        $region39: #{pose_gat_forward.1} parent=11 // pred_region
          _
        $region40: #{pose_gat_forward.1} parent=11 // pred_fallthru
          _
        // Predicated region
        $region41: #{pose_gat_forward.1} parent=11 // pred_check
          %p791 = pneg %p322
        $region42: #{pose_gat_forward.1} parent=11 // pred_check_branch
          %793 = sbr.rel (%p791) target = $region44
        $region43: #{pose_gat_forward.1} parent=11 // pred_region
          %795 = vsyncadd [#allocation10], 0
          %s797 = sshll.u32 %s21, 4
          %s798 = int_to_ptr.hbm [resolvable:$true] %s797
          %s799 = sshll.u32 [#allocation9], 4
          %s800 = int_to_ptr.vmem [resolvable:$true] %s799
          %802 = dma.hbm_to_vmem [thread:$0]  %s798, 16, %s800, [#allocation10]
        $region44: #{pose_gat_forward.1} parent=11 // pred_fallthru
          _
        // Predicated region
        $region45: #{pose_gat_forward.1} parent=11 // pred_check
          %p803 = pneg %p343
        $region46: #{pose_gat_forward.1} parent=11 // pred_check_branch
          %805 = sbr.rel (%p803) target = $region48
        $region47: #{pose_gat_forward.1} parent=11 // pred_region
          _
        $region48: #{pose_gat_forward.1} parent=11 // pred_fallthru
          _
        // Predicated region
        $region49: #{pose_gat_forward.1} parent=11 // pred_check
          %p806 = pneg %p364
        $region50: #{pose_gat_forward.1} parent=11 // pred_check_branch
          %808 = sbr.rel (%p806) target = $region52
        $region51: #{pose_gat_forward.1} parent=11 // pred_region
          %810 = vsyncadd [#allocation10], 0
          %s812 = sshll.u32 %s25, 4
          %s813 = int_to_ptr.hbm [resolvable:$true] %s812
          %s814 = sshll.u32 [#allocation11], 4
          %s815 = int_to_ptr.vmem [resolvable:$true] %s814
          %817 = dma.hbm_to_vmem [thread:$0]  %s813, 16, %s815, [#allocation10]
        $region52: #{pose_gat_forward.1} parent=11 // pred_fallthru
          _
        // Predicated region
        $region53: #{pose_gat_forward.1} parent=11 // pred_check
          %p818 = pneg %p385
        $region54: #{pose_gat_forward.1} parent=11 // pred_check_branch
          %820 = sbr.rel (%p818) target = $region56
        $region55: #{pose_gat_forward.1} parent=11 // pred_region
          _
        $region56: #{pose_gat_forward.1} parent=11 // pred_fallthru
          _
        // Predicated region
        $region57: #{pose_gat_forward.1} parent=11 // pred_check
          %p821 = pneg %p406
        $region58: #{pose_gat_forward.1} parent=11 // pred_check_branch
          %823 = sbr.rel (%p821) target = $region60
        $region59: #{pose_gat_forward.1} parent=11 // pred_region
          _
        $region60: #{pose_gat_forward.1} parent=11 // pred_fallthru
          _
        // Predicated region
        $region61: #{pose_gat_forward.1} parent=11 // pred_check
          %p824 = pneg %p427
        $region62: #{pose_gat_forward.1} parent=11 // pred_check_branch
          %826 = sbr.rel (%p824) target = $region64
        $region63: #{pose_gat_forward.1} parent=11 // pred_region
          %828 = vsyncadd [#allocation13], 0
          %s830 = sshll.u32 %s31, 4
          %s831 = int_to_ptr.hbm [resolvable:$true] %s830
          %s832 = sshll.u32 [#allocation12], 4
          %s833 = int_to_ptr.vmem [resolvable:$true] %s832
          %835 = dma.hbm_to_vmem [thread:$0]  %s831, 16, %s833, [#allocation13]
        $region64: #{pose_gat_forward.1} parent=11 // pred_fallthru
          _
        // Predicated region
        $region65: #{pose_gat_forward.1} parent=11 // pred_check
          %p836 = pneg %p448
        $region66: #{pose_gat_forward.1} parent=11 // pred_check_branch
          %838 = sbr.rel (%p836) target = $region68
        $region67: #{pose_gat_forward.1} parent=11 // pred_region
          _
        $region68: #{pose_gat_forward.1} parent=11 // pred_fallthru
          _
        // Predicated region
        $region69: #{pose_gat_forward.1} parent=11 // pred_check
          %p839 = pneg %p469
        $region70: #{pose_gat_forward.1} parent=11 // pred_check_branch
          %841 = sbr.rel (%p839) target = $region72
        $region71: #{pose_gat_forward.1} parent=11 // pred_region
          %843 = vsyncadd [#allocation13], 0
          %s845 = sshll.u32 %s35, 4
          %s846 = int_to_ptr.hbm [resolvable:$true] %s845
          %s847 = sshll.u32 [#allocation14], 4
          %s848 = int_to_ptr.vmem [resolvable:$true] %s847
          %850 = dma.hbm_to_vmem [thread:$0]  %s846, 16, %s848, [#allocation13]
        $region72: #{pose_gat_forward.1} parent=11 // pred_fallthru
          _
        // Predicated region
        $region73: #{pose_gat_forward.1} parent=11 // pred_check
          %p851 = pneg %p490
        $region74: #{pose_gat_forward.1} parent=11 // pred_check_branch
          %853 = sbr.rel (%p851) target = $region76
        $region75: #{pose_gat_forward.1} parent=11 // pred_region
          %855 = vsyncadd [#allocation16], 0
          %s856 = sshll.u32 %s37, 4
          %s857 = int_to_ptr.hbm [resolvable:$true] %s856
          %s858 = sshll.u32 [#allocation15], 4
          %s859 = int_to_ptr.vmem [resolvable:$true] %s858
          %864 = dma.hbm_to_vmem [thread:$0]  %s857, 256, %s859, [#allocation16], 64, 64, 4
        $region76: #{pose_gat_forward.1} parent=11 // pred_fallthru
          _
        // Predicated region
        $region77: #{pose_gat_forward.1} parent=11 // pred_check
          %p865 = pneg %p511
        $region78: #{pose_gat_forward.1} parent=11 // pred_check_branch
          %867 = sbr.rel (%p865) target = $region80
        $region79: #{pose_gat_forward.1} parent=11 // pred_region
          _
        $region80: #{pose_gat_forward.1} parent=11 // pred_fallthru
          _
        // Predicated region
        $region81: #{pose_gat_forward.1} parent=11 // pred_check
          %p868 = pneg %p532
        $region82: #{pose_gat_forward.1} parent=11 // pred_check_branch
          %870 = sbr.rel (%p868) target = $region84
        $region83: #{pose_gat_forward.1} parent=11 // pred_region
          %872 = vsyncadd [#allocation16], 0
          %s873 = sshll.u32 %s41, 4
          %s874 = int_to_ptr.hbm [resolvable:$true] %s873
          %s875 = sshll.u32 [#allocation17], 4
          %s876 = int_to_ptr.vmem [resolvable:$true] %s875
          %881 = dma.hbm_to_vmem [thread:$0]  %s874, 256, %s876, [#allocation16], 64, 64, 4
        $region84: #{pose_gat_forward.1} parent=11 // pred_fallthru
          _
        // Predicated region
        $region85: #{pose_gat_forward.1} parent=11 // pred_check
          %p882 = pneg %p553
        $region86: #{pose_gat_forward.1} parent=11 // pred_check_branch
          %884 = sbr.rel (%p882) target = $region88
        $region87: #{pose_gat_forward.1} parent=11 // pred_region
          _
        $region88: #{pose_gat_forward.1} parent=11 // pred_fallthru
          _
        // Predicated region
        $region89: #{pose_gat_forward.1} parent=11 // pred_check
          %p885 = pneg %p574
        $region90: #{pose_gat_forward.1} parent=11 // pred_check_branch
          %887 = sbr.rel (%p885) target = $region92
        $region91: #{pose_gat_forward.1} parent=11 // pred_region
          %889 = vsyncadd [#allocation19], 0
          %s890 = sshll.u32 %s45, 4
          %s891 = int_to_ptr.hbm [resolvable:$true] %s890
          %s892 = sshll.u32 [#allocation18], 4
          %s893 = int_to_ptr.vmem [resolvable:$true] %s892
          %898 = dma.hbm_to_vmem [thread:$0]  %s891, 256, %s893, [#allocation19], 64, 64, 4
        $region92: #{pose_gat_forward.1} parent=11 // pred_fallthru
          _
        // Predicated region
        $region93: #{pose_gat_forward.1} parent=11 // pred_check
          %p899 = pneg %p595
        $region94: #{pose_gat_forward.1} parent=11 // pred_check_branch
          %901 = sbr.rel (%p899) target = $region96
        $region95: #{pose_gat_forward.1} parent=11 // pred_region
          %903 = vsyncadd [#allocation19], 0
          %s904 = sshll.u32 %s47, 4
          %s905 = int_to_ptr.hbm [resolvable:$true] %s904
          %s906 = sshll.u32 [#allocation20], 4
          %s907 = int_to_ptr.vmem [resolvable:$true] %s906
          %912 = dma.hbm_to_vmem [thread:$0]  %s905, 256, %s907, [#allocation19], 64, 64, 4
        $region96: #{pose_gat_forward.1} parent=11 // pred_fallthru
          _
        // Predicated region
        $region97: #{pose_gat_forward.1} parent=11 // pred_check
          %p913 = pneg %p616
        $region98: #{pose_gat_forward.1} parent=11 // pred_check_branch
          %915 = sbr.rel (%p913) target = $region100
        $region99: #{pose_gat_forward.1} parent=11 // pred_region
          %917 = vsyncadd [#allocation22], 0
          %s919 = sshll.u32 %s49, 4
          %s920 = int_to_ptr.hbm [resolvable:$true] %s919
          %s921 = sshll.u32 [#allocation21], 4
          %s922 = int_to_ptr.vmem [resolvable:$true] %s921
          %924 = dma.hbm_to_vmem [thread:$0]  %s920, 16, %s922, [#allocation22]
        $region100: #{pose_gat_forward.1} parent=11 // pred_fallthru
          _
        // Predicated region
        $region101: #{pose_gat_forward.1} parent=11 // pred_check
          %p925 = pneg %p637
        $region102: #{pose_gat_forward.1} parent=11 // pred_check_branch
          %927 = sbr.rel (%p925) target = $region104
        $region103: #{pose_gat_forward.1} parent=11 // pred_region
          _
        $region104: #{pose_gat_forward.1} parent=11 // pred_fallthru
          _
        // Predicated region
        $region105: #{pose_gat_forward.1} parent=11 // pred_check
          %p928 = pneg %p658
        $region106: #{pose_gat_forward.1} parent=11 // pred_check_branch
          %930 = sbr.rel (%p928) target = $region108
        $region107: #{pose_gat_forward.1} parent=11 // pred_region
          %932 = vsyncadd [#allocation22], 0
          %s934 = sshll.u32 %s53, 4
          %s935 = int_to_ptr.hbm [resolvable:$true] %s934
          %s936 = sshll.u32 [#allocation23], 4
          %s937 = int_to_ptr.vmem [resolvable:$true] %s936
          %939 = dma.hbm_to_vmem [thread:$0]  %s935, 16, %s937, [#allocation22]
        $region108: #{pose_gat_forward.1} parent=11 // pred_fallthru
          _
        // Predicated region
        $region109: #{pose_gat_forward.1} parent=11 // pred_check
          %p940 = pneg %p679
        $region110: #{pose_gat_forward.1} parent=11 // pred_check_branch
          %942 = sbr.rel (%p940) target = $region112
        $region111: #{pose_gat_forward.1} parent=11 // pred_region
          %944 = vsyncadd [#allocation25], 0
          %s945 = sshll.u32 %s55, 4
          %s946 = int_to_ptr.hbm [resolvable:$true] %s945
          %s947 = sshll.u32 [#allocation24], 4
          %s948 = int_to_ptr.vmem [resolvable:$true] %s947
          %953 = dma.hbm_to_vmem [thread:$0]  %s946, 256, %s948, [#allocation25], 64, 64, 4
        $region112: #{pose_gat_forward.1} parent=11 // pred_fallthru
          _
        // Predicated region
        $region113: #{pose_gat_forward.1} parent=11 // pred_check
          %p954 = pneg %p700
        $region114: #{pose_gat_forward.1} parent=11 // pred_check_branch
          %956 = sbr.rel (%p954) target = $region116
        $region115: #{pose_gat_forward.1} parent=11 // pred_region
          _
        $region116: #{pose_gat_forward.1} parent=11 // pred_fallthru
          _
      $region12: #{pose_gat_forward.1} parent=5 // pred_fallthru
        _
      %p957 = scmp.lt.s32.totalorder %s76, 2
      // Predicated region
      $region117: #{pose_gat_forward.1} parent=5 // pred_check
        %p958 = pneg %p957
      $region118: #{pose_gat_forward.1} parent=5 // pred_check_branch
        %960 = sbr.rel (%p958) target = $region120
      $region119: #{pose_gat_forward.1} parent=5 // pred_region
        // Predicated region
        $region121: #{pose_gat_forward.1} parent=119 // pred_check
          %p961 = pneg %p96
        $region122: #{pose_gat_forward.1} parent=119 // pred_check_branch
          %963 = sbr.rel (%p961) target = $region124
        $region123: #{pose_gat_forward.1} parent=119 // pred_region
          %p964 = scmp.lt.s32.totalorder %s76, 1
          %s965 = scalar_select %p964, %s76, 1
          %s966 = smul.addr %s965, 2
          %s967 = smul.addr %s966, 8
          %s968 = scalar_lea.vmem %s1, %s967
        $region124: #{pose_gat_forward.1} parent=119 // pred_fallthru
          _
        // Predicated region
        $region125: #{pose_gat_forward.1} parent=119 // pred_check
          %p969 = pneg %p122
        $region126: #{pose_gat_forward.1} parent=119 // pred_check_branch
          %971 = sbr.rel (%p969) target = $region128
        $region127: #{pose_gat_forward.1} parent=119 // pred_region
          %p972 = scmp.lt.s32.totalorder %s76, 1
          %s973 = scalar_select %p972, %s76, 1
          %s974 = smul.addr %s973, 2
          %s975 = smul.addr %s974, 8
          %s976 = scalar_lea.vmem %s3, %s975
        $region128: #{pose_gat_forward.1} parent=119 // pred_fallthru
          _
        // Predicated region
        $region129: #{pose_gat_forward.1} parent=119 // pred_check
          %p977 = pneg %p148
        $region130: #{pose_gat_forward.1} parent=119 // pred_check_branch
          %979 = sbr.rel (%p977) target = $region132
        $region131: #{pose_gat_forward.1} parent=119 // pred_region
          %p980 = scmp.lt.s32.totalorder %s76, 1
          %s981 = scalar_select %p980, %s76, 1
          %s982 = smul.addr %s981, 2
          %s983 = scalar_lea.vmem %s5, %s982
        $region132: #{pose_gat_forward.1} parent=119 // pred_fallthru
          _
      $region120: #{pose_gat_forward.1} parent=5 // pred_fallthru
        _
      %p984 = scmp.le.s32.totalorder 1, %s76
      %p985 = scmp.lt.s32.totalorder %s76, 3
      %p986 = pnand %p984, %p985
      %p987 = pneg %p986
      // Predicated region
      $region133: #{pose_gat_forward.1} parent=5 // pred_check
        _
      $region134: #{pose_gat_forward.1} parent=5 // pred_check_branch
        %989 = sbr.rel (%p986) target = $region136
      $region135: #{pose_gat_forward.1} parent=5 // pred_region
        %s990 = ssub.s32 %s76, 1
        // Predicated region
        $region137: #{pose_gat_forward.1} parent=135 // pred_check
          %p991 = pneg %p217
        $region138: #{pose_gat_forward.1} parent=135 // pred_check_branch
          %993 = sbr.rel (%p991) target = $region140
        $region139: #{pose_gat_forward.1} parent=135 // pred_region
          %995 = dma.done [#allocation4], 128
        $region140: #{pose_gat_forward.1} parent=135 // pred_fallthru
          _
        // Predicated region
        $region141: #{pose_gat_forward.1} parent=135 // pred_check
          %p996 = pneg %p238
        $region142: #{pose_gat_forward.1} parent=135 // pred_check_branch
          %998 = sbr.rel (%p996) target = $region144
        $region143: #{pose_gat_forward.1} parent=135 // pred_region
          %1000 = dma.done [#allocation7], 16
        $region144: #{pose_gat_forward.1} parent=135 // pred_fallthru
          _
        // Predicated region
        $region145: #{pose_gat_forward.1} parent=135 // pred_check
          %p1001 = pneg %p280
        $region146: #{pose_gat_forward.1} parent=135 // pred_check_branch
          %1003 = sbr.rel (%p1001) target = $region148
        $region147: #{pose_gat_forward.1} parent=135 // pred_region
          %1005 = dma.done [#allocation7], 16
        $region148: #{pose_gat_forward.1} parent=135 // pred_fallthru
          _
        // Predicated region
        $region149: #{pose_gat_forward.1} parent=135 // pred_check
          %p1006 = pneg %p322
        $region150: #{pose_gat_forward.1} parent=135 // pred_check_branch
          %1008 = sbr.rel (%p1006) target = $region152
        $region151: #{pose_gat_forward.1} parent=135 // pred_region
          %1010 = dma.done [#allocation10], 16
        $region152: #{pose_gat_forward.1} parent=135 // pred_fallthru
          _
        // Predicated region
        $region153: #{pose_gat_forward.1} parent=135 // pred_check
          %p1011 = pneg %p364
        $region154: #{pose_gat_forward.1} parent=135 // pred_check_branch
          %1013 = sbr.rel (%p1011) target = $region156
        $region155: #{pose_gat_forward.1} parent=135 // pred_region
          %1015 = dma.done [#allocation10], 16
        $region156: #{pose_gat_forward.1} parent=135 // pred_fallthru
          _
        // Predicated region
        $region157: #{pose_gat_forward.1} parent=135 // pred_check
          %p1016 = pneg %p427
        $region158: #{pose_gat_forward.1} parent=135 // pred_check_branch
          %1018 = sbr.rel (%p1016) target = $region160
        $region159: #{pose_gat_forward.1} parent=135 // pred_region
          %1020 = dma.done [#allocation13], 16
        $region160: #{pose_gat_forward.1} parent=135 // pred_fallthru
          _
        // Predicated region
        $region161: #{pose_gat_forward.1} parent=135 // pred_check
          %p1021 = pneg %p469
        $region162: #{pose_gat_forward.1} parent=135 // pred_check_branch
          %1023 = sbr.rel (%p1021) target = $region164
        $region163: #{pose_gat_forward.1} parent=135 // pred_region
          %1025 = dma.done [#allocation13], 16
        $region164: #{pose_gat_forward.1} parent=135 // pred_fallthru
          _
        // Predicated region
        $region165: #{pose_gat_forward.1} parent=135 // pred_check
          %p1026 = pneg %p490
        $region166: #{pose_gat_forward.1} parent=135 // pred_check_branch
          %1028 = sbr.rel (%p1026) target = $region168
        $region167: #{pose_gat_forward.1} parent=135 // pred_region
          %1030 = dma.done [#allocation16], 256
        $region168: #{pose_gat_forward.1} parent=135 // pred_fallthru
          _
        // Predicated region
        $region169: #{pose_gat_forward.1} parent=135 // pred_check
          %p1031 = pneg %p532
        $region170: #{pose_gat_forward.1} parent=135 // pred_check_branch
          %1033 = sbr.rel (%p1031) target = $region172
        $region171: #{pose_gat_forward.1} parent=135 // pred_region
          %1035 = dma.done [#allocation16], 256
        $region172: #{pose_gat_forward.1} parent=135 // pred_fallthru
          _
        // Predicated region
        $region173: #{pose_gat_forward.1} parent=135 // pred_check
          %p1036 = pneg %p574
        $region174: #{pose_gat_forward.1} parent=135 // pred_check_branch
          %1038 = sbr.rel (%p1036) target = $region176
        $region175: #{pose_gat_forward.1} parent=135 // pred_region
          %1040 = dma.done [#allocation19], 256
        $region176: #{pose_gat_forward.1} parent=135 // pred_fallthru
          _
        // Predicated region
        $region177: #{pose_gat_forward.1} parent=135 // pred_check
          %p1041 = pneg %p595
        $region178: #{pose_gat_forward.1} parent=135 // pred_check_branch
          %1043 = sbr.rel (%p1041) target = $region180
        $region179: #{pose_gat_forward.1} parent=135 // pred_region
          %1045 = dma.done [#allocation19], 256
        $region180: #{pose_gat_forward.1} parent=135 // pred_fallthru
          _
        // Predicated region
        $region181: #{pose_gat_forward.1} parent=135 // pred_check
          %p1046 = pneg %p616
        $region182: #{pose_gat_forward.1} parent=135 // pred_check_branch
          %1048 = sbr.rel (%p1046) target = $region184
        $region183: #{pose_gat_forward.1} parent=135 // pred_region
          %1050 = dma.done [#allocation22], 16
        $region184: #{pose_gat_forward.1} parent=135 // pred_fallthru
          _
        // Predicated region
        $region185: #{pose_gat_forward.1} parent=135 // pred_check
          %p1051 = pneg %p658
        $region186: #{pose_gat_forward.1} parent=135 // pred_check_branch
          %1053 = sbr.rel (%p1051) target = $region188
        $region187: #{pose_gat_forward.1} parent=135 // pred_region
          %1055 = dma.done [#allocation22], 16
        $region188: #{pose_gat_forward.1} parent=135 // pred_fallthru
          _
        // Predicated region
        $region189: #{pose_gat_forward.1} parent=135 // pred_check
          %p1056 = pneg %p679
        $region190: #{pose_gat_forward.1} parent=135 // pred_check_branch
          %1058 = sbr.rel (%p1056) target = $region192
        $region191: #{pose_gat_forward.1} parent=135 // pred_region
          %1060 = dma.done [#allocation25], 256
        $region192: #{pose_gat_forward.1} parent=135 // pred_fallthru
          _
        %p1061 = scmp.lt.s32.totalorder %s81, 1
        %s1062 = scalar_select %p1061, %s81, 1
        %s1063 = smul.addr %s1062, 2
        %s1064 = smul.addr %s1063, 8
        %s1065 = scalar_lea.vmem %s1, %s1064
        %p1066 = pneg %p102
        %p1067 = pneg %p99
        %p1068 = scmp.lt.s32.totalorder %s81, 1
        %s1069 = scalar_select %p1068, %s81, 1
        %s1070 = smul.addr %s1069, 2
        %s1071 = smul.addr %s1070, 8
        %s1072 = scalar_lea.vmem %s3, %s1071
        %p1073 = pneg %p128
        %p1074 = pneg %p125
        %p1075 = scmp.lt.s32.totalorder %s81, 1
        %s1076 = scalar_select %p1075, %s81, 1
        %s1077 = smul.addr %s1076, 2
        %s1078 = scalar_lea.vmem %s5, %s1077
        %p1079 = pneg %p154
        %p1080 = pneg %p151
        %p1081 = pneg %p175
        %p1082 = pneg %p172
        %p1083 = pneg %p196
        %p1084 = pneg %p193
        %p1085 = pneg %p217
        %p1086 = pneg %p214
        %p1087 = pneg %p238
        %p1088 = pneg %p235
        %p1089 = pneg %p259
        %p1090 = pneg %p256
        %p1091 = pneg %p280
        %p1092 = pneg %p277
        %p1093 = pneg %p301
        %p1094 = pneg %p298
        %p1095 = pneg %p322
        %p1096 = pneg %p319
        %p1097 = pneg %p343
        %p1098 = pneg %p340
        %p1099 = pneg %p364
        %p1100 = pneg %p361
        %p1101 = pneg %p385
        %p1102 = pneg %p382
        %p1103 = pneg %p406
        %p1104 = pneg %p403
        %p1105 = pneg %p427
        %p1106 = pneg %p424
        %p1107 = pneg %p448
        %p1108 = pneg %p445
        %p1109 = pneg %p469
        %p1110 = pneg %p466
        %p1111 = pneg %p490
        %p1112 = pneg %p487
        %p1113 = pneg %p511
        %p1114 = pneg %p508
        %p1115 = pneg %p532
        %p1116 = pneg %p529
        %p1117 = pneg %p553
        %p1118 = pneg %p550
        %p1119 = pneg %p574
        %p1120 = pneg %p571
        %p1121 = pneg %p595
        %p1122 = pneg %p592
        %p1123 = pneg %p616
        %p1124 = pneg %p613
        %p1125 = pneg %p637
        %p1126 = pneg %p634
        %p1127 = pneg %p658
        %p1128 = pneg %p655
        %p1129 = pneg %p679
        %p1130 = pneg %p676
        %p1131 = pneg %p700
        %p1132 = pneg %p697
        %p1133 = pneg %p726
        %p1134 = pneg %p723
        %s1135 = sand.u32 %s713, 1
        %s1136 = scalar_lea.sflag [#allocation5], %s1135
        %s1137 = sand.u32 %s713, 1
        %s1138 = smul.addr %s1137, 8
        %s1139 = scalar_lea.vmem [#allocation26], %s1138
        %p1140 = scmp.lt.s32.totalorder %s81, 1
        %s1141 = scalar_select %p1140, %s81, 1
        %s1142 = smul.addr %s1141, 2
        %s1143 = smul.addr %s1142, 8
        %s1144 = scalar_lea.vmem %s1, %s1143
        %p1145 = scmp.lt.s32.totalorder %s81, 1
        %s1146 = scalar_select %p1145, %s81, 1
        %s1147 = smul.addr %s1146, 2
        %s1148 = smul.addr %s1147, 8
        %s1149 = scalar_lea.vmem %s3, %s1148
        %p1150 = scmp.lt.s32.totalorder %s81, 1
        %s1151 = scalar_select %p1150, %s81, 1
        %s1152 = smul.addr %s1151, 2
        %s1153 = scalar_lea.vmem %s5, %s1152
        %v1155 = vld [vmem:[%s1144] sm:$0xff]
        %v1156 = vld [vmem:[%s1144 + $0x8] sm:$0xff]
        %v1157 = vld [vmem:[%s1153] sm:$0x1]
        %v1158 = vld [vmem:[%s1153 + $0x1] sm:$0x1]
        %v1159 = vld [vmem:[%s1149] sm:$0xff]
        %v1160 = vld [vmem:[%s1149 + $0x8] sm:$0xff]
        %v1161 = vld [vmem:[%s7] sm:$0x3]
        %v1162 = vld [vmem:[%s9] sm:$0x1]
        %v1163 = vpack.c.bf16 %v1160, %v1159
        %v1165 = vperm.slane %v1162, 0
        %vm1167 = vcmask 23552
        %v1169 = vsel %vm1167, %v1163, 0
        %vm1171 = vcmask 1040384
        %vm1172 = vcmask 1041408
        %v1173 = vsel %vm1171, 4294967295, 65535
        %v1174 = vsel %vm1172, %v1173, 0
        %v1176 = vand.u32 %v1161, %v1174
        %1178 = vmatpush.bf16.msra.mxu0 0
        %1179 = vmatpush.bf16.msra.mxu0 0
        %1180 = vmatpush.bf16.msra.mxu0 0
        %1181 = vmatpush.bf16.msra.mxu0 0
        %1182 = vmatpush.bf16.msra.mxu0 0
        %1183 = vmatpush.bf16.msra.mxu0 0
        %1184 = vmatpush.bf16.msra.mxu0 0
        %1185 = vmatpush.bf16.msra.mxu0 %v1176
        %1186 = vmatmul.bf16.gmra.mxu0 %v1169
        %v1187 = vpop.f32.mrf.mxu0
        %v1188 = vadd.f32 %v1165, %v1187
        %v1189 = vpop.f32.mrf.mxu0
        %v1190 = vadd.f32 %v1165, %v1189
        %1191 = vdwg.mxu0
        %v1192 = vmax.f32 %v1188, 0.0
        %v1193 = vmax.f32 %v1190, 0.0
        %v1194 = vld [vmem:[#allocation3] sm:$0xf]
        %v1195 = vld [vmem:[#allocation3 + $0x4] sm:$0xf]
        %v1196 = vld [vmem:[#allocation6] sm:$0x1]
        %v1197 = vpack.c.bf16 %v1193, %v1192
        %v1199 = vperm.slane %v1196, 0
        %v1203 = vunpack.c.l.b16 %v1194
        %v1204 = vunpack.c.l.b16 %v1195
        %v1205 = vpack.c.b16 %v1204, %v1203
        %vm1207 = vcmask 130048
        %v1209 = vsel %vm1207, %v1197, 0
        %1211 = vmatpush.bf16.msra.mxu0 0
        %1212 = vmatpush.bf16.msra.mxu0 0
        %1213 = vmatpush.bf16.msra.mxu0 0
        %1214 = vmatpush.bf16.msra.mxu0 0
        %1215 = vmatpush.bf16.msra.mxu0 0
        %1216 = vmatpush.bf16.msra.mxu0 0
        %1217 = vmatpush.bf16.msra.mxu0 0
        %1218 = vmatpush.bf16.msra.mxu0 %v1205
        %1219 = vmatmul.bf16.gmra.mxu0 %v1209
        %v1220 = vpop.f32.mrf.mxu0
        %v1221 = vadd.f32 %v1199, %v1220
        %v1222 = vpop.f32.mrf.mxu0
        %v1223 = vadd.f32 %v1199, %v1222
        %1224 = vdwg.mxu0
        %v1225 = vmax.f32 %v1221, 0.0
        %v1226 = vmax.f32 %v1223, 0.0
        %v1227 = vld [vmem:[%s15] sm:$0xf]
        %v1228 = vld [vmem:[%s15 + $0x4] sm:$0xf]
        %v1229 = vld [vmem:[%s15 + $0x8] sm:$0xf]
        %v1230 = vld [vmem:[%s15 + $0xc] sm:$0xf]
        %v1231 = vld [vmem:[#allocation8] sm:$0x1]
        %v1232 = vpack.c.bf16 %v1226, %v1225
        %v1234 = vperm.slane %v1231, 0
        %v1240 = vunpack.c.l.b16 %v1227
        %v1241 = vunpack.c.l.b16 %v1228
        %v1242 = vunpack.c.l.b16 %v1229
        %v1243 = vunpack.c.l.b16 %v1230
        %v1244 = vpack.c.b16 %v1241, %v1240
        %v1245 = vpack.c.b16 %v1243, %v1242
        %vm1248 = vcmask 261120
        %v1250 = vsel %vm1248, %v1232, 0
        %1252 = vmatpush.bf16.msra.mxu0 0
        %1253 = vmatpush.bf16.msra.mxu0 0
        %1254 = vmatpush.bf16.msra.mxu0 0
        %1255 = vmatpush.bf16.msra.mxu0 0
        %1256 = vmatpush.bf16.msra.mxu0 0
        %1257 = vmatpush.bf16.msra.mxu0 0
        %1258 = vmatpush.bf16.msra.mxu0 %v1245
        %1259 = vmatpush.bf16.msra.mxu0 %v1244
        %1260 = vmatmul.bf16.gmra.mxu0 %v1250
        %v1261 = vpop.f32.mrf.mxu0
        %v1262 = vadd.f32 %v1234, %v1261
        %v1263 = vpop.f32.mrf.mxu0
        %v1264 = vadd.f32 %v1234, %v1263
        %1265 = vdwg.mxu0
        %v1266 = vadd.f32 %v1155, %v1262
        %v1267 = vadd.f32 %v1156, %v1264
        %v1268 = vpack.c.bf16 %v1267, %v1266
        %v1269 = vld [vmem:[%s19] sm:$0xf]
        %v1270 = vld [vmem:[%s19 + $0x4] sm:$0xf]
        %v1271 = vld [vmem:[%s19 + $0x8] sm:$0xf]
        %v1272 = vld [vmem:[%s19 + $0xc] sm:$0xf]
        %v1273 = vld [vmem:[#allocation9] sm:$0x1]
        %v1275 = vperm.slane %v1273, 0
        %v1281 = vunpack.c.l.b16 %v1269
        %v1282 = vunpack.c.l.b16 %v1270
        %v1283 = vunpack.c.l.b16 %v1271
        %v1284 = vunpack.c.l.b16 %v1272
        %v1285 = vpack.c.b16 %v1282, %v1281
        %v1286 = vpack.c.b16 %v1284, %v1283
        %v1290 = vsel %vm1248, %v1268, 0
        %1292 = vmatpush.bf16.msra.mxu0 0
        %1293 = vmatpush.bf16.msra.mxu0 0
        %1294 = vmatpush.bf16.msra.mxu0 0
        %1295 = vmatpush.bf16.msra.mxu0 0
        %1296 = vmatpush.bf16.msra.mxu0 0
        %1297 = vmatpush.bf16.msra.mxu0 0
        %1298 = vmatpush.bf16.msra.mxu0 %v1286
        %1299 = vmatpush.bf16.msra.mxu0 %v1285
        %1300 = vmatmul.bf16.gmra.mxu0 %v1290
        %v1301 = vpop.f32.mrf.mxu0
        %v1302 = vadd.f32 %v1275, %v1301
        %v1303 = vpop.f32.mrf.mxu0
        %v1304 = vadd.f32 %v1275, %v1303
        %1305 = vdwg.mxu0
        %v1306 = vmul.f32 %v1302, 0.35355338
        %v1307 = vmul.f32 %v1304, 0.35355338
        %v1308 = vpack.c.bf16 %v1306, %v1306
        %v1309 = vpack.c.bf16 %v1307, %v1307
        %v1310 = vpack.c.bf16 %v1302, %v1302
        %v1311 = vpack.c.bf16 %v1304, %v1304
        %v1313 = vperm.slane %v1157, 0
        %v1316 = vunpack.c.l.b16 %v1310
        %v1317 = vpack.c.b16 %v1316, %v1316
        %1318 = vrot.lane.b32.xlu0 %v1317, 96
        %v1319 = vpop.permute.xlu0 %1318
        %vm1320 = vcmask 64512
        %v1322 = vsel %vm1320, %v1308, 0
        %v1325 = vsel %vm1320, %v1319, 0
        %1327 = vmatpush.bf16.xpose.msra.mxu0 0
        %1328 = vmatpush.bf16.xpose.msra.mxu0 0
        %1329 = vmatpush.bf16.xpose.msra.mxu0 0
        %1330 = vmatpush.bf16.xpose.msra.mxu0 0
        %1331 = vmatpush.bf16.xpose.msra.mxu0 0
        %1332 = vmatpush.bf16.xpose.msra.mxu0 0
        %1333 = vmatpush.bf16.xpose.msra.mxu0 0
        %1334 = vmatpush.bf16.xpose.msra.mxu0 %v1325
        %1335 = vmatmul.bf16.gmra.mxu0 %v1322
        %v1336 = vpop.f32.mrf.mxu0
        %v1337 = vadd.f32 %v1313, %v1336
        %v1338 = vpop.f32.mrf.mxu0
        %1339 = vdwg.mxu0
        %v1340 = vsel %vm1320, %v1337, -inf
        %1341 = vmax.xlane.f32.xlu0 %v1340
        %v1342 = vpop.xlane.xlu0 %1341
        %v1343 = vsub.f32 %v1337, %v1342
        %v1344 = vmul.f32 %v1343, 1.442695
        %v1345 = vpow.pop %v1344
        %v1346 = vsel %vm1320, %v1345, 0.0
        %1347 = vadd.xlane.f32.xlu0 %v1346
        %v1348 = vpop.xlane.xlu0 %1347
        %v1349 = vrcp.pop %v1348
        %v1350 = vmul.f32 %v1345, %v1349
        %v1351 = vpack.c.bf16 %v1350, %v1350
        %1352 = vrot.lane.b32.xlu0 %v1317, 64
        %v1353 = vpop.permute.xlu0 %1352
        %v1355 = vsel %vm1320, %v1351, 0
        %vm1357 = vcmask 1043456
        %v1359 = vsel %vm1357, %v1353, 0
        %1361 = vmatpush.bf16.msra.mxu0 0
        %1362 = vmatpush.bf16.msra.mxu0 0
        %1363 = vmatpush.bf16.msra.mxu0 0
        %1364 = vmatpush.bf16.msra.mxu0 0
        %1365 = vmatpush.bf16.msra.mxu0 0
        %1366 = vmatpush.bf16.msra.mxu0 0
        %1367 = vmatpush.bf16.msra.mxu0 0
        %1368 = vmatpush.bf16.msra.mxu0 %v1359
        %1369 = vmatmul.bf16.gmra.mxu0 %v1355
        %v1370 = vpop.f32.mrf.mxu0
        %v1371 = vadd.f32 0.0, %v1370
        %v1372 = vpop.f32.mrf.mxu0
        %1373 = vdwg.mxu0
        %v1374 = vpack.c.bf16 %v1371, %v1371
        %vm1375 = vcmask 60416
        %1376 = vst.msk [vmem:[#allocation2] sm:$0xf] %vm1375, %v1374
        %v1378 = vunpack.c.l.b16 %v1308
        %v1379 = vpack.c.b16 %v1378, %v1378
        %1380 = vrot.lane.b32.xlu0 %v1379, 120
        %v1381 = vpop.permute.xlu0 %1380
        %1382 = vrot.lane.b32.xlu0 %v1317, 88
        %v1383 = vpop.permute.xlu0 %1382
        %v1385 = vsel %vm1320, %v1381, 0
        %v1388 = vsel %vm1320, %v1383, 0
        %1390 = vmatpush.bf16.xpose.msra.mxu0 0
        %1391 = vmatpush.bf16.xpose.msra.mxu0 0
        %1392 = vmatpush.bf16.xpose.msra.mxu0 0
        %1393 = vmatpush.bf16.xpose.msra.mxu0 0
        %1394 = vmatpush.bf16.xpose.msra.mxu0 0
        %1395 = vmatpush.bf16.xpose.msra.mxu0 0
        %1396 = vmatpush.bf16.xpose.msra.mxu0 0
        %1397 = vmatpush.bf16.xpose.msra.mxu0 %v1388
        %1398 = vmatmul.bf16.gmra.mxu0 %v1385
        %v1399 = vpop.f32.mrf.mxu0
        %v1400 = vadd.f32 %v1313, %v1399
        %v1401 = vpop.f32.mrf.mxu0
        %1402 = vdwg.mxu0
        %v1403 = vsel %vm1320, %v1400, -inf
        %1404 = vmax.xlane.f32.xlu0 %v1403
        %v1405 = vpop.xlane.xlu0 %1404
        %v1406 = vsub.f32 %v1400, %v1405
        %v1407 = vmul.f32 %v1406, 1.442695
        %v1408 = vpow.pop %v1407
        %v1409 = vsel %vm1320, %v1408, 0.0
        %1410 = vadd.xlane.f32.xlu0 %v1409
        %v1411 = vpop.xlane.xlu0 %1410
        %v1412 = vrcp.pop %v1411
        %v1413 = vmul.f32 %v1408, %v1412
        %v1414 = vpack.c.bf16 %v1413, %v1413
        %1415 = vrot.lane.b32.xlu0 %v1317, 56
        %v1416 = vpop.permute.xlu0 %1415
        %v1418 = vsel %vm1320, %v1414, 0
        %v1421 = vsel %vm1357, %v1416, 0
        %1423 = vmatpush.bf16.msra.mxu0 0
        %1424 = vmatpush.bf16.msra.mxu0 0
        %1425 = vmatpush.bf16.msra.mxu0 0
        %1426 = vmatpush.bf16.msra.mxu0 0
        %1427 = vmatpush.bf16.msra.mxu0 0
        %1428 = vmatpush.bf16.msra.mxu0 0
        %1429 = vmatpush.bf16.msra.mxu0 0
        %1430 = vmatpush.bf16.msra.mxu0 %v1421
        %1431 = vmatmul.bf16.gmra.mxu0 %v1418
        %v1432 = vpop.f32.mrf.mxu0
        %v1433 = vadd.f32 0.0, %v1432
        %v1434 = vpop.f32.mrf.mxu0
        %1435 = vdwg.mxu0
        %v1436 = vpack.c.bf16 %v1433, %v1433
        %1438 = vrot.lane.b32.xlu0 %v1436, 8
        %v1439 = vpop.permute.xlu0 %1438
        %vm1441 = vcmask 126016
        %1442 = vst.msk [vmem:[#allocation2] sm:$0xf] %vm1441, %v1439
        %1443 = vrot.lane.b32.xlu0 %v1379, 112
        %v1444 = vpop.permute.xlu0 %1443
        %1445 = vrot.lane.b32.xlu0 %v1317, 80
        %v1446 = vpop.permute.xlu0 %1445
        %v1448 = vsel %vm1320, %v1444, 0
        %v1451 = vsel %vm1320, %v1446, 0
        %1453 = vmatpush.bf16.xpose.msra.mxu0 0
        %1454 = vmatpush.bf16.xpose.msra.mxu0 0
        %1455 = vmatpush.bf16.xpose.msra.mxu0 0
        %1456 = vmatpush.bf16.xpose.msra.mxu0 0
        %1457 = vmatpush.bf16.xpose.msra.mxu0 0
        %1458 = vmatpush.bf16.xpose.msra.mxu0 0
        %1459 = vmatpush.bf16.xpose.msra.mxu0 0
        %1460 = vmatpush.bf16.xpose.msra.mxu0 %v1451
        %1461 = vmatmul.bf16.gmra.mxu0 %v1448
        %v1462 = vpop.f32.mrf.mxu0
        %v1463 = vadd.f32 %v1313, %v1462
        %v1464 = vpop.f32.mrf.mxu0
        %1465 = vdwg.mxu0
        %v1466 = vsel %vm1320, %v1463, -inf
        %1467 = vmax.xlane.f32.xlu0 %v1466
        %v1468 = vpop.xlane.xlu0 %1467
        %v1469 = vsub.f32 %v1463, %v1468
        %v1470 = vmul.f32 %v1469, 1.442695
        %v1471 = vpow.pop %v1470
        %v1472 = vsel %vm1320, %v1471, 0.0
        %1473 = vadd.xlane.f32.xlu0 %v1472
        %v1474 = vpop.xlane.xlu0 %1473
        %v1475 = vrcp.pop %v1474
        %v1476 = vmul.f32 %v1471, %v1475
        %v1477 = vpack.c.bf16 %v1476, %v1476
        %1478 = vrot.lane.b32.xlu0 %v1317, 48
        %v1479 = vpop.permute.xlu0 %1478
        %v1481 = vsel %vm1320, %v1477, 0
        %v1484 = vsel %vm1357, %v1479, 0
        %1486 = vmatpush.bf16.msra.mxu0 0
        %1487 = vmatpush.bf16.msra.mxu0 0
        %1488 = vmatpush.bf16.msra.mxu0 0
        %1489 = vmatpush.bf16.msra.mxu0 0
        %1490 = vmatpush.bf16.msra.mxu0 0
        %1491 = vmatpush.bf16.msra.mxu0 0
        %1492 = vmatpush.bf16.msra.mxu0 0
        %1493 = vmatpush.bf16.msra.mxu0 %v1484
        %1494 = vmatmul.bf16.gmra.mxu0 %v1481
        %v1495 = vpop.f32.mrf.mxu0
        %v1496 = vadd.f32 0.0, %v1495
        %v1497 = vpop.f32.mrf.mxu0
        %1498 = vdwg.mxu0
        %v1499 = vpack.c.bf16 %v1496, %v1496
        %1501 = vrot.lane.b32.xlu0 %v1499, 16
        %v1502 = vpop.permute.xlu0 %1501
        %vm1504 = vcmask 191616
        %1505 = vst.msk [vmem:[#allocation2] sm:$0xf] %vm1504, %v1502
        %1506 = vrot.lane.b32.xlu0 %v1379, 104
        %v1507 = vpop.permute.xlu0 %1506
        %1508 = vrot.lane.b32.xlu0 %v1317, 72
        %v1509 = vpop.permute.xlu0 %1508
        %v1511 = vsel %vm1320, %v1507, 0
        %v1514 = vsel %vm1320, %v1509, 0
        %1516 = vmatpush.bf16.xpose.msra.mxu0 0
        %1517 = vmatpush.bf16.xpose.msra.mxu0 0
        %1518 = vmatpush.bf16.xpose.msra.mxu0 0
        %1519 = vmatpush.bf16.xpose.msra.mxu0 0
        %1520 = vmatpush.bf16.xpose.msra.mxu0 0
        %1521 = vmatpush.bf16.xpose.msra.mxu0 0
        %1522 = vmatpush.bf16.xpose.msra.mxu0 0
        %1523 = vmatpush.bf16.xpose.msra.mxu0 %v1514
        %1524 = vmatmul.bf16.gmra.mxu0 %v1511
        %v1525 = vpop.f32.mrf.mxu0
        %v1526 = vadd.f32 %v1313, %v1525
        %v1527 = vpop.f32.mrf.mxu0
        %1528 = vdwg.mxu0
        %v1529 = vsel %vm1320, %v1526, -inf
        %1530 = vmax.xlane.f32.xlu0 %v1529
        %v1531 = vpop.xlane.xlu0 %1530
        %v1532 = vsub.f32 %v1526, %v1531
        %v1533 = vmul.f32 %v1532, 1.442695
        %v1534 = vpow.pop %v1533
        %v1535 = vsel %vm1320, %v1534, 0.0
        %1536 = vadd.xlane.f32.xlu0 %v1535
        %v1537 = vpop.xlane.xlu0 %1536
        %v1538 = vrcp.pop %v1537
        %v1539 = vmul.f32 %v1534, %v1538
        %v1540 = vpack.c.bf16 %v1539, %v1539
        %1541 = vrot.lane.b32.xlu0 %v1317, 40
        %v1542 = vpop.permute.xlu0 %1541
        %v1544 = vsel %vm1320, %v1540, 0
        %v1547 = vsel %vm1357, %v1542, 0
        %1549 = vmatpush.bf16.msra.mxu0 0
        %1550 = vmatpush.bf16.msra.mxu0 0
        %1551 = vmatpush.bf16.msra.mxu0 0
        %1552 = vmatpush.bf16.msra.mxu0 0
        %1553 = vmatpush.bf16.msra.mxu0 0
        %1554 = vmatpush.bf16.msra.mxu0 0
        %1555 = vmatpush.bf16.msra.mxu0 0
        %1556 = vmatpush.bf16.msra.mxu0 %v1547
        %1557 = vmatmul.bf16.gmra.mxu0 %v1544
        %v1558 = vpop.f32.mrf.mxu0
        %v1559 = vadd.f32 0.0, %v1558
        %v1560 = vpop.f32.mrf.mxu0
        %1561 = vdwg.mxu0
        %v1562 = vpack.c.bf16 %v1559, %v1559
        %1564 = vrot.lane.b32.xlu0 %v1562, 24
        %v1565 = vpop.permute.xlu0 %1564
        %vm1567 = vcmask 257216
        %1568 = vst.msk [vmem:[#allocation2] sm:$0xf] %vm1567, %v1565
        %v1570 = vperm.slane %v1158, 0
        %v1573 = vunpack.c.l.b16 %v1311
        %v1574 = vpack.c.b16 %v1573, %v1573
        %1575 = vrot.lane.b32.xlu0 %v1574, 96
        %v1576 = vpop.permute.xlu0 %1575
        %v1578 = vsel %vm1320, %v1309, 0
        %v1581 = vsel %vm1320, %v1576, 0
        %1583 = vmatpush.bf16.xpose.msra.mxu0 0
        %1584 = vmatpush.bf16.xpose.msra.mxu0 0
        %1585 = vmatpush.bf16.xpose.msra.mxu0 0
        %1586 = vmatpush.bf16.xpose.msra.mxu0 0
        %1587 = vmatpush.bf16.xpose.msra.mxu0 0
        %1588 = vmatpush.bf16.xpose.msra.mxu0 0
        %1589 = vmatpush.bf16.xpose.msra.mxu0 0
        %1590 = vmatpush.bf16.xpose.msra.mxu0 %v1581
        %1591 = vmatmul.bf16.gmra.mxu0 %v1578
        %v1592 = vpop.f32.mrf.mxu0
        %v1593 = vadd.f32 %v1570, %v1592
        %v1594 = vpop.f32.mrf.mxu0
        %1595 = vdwg.mxu0
        %v1596 = vsel %vm1320, %v1593, -inf
        %1597 = vmax.xlane.f32.xlu0 %v1596
        %v1598 = vpop.xlane.xlu0 %1597
        %v1599 = vsub.f32 %v1593, %v1598
        %v1600 = vmul.f32 %v1599, 1.442695
        %v1601 = vpow.pop %v1600
        %v1602 = vsel %vm1320, %v1601, 0.0
        %1603 = vadd.xlane.f32.xlu0 %v1602
        %v1604 = vpop.xlane.xlu0 %1603
        %v1605 = vrcp.pop %v1604
        %v1606 = vmul.f32 %v1601, %v1605
        %v1607 = vpack.c.bf16 %v1606, %v1606
        %1608 = vrot.lane.b32.xlu0 %v1574, 64
        %v1609 = vpop.permute.xlu0 %1608
        %v1611 = vsel %vm1320, %v1607, 0
        %v1614 = vsel %vm1357, %v1609, 0
        %1616 = vmatpush.bf16.msra.mxu0 0
        %1617 = vmatpush.bf16.msra.mxu0 0
        %1618 = vmatpush.bf16.msra.mxu0 0
        %1619 = vmatpush.bf16.msra.mxu0 0
        %1620 = vmatpush.bf16.msra.mxu0 0
        %1621 = vmatpush.bf16.msra.mxu0 0
        %1622 = vmatpush.bf16.msra.mxu0 0
        %1623 = vmatpush.bf16.msra.mxu0 %v1614
        %1624 = vmatmul.bf16.gmra.mxu0 %v1611
        %v1625 = vpop.f32.mrf.mxu0
        %v1626 = vadd.f32 0.0, %v1625
        %v1627 = vpop.f32.mrf.mxu0
        %1628 = vdwg.mxu0
        %v1629 = vpack.c.bf16 %v1626, %v1626
        %1630 = vst.msk [vmem:[#allocation2 + $0x4] sm:$0xf] %vm1375, %v1629
        %v1632 = vunpack.c.l.b16 %v1309
        %v1633 = vpack.c.b16 %v1632, %v1632
        %1634 = vrot.lane.b32.xlu0 %v1633, 120
        %v1635 = vpop.permute.xlu0 %1634
        %1636 = vrot.lane.b32.xlu0 %v1574, 88
        %v1637 = vpop.permute.xlu0 %1636
        %v1639 = vsel %vm1320, %v1635, 0
        %v1642 = vsel %vm1320, %v1637, 0
        %1644 = vmatpush.bf16.xpose.msra.mxu0 0
        %1645 = vmatpush.bf16.xpose.msra.mxu0 0
        %1646 = vmatpush.bf16.xpose.msra.mxu0 0
        %1647 = vmatpush.bf16.xpose.msra.mxu0 0
        %1648 = vmatpush.bf16.xpose.msra.mxu0 0
        %1649 = vmatpush.bf16.xpose.msra.mxu0 0
        %1650 = vmatpush.bf16.xpose.msra.mxu0 0
        %1651 = vmatpush.bf16.xpose.msra.mxu0 %v1642
        %1652 = vmatmul.bf16.gmra.mxu0 %v1639
        %v1653 = vpop.f32.mrf.mxu0
        %v1654 = vadd.f32 %v1570, %v1653
        %v1655 = vpop.f32.mrf.mxu0
        %1656 = vdwg.mxu0
        %v1657 = vsel %vm1320, %v1654, -inf
        %1658 = vmax.xlane.f32.xlu0 %v1657
        %v1659 = vpop.xlane.xlu0 %1658
        %v1660 = vsub.f32 %v1654, %v1659
        %v1661 = vmul.f32 %v1660, 1.442695
        %v1662 = vpow.pop %v1661
        %v1663 = vsel %vm1320, %v1662, 0.0
        %1664 = vadd.xlane.f32.xlu0 %v1663
        %v1665 = vpop.xlane.xlu0 %1664
        %v1666 = vrcp.pop %v1665
        %v1667 = vmul.f32 %v1662, %v1666
        %v1668 = vpack.c.bf16 %v1667, %v1667
        %1669 = vrot.lane.b32.xlu0 %v1574, 56
        %v1670 = vpop.permute.xlu0 %1669
        %v1672 = vsel %vm1320, %v1668, 0
        %v1675 = vsel %vm1357, %v1670, 0
        %1677 = vmatpush.bf16.msra.mxu0 0
        %1678 = vmatpush.bf16.msra.mxu0 0
        %1679 = vmatpush.bf16.msra.mxu0 0
        %1680 = vmatpush.bf16.msra.mxu0 0
        %1681 = vmatpush.bf16.msra.mxu0 0
        %1682 = vmatpush.bf16.msra.mxu0 0
        %1683 = vmatpush.bf16.msra.mxu0 0
        %1684 = vmatpush.bf16.msra.mxu0 %v1675
        %1685 = vmatmul.bf16.gmra.mxu0 %v1672
        %v1686 = vpop.f32.mrf.mxu0
        %v1687 = vadd.f32 0.0, %v1686
        %v1688 = vpop.f32.mrf.mxu0
        %1689 = vdwg.mxu0
        %v1690 = vpack.c.bf16 %v1687, %v1687
        %1692 = vrot.lane.b32.xlu0 %v1690, 8
        %v1693 = vpop.permute.xlu0 %1692
        %1695 = vst.msk [vmem:[#allocation2 + $0x4] sm:$0xf] %vm1441, %v1693
        %1696 = vrot.lane.b32.xlu0 %v1633, 112
        %v1697 = vpop.permute.xlu0 %1696
        %1698 = vrot.lane.b32.xlu0 %v1574, 80
        %v1699 = vpop.permute.xlu0 %1698
        %v1701 = vsel %vm1320, %v1697, 0
        %v1704 = vsel %vm1320, %v1699, 0
        %1706 = vmatpush.bf16.xpose.msra.mxu0 0
        %1707 = vmatpush.bf16.xpose.msra.mxu0 0
        %1708 = vmatpush.bf16.xpose.msra.mxu0 0
        %1709 = vmatpush.bf16.xpose.msra.mxu0 0
        %1710 = vmatpush.bf16.xpose.msra.mxu0 0
        %1711 = vmatpush.bf16.xpose.msra.mxu0 0
        %1712 = vmatpush.bf16.xpose.msra.mxu0 0
        %1713 = vmatpush.bf16.xpose.msra.mxu0 %v1704
        %1714 = vmatmul.bf16.gmra.mxu0 %v1701
        %v1715 = vpop.f32.mrf.mxu0
        %v1716 = vadd.f32 %v1570, %v1715
        %v1717 = vpop.f32.mrf.mxu0
        %1718 = vdwg.mxu0
        %v1719 = vsel %vm1320, %v1716, -inf
        %1720 = vmax.xlane.f32.xlu0 %v1719
        %v1721 = vpop.xlane.xlu0 %1720
        %v1722 = vsub.f32 %v1716, %v1721
        %v1723 = vmul.f32 %v1722, 1.442695
        %v1724 = vpow.pop %v1723
        %v1725 = vsel %vm1320, %v1724, 0.0
        %1726 = vadd.xlane.f32.xlu0 %v1725
        %v1727 = vpop.xlane.xlu0 %1726
        %v1728 = vrcp.pop %v1727
        %v1729 = vmul.f32 %v1724, %v1728
        %v1730 = vpack.c.bf16 %v1729, %v1729
        %1731 = vrot.lane.b32.xlu0 %v1574, 48
        %v1732 = vpop.permute.xlu0 %1731
        %v1734 = vsel %vm1320, %v1730, 0
        %v1737 = vsel %vm1357, %v1732, 0
        %1739 = vmatpush.bf16.msra.mxu0 0
        %1740 = vmatpush.bf16.msra.mxu0 0
        %1741 = vmatpush.bf16.msra.mxu0 0
        %1742 = vmatpush.bf16.msra.mxu0 0
        %1743 = vmatpush.bf16.msra.mxu0 0
        %1744 = vmatpush.bf16.msra.mxu0 0
        %1745 = vmatpush.bf16.msra.mxu0 0
        %1746 = vmatpush.bf16.msra.mxu0 %v1737
        %1747 = vmatmul.bf16.gmra.mxu0 %v1734
        %v1748 = vpop.f32.mrf.mxu0
        %v1749 = vadd.f32 0.0, %v1748
        %v1750 = vpop.f32.mrf.mxu0
        %1751 = vdwg.mxu0
        %v1752 = vpack.c.bf16 %v1749, %v1749
        %1754 = vrot.lane.b32.xlu0 %v1752, 16
        %v1755 = vpop.permute.xlu0 %1754
        %1757 = vst.msk [vmem:[#allocation2 + $0x4] sm:$0xf] %vm1504, %v1755
        %1758 = vrot.lane.b32.xlu0 %v1633, 104
        %v1759 = vpop.permute.xlu0 %1758
        %1760 = vrot.lane.b32.xlu0 %v1574, 72
        %v1761 = vpop.permute.xlu0 %1760
        %v1763 = vsel %vm1320, %v1759, 0
        %v1766 = vsel %vm1320, %v1761, 0
        %1768 = vmatpush.bf16.xpose.msra.mxu0 0
        %1769 = vmatpush.bf16.xpose.msra.mxu0 0
        %1770 = vmatpush.bf16.xpose.msra.mxu0 0
        %1771 = vmatpush.bf16.xpose.msra.mxu0 0
        %1772 = vmatpush.bf16.xpose.msra.mxu0 0
        %1773 = vmatpush.bf16.xpose.msra.mxu0 0
        %1774 = vmatpush.bf16.xpose.msra.mxu0 0
        %1775 = vmatpush.bf16.xpose.msra.mxu0 %v1766
        %1776 = vmatmul.bf16.gmra.mxu0 %v1763
        %v1777 = vpop.f32.mrf.mxu0
        %v1778 = vadd.f32 %v1570, %v1777
        %v1779 = vpop.f32.mrf.mxu0
        %1780 = vdwg.mxu0
        %v1781 = vsel %vm1320, %v1778, -inf
        %1782 = vmax.xlane.f32.xlu0 %v1781
        %v1783 = vpop.xlane.xlu0 %1782
        %v1784 = vsub.f32 %v1778, %v1783
        %v1785 = vmul.f32 %v1784, 1.442695
        %v1786 = vpow.pop %v1785
        %v1787 = vsel %vm1320, %v1786, 0.0
        %1788 = vadd.xlane.f32.xlu0 %v1787
        %v1789 = vpop.xlane.xlu0 %1788
        %v1790 = vrcp.pop %v1789
        %v1791 = vmul.f32 %v1786, %v1790
        %v1792 = vpack.c.bf16 %v1791, %v1791
        %1793 = vrot.lane.b32.xlu0 %v1574, 40
        %v1794 = vpop.permute.xlu0 %1793
        %v1796 = vsel %vm1320, %v1792, 0
        %v1799 = vsel %vm1357, %v1794, 0
        %1801 = vmatpush.bf16.msra.mxu0 0
        %1802 = vmatpush.bf16.msra.mxu0 0
        %1803 = vmatpush.bf16.msra.mxu0 0
        %1804 = vmatpush.bf16.msra.mxu0 0
        %1805 = vmatpush.bf16.msra.mxu0 0
        %1806 = vmatpush.bf16.msra.mxu0 0
        %1807 = vmatpush.bf16.msra.mxu0 0
        %1808 = vmatpush.bf16.msra.mxu0 %v1799
        %1809 = vmatmul.bf16.gmra.mxu0 %v1796
        %v1810 = vpop.f32.mrf.mxu0
        %v1811 = vadd.f32 0.0, %v1810
        %v1812 = vpop.f32.mrf.mxu0
        %1813 = vdwg.mxu0
        %v1814 = vpack.c.bf16 %v1811, %v1811
        %1816 = vrot.lane.b32.xlu0 %v1814, 24
        %v1817 = vpop.permute.xlu0 %1816
        %1819 = vst.msk [vmem:[#allocation2 + $0x4] sm:$0xf] %vm1567, %v1817
        %v1820 = vld [vmem:[#allocation2] sm:$0xf]
        %v1821 = vld [vmem:[#allocation2 + $0x4] sm:$0xf]
        %v1822 = vld [vmem:[%s23] sm:$0xf]
        %v1823 = vld [vmem:[%s23 + $0x4] sm:$0xf]
        %v1824 = vld [vmem:[%s23 + $0x8] sm:$0xf]
        %v1825 = vld [vmem:[%s23 + $0xc] sm:$0xf]
        %v1826 = vld [vmem:[#allocation11] sm:$0x1]
        %v1828 = vperm.slane %v1826, 0
        %v1832 = vunpack.c.l.b16 %v1820
        %v1833 = vunpack.c.l.b16 %v1821
        %v1834 = vpack.c.b16 %v1833, %v1832
        %v1839 = vunpack.c.l.b16 %v1822
        %v1840 = vunpack.c.l.b16 %v1823
        %v1841 = vunpack.c.l.b16 %v1824
        %v1842 = vunpack.c.l.b16 %v1825
        %v1843 = vpack.c.b16 %v1840, %v1839
        %v1844 = vpack.c.b16 %v1842, %v1841
        %v1848 = vsel %vm1248, %v1834, 0
        %1850 = vmatpush.bf16.msra.mxu0 0
        %1851 = vmatpush.bf16.msra.mxu0 0
        %1852 = vmatpush.bf16.msra.mxu0 0
        %1853 = vmatpush.bf16.msra.mxu0 0
        %1854 = vmatpush.bf16.msra.mxu0 0
        %1855 = vmatpush.bf16.msra.mxu0 0
        %1856 = vmatpush.bf16.msra.mxu0 %v1844
        %1857 = vmatpush.bf16.msra.mxu0 %v1843
        %1858 = vmatmul.bf16.gmra.mxu0 %v1848
        %v1859 = vpop.f32.mrf.mxu0
        %v1860 = vadd.f32 %v1828, %v1859
        %v1861 = vpop.f32.mrf.mxu0
        %v1862 = vadd.f32 %v1828, %v1861
        %1863 = vdwg.mxu0
        %v1864 = vld [vmem:[%s27] sm:$0xf]
        %v1865 = vld [vmem:[%s27 + $0x4] sm:$0xf]
        %v1866 = vld [vmem:[%s27 + $0x8] sm:$0xf]
        %v1867 = vld [vmem:[%s27 + $0xc] sm:$0xf]
        %v1868 = vpack.c.bf16 %v1862, %v1860
        %v1869 = vld [vmem:[%s29] sm:$0xf]
        %v1870 = vld [vmem:[%s29 + $0x4] sm:$0xf]
        %v1871 = vld [vmem:[%s29 + $0x8] sm:$0xf]
        %v1872 = vld [vmem:[%s29 + $0xc] sm:$0xf]
        %v1877 = vunpack.c.l.b16 %v1869
        %v1878 = vunpack.c.l.b16 %v1870
        %v1879 = vunpack.c.l.b16 %v1871
        %v1880 = vunpack.c.l.b16 %v1872
        %v1881 = vpack.c.b16 %v1878, %v1877
        %v1882 = vpack.c.b16 %v1880, %v1879
        %v1886 = vsel %vm1248, %v1868, 0
        %1888 = vmatpush.bf16.msra.mxu0 0
        %1889 = vmatpush.bf16.msra.mxu0 0
        %1890 = vmatpush.bf16.msra.mxu0 0
        %1891 = vmatpush.bf16.msra.mxu0 0
        %1892 = vmatpush.bf16.msra.mxu0 0
        %1893 = vmatpush.bf16.msra.mxu0 0
        %1894 = vmatpush.bf16.msra.mxu0 %v1882
        %1895 = vmatpush.bf16.msra.mxu0 %v1881
        %1896 = vmatmul.bf16.gmra.mxu0 %v1886
        %v1897 = vpop.f32.mrf.mxu0
        %v1898 = vadd.f32 0.0, %v1897
        %v1899 = vpop.f32.mrf.mxu0
        %v1900 = vadd.f32 0.0, %v1899
        %1901 = vdwg.mxu0
        %v1906 = vunpack.c.l.b16 %v1864
        %v1907 = vunpack.c.l.b16 %v1865
        %v1908 = vunpack.c.l.b16 %v1866
        %v1909 = vunpack.c.l.b16 %v1867
        %v1910 = vpack.c.b16 %v1907, %v1906
        %v1911 = vpack.c.b16 %v1909, %v1908
        %1914 = vmatpush.bf16.msra.mxu0 0
        %1915 = vmatpush.bf16.msra.mxu0 0
        %1916 = vmatpush.bf16.msra.mxu0 0
        %1917 = vmatpush.bf16.msra.mxu0 0
        %1918 = vmatpush.bf16.msra.mxu0 0
        %1919 = vmatpush.bf16.msra.mxu0 0
        %1920 = vmatpush.bf16.msra.mxu0 %v1911
        %1921 = vmatpush.bf16.msra.mxu0 %v1910
        %1922 = vmatmul.bf16.gmra.mxu0 %v1290
        %v1923 = vpop.f32.mrf.mxu0
        %v1924 = vadd.f32 %v1898, %v1923
        %v1925 = vpop.f32.mrf.mxu0
        %v1926 = vadd.f32 %v1900, %v1925
        %1927 = vdwg.mxu0
        %v1928 = vld [vmem:[#allocation12] sm:$0x1]
        %v1930 = vperm.slane %v1928, 0
        %v1932 = vadd.f32 %v1924, %v1930
        %v1933 = vadd.f32 %v1926, %v1930
        %v1934 = vmax.f32 %v1932, 0.0
        %v1935 = vmax.f32 %v1933, 0.0
        %v1936 = vpack.c.bf16 %v1935, %v1934
        %v1937 = vld [vmem:[%s33] sm:$0xf]
        %v1938 = vld [vmem:[%s33 + $0x4] sm:$0xf]
        %v1939 = vld [vmem:[%s33 + $0x8] sm:$0xf]
        %v1940 = vld [vmem:[%s33 + $0xc] sm:$0xf]
        %v1941 = vld [vmem:[%s33 + $0x10] sm:$0xf]
        %v1942 = vld [vmem:[%s33 + $0x14] sm:$0xf]
        %v1943 = vld [vmem:[%s33 + $0x18] sm:$0xf]
        %v1944 = vld [vmem:[%s33 + $0x1c] sm:$0xf]
        %v1945 = vld [vmem:[#allocation14] sm:$0x1]
        %v1947 = vperm.slane %v1945, 0
        %v1957 = vunpack.c.l.b16 %v1937
        %v1958 = vunpack.c.l.b16 %v1938
        %v1959 = vunpack.c.l.b16 %v1939
        %v1960 = vunpack.c.l.b16 %v1940
        %v1961 = vunpack.c.l.b16 %v1941
        %v1962 = vunpack.c.l.b16 %v1942
        %v1963 = vunpack.c.l.b16 %v1943
        %v1964 = vunpack.c.l.b16 %v1944
        %v1965 = vpack.c.b16 %v1958, %v1957
        %v1966 = vpack.c.b16 %v1960, %v1959
        %v1967 = vpack.c.b16 %v1962, %v1961
        %v1968 = vpack.c.b16 %v1964, %v1963
        %vm1973 = vcmask 523264
        %v1975 = vsel %vm1973, %v1936, 0
        %1977 = vmatpush.bf16.msra.mxu0 0
        %1978 = vmatpush.bf16.msra.mxu0 0
        %1979 = vmatpush.bf16.msra.mxu0 0
        %1980 = vmatpush.bf16.msra.mxu0 0
        %1981 = vmatpush.bf16.msra.mxu0 %v1968
        %1982 = vmatpush.bf16.msra.mxu0 %v1967
        %1983 = vmatpush.bf16.msra.mxu0 %v1966
        %1984 = vmatpush.bf16.msra.mxu0 %v1965
        %1985 = vmatmul.bf16.gmra.mxu0 %v1975
        %v1986 = vpop.f32.mrf.mxu0
        %v1987 = vadd.f32 %v1947, %v1986
        %v1988 = vpop.f32.mrf.mxu0
        %v1989 = vadd.f32 %v1947, %v1988
        %1990 = vdwg.mxu0
        %v1991 = vadd.f32 %v1266, %v1987
        %v1992 = vadd.f32 %v1267, %v1989
        %v1993 = vpack.c.bf16 %v1992, %v1991
        %v1994 = vld [vmem:[#allocation15] sm:$0xf]
        %v1995 = vld [vmem:[#allocation15 + $0x4] sm:$0xf]
        %v1996 = vld [vmem:[#allocation15 + $0x8] sm:$0xf]
        %v1997 = vld [vmem:[#allocation15 + $0xc] sm:$0xf]
        %v1998 = vld [vmem:[%s39] sm:$0x1]
        %v2000 = vperm.slane %v1998, 0
        %v2006 = vunpack.c.l.b16 %v1994
        %v2007 = vunpack.c.l.b16 %v1995
        %v2008 = vunpack.c.l.b16 %v1996
        %v2009 = vunpack.c.l.b16 %v1997
        %v2010 = vpack.c.b16 %v2007, %v2006
        %v2011 = vpack.c.b16 %v2009, %v2008
        %v2015 = vsel %vm1248, %v1993, 0
        %2017 = vmatpush.bf16.msra.mxu0 0
        %2018 = vmatpush.bf16.msra.mxu0 0
        %2019 = vmatpush.bf16.msra.mxu0 0
        %2020 = vmatpush.bf16.msra.mxu0 0
        %2021 = vmatpush.bf16.msra.mxu0 0
        %2022 = vmatpush.bf16.msra.mxu0 0
        %2023 = vmatpush.bf16.msra.mxu0 %v2011
        %2024 = vmatpush.bf16.msra.mxu0 %v2010
        %2025 = vmatmul.bf16.gmra.mxu0 %v2015
        %v2026 = vpop.f32.mrf.mxu0
        %v2027 = vadd.f32 %v2000, %v2026
        %v2028 = vpop.f32.mrf.mxu0
        %v2029 = vadd.f32 %v2000, %v2028
        %2030 = vdwg.mxu0
        %v2031 = vmul.f32 %v2027, 0.35355338
        %v2032 = vmul.f32 %v2029, 0.35355338
        %v2033 = vpack.c.bf16 %v2031, %v2031
        %v2034 = vpack.c.bf16 %v2032, %v2032
        %v2035 = vpack.c.bf16 %v2027, %v2027
        %v2036 = vpack.c.bf16 %v2029, %v2029
        %v2038 = vunpack.c.l.b16 %v2036
        %v2039 = vpack.c.b16 %v2038, %v2038
        %2040 = vrot.lane.b32.xlu0 %v2039, 96
        %v2041 = vpop.permute.xlu0 %2040
        %v2043 = vsel %vm1320, %v2033, 0
        %v2046 = vsel %vm1320, %v2041, 0
        %2048 = vmatpush.bf16.xpose.msra.mxu0 0
        %2049 = vmatpush.bf16.xpose.msra.mxu0 0
        %2050 = vmatpush.bf16.xpose.msra.mxu0 0
        %2051 = vmatpush.bf16.xpose.msra.mxu0 0
        %2052 = vmatpush.bf16.xpose.msra.mxu0 0
        %2053 = vmatpush.bf16.xpose.msra.mxu0 0
        %2054 = vmatpush.bf16.xpose.msra.mxu0 0
        %2055 = vmatpush.bf16.xpose.msra.mxu0 %v2046
        %2056 = vmatmul.bf16.gmra.mxu0 %v2043
        %v2057 = vpop.f32.mrf.mxu0
        %v2058 = vadd.f32 %v1570, %v2057
        %v2059 = vpop.f32.mrf.mxu0
        %2060 = vdwg.mxu0
        %v2061 = vsel %vm1320, %v2058, -inf
        %2062 = vmax.xlane.f32.xlu0 %v2061
        %v2063 = vpop.xlane.xlu0 %2062
        %v2064 = vsub.f32 %v2058, %v2063
        %v2065 = vmul.f32 %v2064, 1.442695
        %v2066 = vpow.pop %v2065
        %v2067 = vsel %vm1320, %v2066, 0.0
        %2068 = vadd.xlane.f32.xlu0 %v2067
        %v2069 = vpop.xlane.xlu0 %2068
        %v2070 = vrcp.pop %v2069
        %v2071 = vmul.f32 %v2066, %v2070
        %v2072 = vpack.c.bf16 %v2071, %v2071
        %2073 = vrot.lane.b32.xlu0 %v2039, 64
        %v2074 = vpop.permute.xlu0 %2073
        %v2076 = vsel %vm1320, %v2072, 0
        %v2079 = vsel %vm1357, %v2074, 0
        %2081 = vmatpush.bf16.msra.mxu0 0
        %2082 = vmatpush.bf16.msra.mxu0 0
        %2083 = vmatpush.bf16.msra.mxu0 0
        %2084 = vmatpush.bf16.msra.mxu0 0
        %2085 = vmatpush.bf16.msra.mxu0 0
        %2086 = vmatpush.bf16.msra.mxu0 0
        %2087 = vmatpush.bf16.msra.mxu0 0
        %2088 = vmatpush.bf16.msra.mxu0 %v2079
        %2089 = vmatmul.bf16.gmra.mxu0 %v2076
        %v2090 = vpop.f32.mrf.mxu0
        %v2091 = vadd.f32 0.0, %v2090
        %v2092 = vpop.f32.mrf.mxu0
        %2093 = vdwg.mxu0
        %v2094 = vpack.c.bf16 %v2091, %v2091
        %2095 = vst.msk [vmem:[#allocation2] sm:$0xf] %vm1375, %v2094
        %v2097 = vunpack.c.l.b16 %v2033
        %v2098 = vpack.c.b16 %v2097, %v2097
        %2099 = vrot.lane.b32.xlu0 %v2098, 120
        %v2100 = vpop.permute.xlu0 %2099
        %2101 = vrot.lane.b32.xlu0 %v2039, 88
        %v2102 = vpop.permute.xlu0 %2101
        %v2104 = vsel %vm1320, %v2100, 0
        %v2107 = vsel %vm1320, %v2102, 0
        %2109 = vmatpush.bf16.xpose.msra.mxu0 0
        %2110 = vmatpush.bf16.xpose.msra.mxu0 0
        %2111 = vmatpush.bf16.xpose.msra.mxu0 0
        %2112 = vmatpush.bf16.xpose.msra.mxu0 0
        %2113 = vmatpush.bf16.xpose.msra.mxu0 0
        %2114 = vmatpush.bf16.xpose.msra.mxu0 0
        %2115 = vmatpush.bf16.xpose.msra.mxu0 0
        %2116 = vmatpush.bf16.xpose.msra.mxu0 %v2107
        %2117 = vmatmul.bf16.gmra.mxu0 %v2104
        %v2118 = vpop.f32.mrf.mxu0
        %v2119 = vadd.f32 %v1570, %v2118
        %v2120 = vpop.f32.mrf.mxu0
        %2121 = vdwg.mxu0
        %v2122 = vsel %vm1320, %v2119, -inf
        %2123 = vmax.xlane.f32.xlu0 %v2122
        %v2124 = vpop.xlane.xlu0 %2123
        %v2125 = vsub.f32 %v2119, %v2124
        %v2126 = vmul.f32 %v2125, 1.442695
        %v2127 = vpow.pop %v2126
        %v2128 = vsel %vm1320, %v2127, 0.0
        %2129 = vadd.xlane.f32.xlu0 %v2128
        %v2130 = vpop.xlane.xlu0 %2129
        %v2131 = vrcp.pop %v2130
        %v2132 = vmul.f32 %v2127, %v2131
        %v2133 = vpack.c.bf16 %v2132, %v2132
        %2134 = vrot.lane.b32.xlu0 %v2039, 56
        %v2135 = vpop.permute.xlu0 %2134
        %v2137 = vsel %vm1320, %v2133, 0
        %v2140 = vsel %vm1357, %v2135, 0
        %2142 = vmatpush.bf16.msra.mxu0 0
        %2143 = vmatpush.bf16.msra.mxu0 0
        %2144 = vmatpush.bf16.msra.mxu0 0
        %2145 = vmatpush.bf16.msra.mxu0 0
        %2146 = vmatpush.bf16.msra.mxu0 0
        %2147 = vmatpush.bf16.msra.mxu0 0
        %2148 = vmatpush.bf16.msra.mxu0 0
        %2149 = vmatpush.bf16.msra.mxu0 %v2140
        %2150 = vmatmul.bf16.gmra.mxu0 %v2137
        %v2151 = vpop.f32.mrf.mxu0
        %v2152 = vadd.f32 0.0, %v2151
        %v2153 = vpop.f32.mrf.mxu0
        %2154 = vdwg.mxu0
        %v2155 = vpack.c.bf16 %v2152, %v2152
        %2157 = vrot.lane.b32.xlu0 %v2155, 8
        %v2158 = vpop.permute.xlu0 %2157
        %2160 = vst.msk [vmem:[#allocation2] sm:$0xf] %vm1441, %v2158
        %2161 = vrot.lane.b32.xlu0 %v2098, 112
        %v2162 = vpop.permute.xlu0 %2161
        %2163 = vrot.lane.b32.xlu0 %v2039, 80
        %v2164 = vpop.permute.xlu0 %2163
        %v2166 = vsel %vm1320, %v2162, 0
        %v2169 = vsel %vm1320, %v2164, 0
        %2171 = vmatpush.bf16.xpose.msra.mxu0 0
        %2172 = vmatpush.bf16.xpose.msra.mxu0 0
        %2173 = vmatpush.bf16.xpose.msra.mxu0 0
        %2174 = vmatpush.bf16.xpose.msra.mxu0 0
        %2175 = vmatpush.bf16.xpose.msra.mxu0 0
        %2176 = vmatpush.bf16.xpose.msra.mxu0 0
        %2177 = vmatpush.bf16.xpose.msra.mxu0 0
        %2178 = vmatpush.bf16.xpose.msra.mxu0 %v2169
        %2179 = vmatmul.bf16.gmra.mxu0 %v2166
        %v2180 = vpop.f32.mrf.mxu0
        %v2181 = vadd.f32 %v1570, %v2180
        %v2182 = vpop.f32.mrf.mxu0
        %2183 = vdwg.mxu0
        %v2184 = vsel %vm1320, %v2181, -inf
        %2185 = vmax.xlane.f32.xlu0 %v2184
        %v2186 = vpop.xlane.xlu0 %2185
        %v2187 = vsub.f32 %v2181, %v2186
        %v2188 = vmul.f32 %v2187, 1.442695
        %v2189 = vpow.pop %v2188
        %v2190 = vsel %vm1320, %v2189, 0.0
        %2191 = vadd.xlane.f32.xlu0 %v2190
        %v2192 = vpop.xlane.xlu0 %2191
        %v2193 = vrcp.pop %v2192
        %v2194 = vmul.f32 %v2189, %v2193
        %v2195 = vpack.c.bf16 %v2194, %v2194
        %2196 = vrot.lane.b32.xlu0 %v2039, 48
        %v2197 = vpop.permute.xlu0 %2196
        %v2199 = vsel %vm1320, %v2195, 0
        %v2202 = vsel %vm1357, %v2197, 0
        %2204 = vmatpush.bf16.msra.mxu0 0
        %2205 = vmatpush.bf16.msra.mxu0 0
        %2206 = vmatpush.bf16.msra.mxu0 0
        %2207 = vmatpush.bf16.msra.mxu0 0
        %2208 = vmatpush.bf16.msra.mxu0 0
        %2209 = vmatpush.bf16.msra.mxu0 0
        %2210 = vmatpush.bf16.msra.mxu0 0
        %2211 = vmatpush.bf16.msra.mxu0 %v2202
        %2212 = vmatmul.bf16.gmra.mxu0 %v2199
        %v2213 = vpop.f32.mrf.mxu0
        %v2214 = vadd.f32 0.0, %v2213
        %v2215 = vpop.f32.mrf.mxu0
        %2216 = vdwg.mxu0
        %v2217 = vpack.c.bf16 %v2214, %v2214
        %2219 = vrot.lane.b32.xlu0 %v2217, 16
        %v2220 = vpop.permute.xlu0 %2219
        %2222 = vst.msk [vmem:[#allocation2] sm:$0xf] %vm1504, %v2220
        %2223 = vrot.lane.b32.xlu0 %v2098, 104
        %v2224 = vpop.permute.xlu0 %2223
        %2225 = vrot.lane.b32.xlu0 %v2039, 72
        %v2226 = vpop.permute.xlu0 %2225
        %v2228 = vsel %vm1320, %v2224, 0
        %v2231 = vsel %vm1320, %v2226, 0
        %2233 = vmatpush.bf16.xpose.msra.mxu0 0
        %2234 = vmatpush.bf16.xpose.msra.mxu0 0
        %2235 = vmatpush.bf16.xpose.msra.mxu0 0
        %2236 = vmatpush.bf16.xpose.msra.mxu0 0
        %2237 = vmatpush.bf16.xpose.msra.mxu0 0
        %2238 = vmatpush.bf16.xpose.msra.mxu0 0
        %2239 = vmatpush.bf16.xpose.msra.mxu0 0
        %2240 = vmatpush.bf16.xpose.msra.mxu0 %v2231
        %2241 = vmatmul.bf16.gmra.mxu0 %v2228
        %v2242 = vpop.f32.mrf.mxu0
        %v2243 = vadd.f32 %v1570, %v2242
        %v2244 = vpop.f32.mrf.mxu0
        %2245 = vdwg.mxu0
        %v2246 = vsel %vm1320, %v2243, -inf
        %2247 = vmax.xlane.f32.xlu0 %v2246
        %v2248 = vpop.xlane.xlu0 %2247
        %v2249 = vsub.f32 %v2243, %v2248
        %v2250 = vmul.f32 %v2249, 1.442695
        %v2251 = vpow.pop %v2250
        %v2252 = vsel %vm1320, %v2251, 0.0
        %2253 = vadd.xlane.f32.xlu0 %v2252
        %v2254 = vpop.xlane.xlu0 %2253
        %v2255 = vrcp.pop %v2254
        %v2256 = vmul.f32 %v2251, %v2255
        %v2257 = vpack.c.bf16 %v2256, %v2256
        %2258 = vrot.lane.b32.xlu0 %v2039, 40
        %v2259 = vpop.permute.xlu0 %2258
        %v2261 = vsel %vm1320, %v2257, 0
        %v2264 = vsel %vm1357, %v2259, 0
        %2266 = vmatpush.bf16.msra.mxu0 0
        %2267 = vmatpush.bf16.msra.mxu0 0
        %2268 = vmatpush.bf16.msra.mxu0 0
        %2269 = vmatpush.bf16.msra.mxu0 0
        %2270 = vmatpush.bf16.msra.mxu0 0
        %2271 = vmatpush.bf16.msra.mxu0 0
        %2272 = vmatpush.bf16.msra.mxu0 0
        %2273 = vmatpush.bf16.msra.mxu0 %v2264
        %2274 = vmatmul.bf16.gmra.mxu0 %v2261
        %v2275 = vpop.f32.mrf.mxu0
        %v2276 = vadd.f32 0.0, %v2275
        %v2277 = vpop.f32.mrf.mxu0
        %2278 = vdwg.mxu0
        %v2279 = vpack.c.bf16 %v2276, %v2276
        %2281 = vrot.lane.b32.xlu0 %v2279, 24
        %v2282 = vpop.permute.xlu0 %2281
        %2284 = vst.msk [vmem:[#allocation2] sm:$0xf] %vm1567, %v2282
        %v2286 = vunpack.c.l.b16 %v2035
        %v2287 = vpack.c.b16 %v2286, %v2286
        %2288 = vrot.lane.b32.xlu0 %v2287, 96
        %v2289 = vpop.permute.xlu0 %2288
        %v2291 = vsel %vm1320, %v2034, 0
        %v2294 = vsel %vm1320, %v2289, 0
        %2296 = vmatpush.bf16.xpose.msra.mxu0 0
        %2297 = vmatpush.bf16.xpose.msra.mxu0 0
        %2298 = vmatpush.bf16.xpose.msra.mxu0 0
        %2299 = vmatpush.bf16.xpose.msra.mxu0 0
        %2300 = vmatpush.bf16.xpose.msra.mxu0 0
        %2301 = vmatpush.bf16.xpose.msra.mxu0 0
        %2302 = vmatpush.bf16.xpose.msra.mxu0 0
        %2303 = vmatpush.bf16.xpose.msra.mxu0 %v2294
        %2304 = vmatmul.bf16.gmra.mxu0 %v2291
        %v2305 = vpop.f32.mrf.mxu0
        %v2306 = vadd.f32 %v1313, %v2305
        %v2307 = vpop.f32.mrf.mxu0
        %2308 = vdwg.mxu0
        %v2309 = vsel %vm1320, %v2306, -inf
        %2310 = vmax.xlane.f32.xlu0 %v2309
        %v2311 = vpop.xlane.xlu0 %2310
        %v2312 = vsub.f32 %v2306, %v2311
        %v2313 = vmul.f32 %v2312, 1.442695
        %v2314 = vpow.pop %v2313
        %v2315 = vsel %vm1320, %v2314, 0.0
        %2316 = vadd.xlane.f32.xlu0 %v2315
        %v2317 = vpop.xlane.xlu0 %2316
        %v2318 = vrcp.pop %v2317
        %v2319 = vmul.f32 %v2314, %v2318
        %v2320 = vpack.c.bf16 %v2319, %v2319
        %2321 = vrot.lane.b32.xlu0 %v2287, 64
        %v2322 = vpop.permute.xlu0 %2321
        %v2324 = vsel %vm1320, %v2320, 0
        %v2327 = vsel %vm1357, %v2322, 0
        %2329 = vmatpush.bf16.msra.mxu0 0
        %2330 = vmatpush.bf16.msra.mxu0 0
        %2331 = vmatpush.bf16.msra.mxu0 0
        %2332 = vmatpush.bf16.msra.mxu0 0
        %2333 = vmatpush.bf16.msra.mxu0 0
        %2334 = vmatpush.bf16.msra.mxu0 0
        %2335 = vmatpush.bf16.msra.mxu0 0
        %2336 = vmatpush.bf16.msra.mxu0 %v2327
        %2337 = vmatmul.bf16.gmra.mxu0 %v2324
        %v2338 = vpop.f32.mrf.mxu0
        %v2339 = vadd.f32 0.0, %v2338
        %v2340 = vpop.f32.mrf.mxu0
        %2341 = vdwg.mxu0
        %v2342 = vpack.c.bf16 %v2339, %v2339
        %2343 = vst.msk [vmem:[#allocation2 + $0x4] sm:$0xf] %vm1375, %v2342
        %v2345 = vunpack.c.l.b16 %v2034
        %v2346 = vpack.c.b16 %v2345, %v2345
        %2347 = vrot.lane.b32.xlu0 %v2346, 120
        %v2348 = vpop.permute.xlu0 %2347
        %2349 = vrot.lane.b32.xlu0 %v2287, 88
        %v2350 = vpop.permute.xlu0 %2349
        %v2352 = vsel %vm1320, %v2348, 0
        %v2355 = vsel %vm1320, %v2350, 0
        %2357 = vmatpush.bf16.xpose.msra.mxu0 0
        %2358 = vmatpush.bf16.xpose.msra.mxu0 0
        %2359 = vmatpush.bf16.xpose.msra.mxu0 0
        %2360 = vmatpush.bf16.xpose.msra.mxu0 0
        %2361 = vmatpush.bf16.xpose.msra.mxu0 0
        %2362 = vmatpush.bf16.xpose.msra.mxu0 0
        %2363 = vmatpush.bf16.xpose.msra.mxu0 0
        %2364 = vmatpush.bf16.xpose.msra.mxu0 %v2355
        %2365 = vmatmul.bf16.gmra.mxu0 %v2352
        %v2366 = vpop.f32.mrf.mxu0
        %v2367 = vadd.f32 %v1313, %v2366
        %v2368 = vpop.f32.mrf.mxu0
        %2369 = vdwg.mxu0
        %v2370 = vsel %vm1320, %v2367, -inf
        %2371 = vmax.xlane.f32.xlu0 %v2370
        %v2372 = vpop.xlane.xlu0 %2371
        %v2373 = vsub.f32 %v2367, %v2372
        %v2374 = vmul.f32 %v2373, 1.442695
        %v2375 = vpow.pop %v2374
        %v2376 = vsel %vm1320, %v2375, 0.0
        %2377 = vadd.xlane.f32.xlu0 %v2376
        %v2378 = vpop.xlane.xlu0 %2377
        %v2379 = vrcp.pop %v2378
        %v2380 = vmul.f32 %v2375, %v2379
        %v2381 = vpack.c.bf16 %v2380, %v2380
        %2382 = vrot.lane.b32.xlu0 %v2287, 56
        %v2383 = vpop.permute.xlu0 %2382
        %v2385 = vsel %vm1320, %v2381, 0
        %v2388 = vsel %vm1357, %v2383, 0
        %2390 = vmatpush.bf16.msra.mxu0 0
        %2391 = vmatpush.bf16.msra.mxu0 0
        %2392 = vmatpush.bf16.msra.mxu0 0
        %2393 = vmatpush.bf16.msra.mxu0 0
        %2394 = vmatpush.bf16.msra.mxu0 0
        %2395 = vmatpush.bf16.msra.mxu0 0
        %2396 = vmatpush.bf16.msra.mxu0 0
        %2397 = vmatpush.bf16.msra.mxu0 %v2388
        %2398 = vmatmul.bf16.gmra.mxu0 %v2385
        %v2399 = vpop.f32.mrf.mxu0
        %v2400 = vadd.f32 0.0, %v2399
        %v2401 = vpop.f32.mrf.mxu0
        %2402 = vdwg.mxu0
        %v2403 = vpack.c.bf16 %v2400, %v2400
        %2405 = vrot.lane.b32.xlu0 %v2403, 8
        %v2406 = vpop.permute.xlu0 %2405
        %2408 = vst.msk [vmem:[#allocation2 + $0x4] sm:$0xf] %vm1441, %v2406
        %2409 = vrot.lane.b32.xlu0 %v2346, 112
        %v2410 = vpop.permute.xlu0 %2409
        %2411 = vrot.lane.b32.xlu0 %v2287, 80
        %v2412 = vpop.permute.xlu0 %2411
        %v2414 = vsel %vm1320, %v2410, 0
        %v2417 = vsel %vm1320, %v2412, 0
        %2419 = vmatpush.bf16.xpose.msra.mxu0 0
        %2420 = vmatpush.bf16.xpose.msra.mxu0 0
        %2421 = vmatpush.bf16.xpose.msra.mxu0 0
        %2422 = vmatpush.bf16.xpose.msra.mxu0 0
        %2423 = vmatpush.bf16.xpose.msra.mxu0 0
        %2424 = vmatpush.bf16.xpose.msra.mxu0 0
        %2425 = vmatpush.bf16.xpose.msra.mxu0 0
        %2426 = vmatpush.bf16.xpose.msra.mxu0 %v2417
        %2427 = vmatmul.bf16.gmra.mxu0 %v2414
        %v2428 = vpop.f32.mrf.mxu0
        %v2429 = vadd.f32 %v1313, %v2428
        %v2430 = vpop.f32.mrf.mxu0
        %2431 = vdwg.mxu0
        %v2432 = vsel %vm1320, %v2429, -inf
        %2433 = vmax.xlane.f32.xlu0 %v2432
        %v2434 = vpop.xlane.xlu0 %2433
        %v2435 = vsub.f32 %v2429, %v2434
        %v2436 = vmul.f32 %v2435, 1.442695
        %v2437 = vpow.pop %v2436
        %v2438 = vsel %vm1320, %v2437, 0.0
        %2439 = vadd.xlane.f32.xlu0 %v2438
        %v2440 = vpop.xlane.xlu0 %2439
        %v2441 = vrcp.pop %v2440
        %v2442 = vmul.f32 %v2437, %v2441
        %v2443 = vpack.c.bf16 %v2442, %v2442
        %2444 = vrot.lane.b32.xlu0 %v2287, 48
        %v2445 = vpop.permute.xlu0 %2444
        %v2447 = vsel %vm1320, %v2443, 0
        %v2450 = vsel %vm1357, %v2445, 0
        %2452 = vmatpush.bf16.msra.mxu0 0
        %2453 = vmatpush.bf16.msra.mxu0 0
        %2454 = vmatpush.bf16.msra.mxu0 0
        %2455 = vmatpush.bf16.msra.mxu0 0
        %2456 = vmatpush.bf16.msra.mxu0 0
        %2457 = vmatpush.bf16.msra.mxu0 0
        %2458 = vmatpush.bf16.msra.mxu0 0
        %2459 = vmatpush.bf16.msra.mxu0 %v2450
        %2460 = vmatmul.bf16.gmra.mxu0 %v2447
        %v2461 = vpop.f32.mrf.mxu0
        %v2462 = vadd.f32 0.0, %v2461
        %v2463 = vpop.f32.mrf.mxu0
        %2464 = vdwg.mxu0
        %v2465 = vpack.c.bf16 %v2462, %v2462
        %2467 = vrot.lane.b32.xlu0 %v2465, 16
        %v2468 = vpop.permute.xlu0 %2467
        %2470 = vst.msk [vmem:[#allocation2 + $0x4] sm:$0xf] %vm1504, %v2468
        %2471 = vrot.lane.b32.xlu0 %v2346, 104
        %v2472 = vpop.permute.xlu0 %2471
        %2473 = vrot.lane.b32.xlu0 %v2287, 72
        %v2474 = vpop.permute.xlu0 %2473
        %v2476 = vsel %vm1320, %v2472, 0
        %v2479 = vsel %vm1320, %v2474, 0
        %2481 = vmatpush.bf16.xpose.msra.mxu0 0
        %2482 = vmatpush.bf16.xpose.msra.mxu0 0
        %2483 = vmatpush.bf16.xpose.msra.mxu0 0
        %2484 = vmatpush.bf16.xpose.msra.mxu0 0
        %2485 = vmatpush.bf16.xpose.msra.mxu0 0
        %2486 = vmatpush.bf16.xpose.msra.mxu0 0
        %2487 = vmatpush.bf16.xpose.msra.mxu0 0
        %2488 = vmatpush.bf16.xpose.msra.mxu0 %v2479
        %2489 = vmatmul.bf16.gmra.mxu0 %v2476
        %v2490 = vpop.f32.mrf.mxu0
        %v2491 = vadd.f32 %v1313, %v2490
        %v2492 = vpop.f32.mrf.mxu0
        %2493 = vdwg.mxu0
        %v2494 = vsel %vm1320, %v2491, -inf
        %2495 = vmax.xlane.f32.xlu0 %v2494
        %v2496 = vpop.xlane.xlu0 %2495
        %v2497 = vsub.f32 %v2491, %v2496
        %v2498 = vmul.f32 %v2497, 1.442695
        %v2499 = vpow.pop %v2498
        %v2500 = vsel %vm1320, %v2499, 0.0
        %2501 = vadd.xlane.f32.xlu0 %v2500
        %v2502 = vpop.xlane.xlu0 %2501
        %v2503 = vrcp.pop %v2502
        %v2504 = vmul.f32 %v2499, %v2503
        %v2505 = vpack.c.bf16 %v2504, %v2504
        %2506 = vrot.lane.b32.xlu0 %v2287, 40
        %v2507 = vpop.permute.xlu0 %2506
        %v2509 = vsel %vm1320, %v2505, 0
        %v2512 = vsel %vm1357, %v2507, 0
        %2514 = vmatpush.bf16.msra.mxu0 0
        %2515 = vmatpush.bf16.msra.mxu0 0
        %2516 = vmatpush.bf16.msra.mxu0 0
        %2517 = vmatpush.bf16.msra.mxu0 0
        %2518 = vmatpush.bf16.msra.mxu0 0
        %2519 = vmatpush.bf16.msra.mxu0 0
        %2520 = vmatpush.bf16.msra.mxu0 0
        %2521 = vmatpush.bf16.msra.mxu0 %v2512
        %2522 = vmatmul.bf16.gmra.mxu0 %v2509
        %v2523 = vpop.f32.mrf.mxu0
        %v2524 = vadd.f32 0.0, %v2523
        %v2525 = vpop.f32.mrf.mxu0
        %2526 = vdwg.mxu0
        %v2527 = vpack.c.bf16 %v2524, %v2524
        %2529 = vrot.lane.b32.xlu0 %v2527, 24
        %v2530 = vpop.permute.xlu0 %2529
        %2532 = vst.msk [vmem:[#allocation2 + $0x4] sm:$0xf] %vm1567, %v2530
        %v2533 = vld [vmem:[#allocation2] sm:$0xf]
        %v2534 = vld [vmem:[#allocation2 + $0x4] sm:$0xf]
        %v2535 = vld [vmem:[#allocation17] sm:$0xf]
        %v2536 = vld [vmem:[#allocation17 + $0x4] sm:$0xf]
        %v2537 = vld [vmem:[#allocation17 + $0x8] sm:$0xf]
        %v2538 = vld [vmem:[#allocation17 + $0xc] sm:$0xf]
        %v2539 = vld [vmem:[%s43] sm:$0x1]
        %v2541 = vperm.slane %v2539, 0
        %v2545 = vunpack.c.l.b16 %v2533
        %v2546 = vunpack.c.l.b16 %v2534
        %v2547 = vpack.c.b16 %v2546, %v2545
        %v2552 = vunpack.c.l.b16 %v2535
        %v2553 = vunpack.c.l.b16 %v2536
        %v2554 = vunpack.c.l.b16 %v2537
        %v2555 = vunpack.c.l.b16 %v2538
        %v2556 = vpack.c.b16 %v2553, %v2552
        %v2557 = vpack.c.b16 %v2555, %v2554
        %v2561 = vsel %vm1248, %v2547, 0
        %2563 = vmatpush.bf16.msra.mxu0 0
        %2564 = vmatpush.bf16.msra.mxu0 0
        %2565 = vmatpush.bf16.msra.mxu0 0
        %2566 = vmatpush.bf16.msra.mxu0 0
        %2567 = vmatpush.bf16.msra.mxu0 0
        %2568 = vmatpush.bf16.msra.mxu0 0
        %2569 = vmatpush.bf16.msra.mxu0 %v2557
        %2570 = vmatpush.bf16.msra.mxu0 %v2556
        %2571 = vmatmul.bf16.gmra.mxu0 %v2561
        %v2572 = vpop.f32.mrf.mxu0
        %v2573 = vadd.f32 %v2541, %v2572
        %v2574 = vpop.f32.mrf.mxu0
        %v2575 = vadd.f32 %v2541, %v2574
        %2576 = vdwg.mxu0
        %v2577 = vld [vmem:[#allocation18] sm:$0xf]
        %v2578 = vld [vmem:[#allocation18 + $0x4] sm:$0xf]
        %v2579 = vld [vmem:[#allocation18 + $0x8] sm:$0xf]
        %v2580 = vld [vmem:[#allocation18 + $0xc] sm:$0xf]
        %v2581 = vpack.c.bf16 %v2575, %v2573
        %v2582 = vld [vmem:[#allocation20] sm:$0xf]
        %v2583 = vld [vmem:[#allocation20 + $0x4] sm:$0xf]
        %v2584 = vld [vmem:[#allocation20 + $0x8] sm:$0xf]
        %v2585 = vld [vmem:[#allocation20 + $0xc] sm:$0xf]
        %v2590 = vunpack.c.l.b16 %v2582
        %v2591 = vunpack.c.l.b16 %v2583
        %v2592 = vunpack.c.l.b16 %v2584
        %v2593 = vunpack.c.l.b16 %v2585
        %v2594 = vpack.c.b16 %v2591, %v2590
        %v2595 = vpack.c.b16 %v2593, %v2592
        %v2599 = vsel %vm1248, %v2581, 0
        %2601 = vmatpush.bf16.msra.mxu0 0
        %2602 = vmatpush.bf16.msra.mxu0 0
        %2603 = vmatpush.bf16.msra.mxu0 0
        %2604 = vmatpush.bf16.msra.mxu0 0
        %2605 = vmatpush.bf16.msra.mxu0 0
        %2606 = vmatpush.bf16.msra.mxu0 0
        %2607 = vmatpush.bf16.msra.mxu0 %v2595
        %2608 = vmatpush.bf16.msra.mxu0 %v2594
        %2609 = vmatmul.bf16.gmra.mxu0 %v2599
        %v2610 = vpop.f32.mrf.mxu0
        %v2611 = vadd.f32 0.0, %v2610
        %v2612 = vpop.f32.mrf.mxu0
        %v2613 = vadd.f32 0.0, %v2612
        %2614 = vdwg.mxu0
        %v2619 = vunpack.c.l.b16 %v2577
        %v2620 = vunpack.c.l.b16 %v2578
        %v2621 = vunpack.c.l.b16 %v2579
        %v2622 = vunpack.c.l.b16 %v2580
        %v2623 = vpack.c.b16 %v2620, %v2619
        %v2624 = vpack.c.b16 %v2622, %v2621
        %2627 = vmatpush.bf16.msra.mxu0 0
        %2628 = vmatpush.bf16.msra.mxu0 0
        %2629 = vmatpush.bf16.msra.mxu0 0
        %2630 = vmatpush.bf16.msra.mxu0 0
        %2631 = vmatpush.bf16.msra.mxu0 0
        %2632 = vmatpush.bf16.msra.mxu0 0
        %2633 = vmatpush.bf16.msra.mxu0 %v2624
        %2634 = vmatpush.bf16.msra.mxu0 %v2623
        %2635 = vmatmul.bf16.gmra.mxu0 %v2015
        %v2636 = vpop.f32.mrf.mxu0
        %v2637 = vadd.f32 %v2611, %v2636
        %v2638 = vpop.f32.mrf.mxu0
        %v2639 = vadd.f32 %v2613, %v2638
        %2640 = vdwg.mxu0
        %v2641 = vld [vmem:[#allocation21] sm:$0x1]
        %v2643 = vperm.slane %v2641, 0
        %v2645 = vadd.f32 %v2637, %v2643
        %v2646 = vadd.f32 %v2639, %v2643
        %v2647 = vmax.f32 %v2645, 0.0
        %v2648 = vmax.f32 %v2646, 0.0
        %v2649 = vpack.c.bf16 %v2648, %v2647
        %v2650 = vld [vmem:[%s51] sm:$0xf]
        %v2651 = vld [vmem:[%s51 + $0x4] sm:$0xf]
        %v2652 = vld [vmem:[%s51 + $0x8] sm:$0xf]
        %v2653 = vld [vmem:[%s51 + $0xc] sm:$0xf]
        %v2654 = vld [vmem:[%s51 + $0x10] sm:$0xf]
        %v2655 = vld [vmem:[%s51 + $0x14] sm:$0xf]
        %v2656 = vld [vmem:[%s51 + $0x18] sm:$0xf]
        %v2657 = vld [vmem:[%s51 + $0x1c] sm:$0xf]
        %v2658 = vld [vmem:[#allocation23] sm:$0x1]
        %v2660 = vperm.slane %v2658, 0
        %v2670 = vunpack.c.l.b16 %v2650
        %v2671 = vunpack.c.l.b16 %v2651
        %v2672 = vunpack.c.l.b16 %v2652
        %v2673 = vunpack.c.l.b16 %v2653
        %v2674 = vunpack.c.l.b16 %v2654
        %v2675 = vunpack.c.l.b16 %v2655
        %v2676 = vunpack.c.l.b16 %v2656
        %v2677 = vunpack.c.l.b16 %v2657
        %v2678 = vpack.c.b16 %v2671, %v2670
        %v2679 = vpack.c.b16 %v2673, %v2672
        %v2680 = vpack.c.b16 %v2675, %v2674
        %v2681 = vpack.c.b16 %v2677, %v2676
        %v2687 = vsel %vm1973, %v2649, 0
        %2689 = vmatpush.bf16.msra.mxu0 0
        %2690 = vmatpush.bf16.msra.mxu0 0
        %2691 = vmatpush.bf16.msra.mxu0 0
        %2692 = vmatpush.bf16.msra.mxu0 0
        %2693 = vmatpush.bf16.msra.mxu0 %v2681
        %2694 = vmatpush.bf16.msra.mxu0 %v2680
        %2695 = vmatpush.bf16.msra.mxu0 %v2679
        %2696 = vmatpush.bf16.msra.mxu0 %v2678
        %2697 = vmatmul.bf16.gmra.mxu0 %v2687
        %v2698 = vpop.f32.mrf.mxu0
        %v2699 = vadd.f32 %v2660, %v2698
        %v2700 = vpop.f32.mrf.mxu0
        %v2701 = vadd.f32 %v2660, %v2700
        %2702 = vdwg.mxu0
        %v2703 = vadd.f32 %v1991, %v2699
        %v2704 = vadd.f32 %v1992, %v2701
        %v2705 = vld [vmem:[#allocation24] sm:$0xf]
        %v2706 = vld [vmem:[#allocation24 + $0x4] sm:$0xf]
        %v2707 = vld [vmem:[#allocation24 + $0x8] sm:$0xf]
        %v2708 = vld [vmem:[#allocation24 + $0xc] sm:$0xf]
        %v2709 = vld [vmem:[%s57] sm:$0x1]
        %v2710 = vpack.c.bf16 %v2704, %v2703
        %v2712 = vperm.slane %v2709, 0
        %v2718 = vunpack.c.l.b16 %v2705
        %v2719 = vunpack.c.l.b16 %v2706
        %v2720 = vunpack.c.l.b16 %v2707
        %v2721 = vunpack.c.l.b16 %v2708
        %v2722 = vpack.c.b16 %v2719, %v2718
        %v2723 = vpack.c.b16 %v2721, %v2720
        %v2727 = vsel %vm1248, %v2710, 0
        %2729 = vmatpush.bf16.msra.mxu0 0
        %2730 = vmatpush.bf16.msra.mxu0 0
        %2731 = vmatpush.bf16.msra.mxu0 0
        %2732 = vmatpush.bf16.msra.mxu0 0
        %2733 = vmatpush.bf16.msra.mxu0 0
        %2734 = vmatpush.bf16.msra.mxu0 0
        %2735 = vmatpush.bf16.msra.mxu0 %v2723
        %2736 = vmatpush.bf16.msra.mxu0 %v2722
        %2737 = vmatmul.bf16.gmra.mxu0 %v2727
        %v2738 = vpop.f32.mrf.mxu0
        %v2739 = vadd.f32 %v2712, %v2738
        %v2740 = vpop.f32.mrf.mxu0
        %v2741 = vadd.f32 %v2712, %v2740
        %2742 = vdwg.mxu0
        %v2743 = vmul.f32 %v2739, %v2739
        %v2744 = vmul.f32 %v2741, %v2741
        %v2745 = vsel %vm1248, %v2743, 0.0
        %2746 = vadd.xlane.f32.xlu0 %v2745
        %v2747 = vpop.xlane.xlu0 %2746
        %v2748 = vsel %vm1248, %v2744, 0.0
        %2749 = vadd.xlane.f32.xlu0 %v2748
        %v2750 = vpop.xlane.xlu0 %2749
        %v2751 = vmax.f32 %v2747, 1e-24
        %v2752 = vmax.f32 %v2750, 1e-24
        %v2753 = vrsqrt.pop %v2751
        %v2754 = vmul.f32 %v2753, %v2751
        %v2755 = vmul.f32 %v2754, %v2753
        %v2756 = vmul.f32 0.5, %v2755
        %v2757 = vsub.f32 1.5, %v2756
        %v2758 = vmul.f32 %v2753, %v2757
        %vm2759 = vweird.f32 %v2751
        %vm2760 = vweird.f32 %v2753
        %vm2761 = vmor %vm2759, %vm2760
        %v2762 = vsel %vm2761, %v2753, %v2758
        %v2763 = vrsqrt.pop %v2752
        %v2764 = vmul.f32 %v2763, %v2752
        %v2765 = vmul.f32 %v2764, %v2763
        %v2766 = vmul.f32 0.5, %v2765
        %v2767 = vsub.f32 1.5, %v2766
        %v2768 = vmul.f32 %v2763, %v2767
        %vm2769 = vweird.f32 %v2752
        %vm2770 = vweird.f32 %v2763
        %vm2771 = vmor %vm2769, %vm2770
        %v2772 = vsel %vm2771, %v2763, %v2768
        %v2773 = vmul.f32 %v2739, %v2762
        %v2774 = vmul.f32 %v2741, %v2772
        %v2775 = vpack.c.bf16 %v2773, %v2773
        %v2776 = vpack.c.bf16 %v2774, %v2774
        %v2778 = vsel %vm1248, %v2775, 0
        %v2781 = vsel %vm1248, %v2776, 0
        %2783 = vmatpush.bf16.xpose.msra.mxu0 0
        %2784 = vmatpush.bf16.xpose.msra.mxu0 0
        %2785 = vmatpush.bf16.xpose.msra.mxu0 0
        %2786 = vmatpush.bf16.xpose.msra.mxu0 0
        %2787 = vmatpush.bf16.xpose.msra.mxu0 0
        %2788 = vmatpush.bf16.xpose.msra.mxu0 0
        %2789 = vmatpush.bf16.xpose.msra.mxu0 0
        %2790 = vmatpush.bf16.xpose.msra.mxu0 %v2781
        %2791 = vmatmul.bf16.gmra.mxu0 %v2778
        %v2792 = vpop.f32.mrf.mxu0
        %v2793 = vadd.f32 0.0, %v2792
        %v2794 = vpop.f32.mrf.mxu0
        %2795 = vdwg.mxu0
        %v2796 = vmul.f32 %v2793, 0.499975
        %v2797 = vadd.f32 %v2796, 0.5
        %2798 = vst.msk [vmem:[%s1139] sm:$0xff] %vm1320, %v2797
        %s2799 = sand.u32 %s713, 1
        %s2800 = scalar_lea.sflag [#allocation5], %s2799
        %s2801 = sand.u32 %s713, 1
        %s2802 = smul.addr %s2801, 8
        %s2803 = scalar_lea.vmem [#allocation26], %s2802
        // Predicated region
        $region193: #{pose_gat_forward.1} parent=135 // pred_check
          %p2804 = pneg %p723
        $region194: #{pose_gat_forward.1} parent=135 // pred_check_branch
          %2806 = sbr.rel (%p2804) target = $region196
        $region195: #{pose_gat_forward.1} parent=135 // pred_region
          %2808 = vsyncadd %s2800, 0
          %s2809 = smul.addr %s81, 8
          %s2810 = scalar_lea.hbm %s59, %s2809
          %s2812 = sshll.u32 %s2803, 4
          %s2813 = int_to_ptr.vmem [resolvable:$true] %s2812
          %s2814 = sshll.u32 %s2810, 4
          %s2815 = int_to_ptr.hbm [resolvable:$true] %s2814
          %2817 = dma.vmem_to_hbm [thread:$0]  %s2813, 128, %s2815, %s2800
        $region196: #{pose_gat_forward.1} parent=135 // pred_fallthru
          _
      $region136: #{pose_gat_forward.1} parent=5 // pred_fallthru
        _
      %p2818 = scmp.le.s32.totalorder 2, %s76
      // Predicated region
      $region197: #{pose_gat_forward.1} parent=5 // pred_check
        %p2819 = pneg %p2818
      $region198: #{pose_gat_forward.1} parent=5 // pred_check_branch
        %2821 = sbr.rel (%p2819) target = $region200
      $region199: #{pose_gat_forward.1} parent=5 // pred_region
        %s2822 = ssub.s32 %s76, 2
        // Predicated region
        $region201: #{pose_gat_forward.1} parent=199 // pred_check
          %p2823 = pneg %p729
        $region202: #{pose_gat_forward.1} parent=199 // pred_check_branch
          %2825 = sbr.rel (%p2823) target = $region204
        $region203: #{pose_gat_forward.1} parent=199 // pred_region
          %s2826 = sand.u32 %s714, 1
          %s2827 = scalar_lea.sflag [#allocation5], %s2826
          %s2828 = sand.u32 %s714, 1
          %s2829 = smul.addr %s2828, 8
          %s2830 = scalar_lea.vmem [#allocation26], %s2829
          %2832 = dma.done %s2827, 128
        $region204: #{pose_gat_forward.1} parent=199 // pred_fallthru
          _
      $region200: #{pose_gat_forward.1} parent=5 // pred_fallthru
        _
    $region6: #{pose_gat_forward.1} parent=1 // loop_footer
      %s80 = sadd.s32 1, %s76
    $region7: #{pose_gat_forward.1} parent=1 // loop_footer_branch
      %75 = sbr.rel target = $region3
    $region8: #{pose_gat_forward.1} parent=1 // loop_exit
      _
    %2833 = vsyncpa [#allocation4], 1
    %s2834 = scalar_lea.sflag [#allocation4], 1
    %2835 = vsyncpa %s2834, 1
    %2836 = vsyncpa [#allocation7], 1
    %2837 = vsyncpa [#allocation10], 1
    %2838 = vsyncpa [#allocation13], 1
    %2839 = vsyncpa [#allocation16], 1
    %2840 = vsyncpa [#allocation19], 1
    %2841 = vsyncpa [#allocation22], 1
    %2842 = vsyncpa [#allocation25], 1
    %2843 = vsyncpa [#allocation5], 1
    %s2844 = scalar_lea.sflag [#allocation5], 1
    %2845 = vsyncpa %s2844, 1

</llo_original>
